<compile_context>
chip_gen: v7x
topology: tpu7x:2x2x1
jax: 0.10.0
libtpu: 0.0.40
codegen_flags: <defaults>
</compile_context>

<pallas_src>
import jax
import jax.numpy as jnp
from jax.experimental import pallas as pl
from jax.experimental.pallas import tpu as pltpu


def _round_up(a: int, b: int) -> int:
    return (a + b - 1) // b * b


def _cdiv(a: int, b: int) -> int:
    return (a + b - 1) // b


def liquid_kernel(step_ref, x_ref, wT_ref, dwsT_ref, tfT_ref, tpT_ref, b_ref,
                  o_ref, wdyn_ref):
    # Grid = (N tiles, M tiles).  Build the dynamic weight slab for this N
    # tile once, at the first M step; the sin (EUP) + fma (VPU) work over
    # (Kp, tn) would otherwise be repeated for every M tile.
    @pl.when(pl.program_id(1) == 0)
    def _():
        step_f = step_ref[0].astype(jnp.float32)
        time_factor = jnp.sin(step_f * tfT_ref[...] + tpT_ref[...])
        wdyn_ref[...] = (wT_ref[...] + dwsT_ref[...] * time_factor).astype(
            wdyn_ref.dtype)

    # (tm, Kp) @ (Kp, tn) on the MXU with f32 accumulation.  x is cast to the
    # matmul dtype here (keeps the wrapper free of extra activation passes);
    # the weight arrives pre-transposed so there is no in-kernel transpose.
    x_tile = x_ref[...].astype(wdyn_ref.dtype)
    acc = jnp.dot(x_tile, wdyn_ref[...], preferred_element_type=jnp.float32)
    o_ref[...] = (acc + b_ref[...]).astype(o_ref.dtype)


def _pick_tiling(M, Kp, Np, x_bytes, out_bytes, w_bytes, n_align,
                 budget_bytes, tm_cap, tn_cap):
    """Pick (tm, tn) so the per-core VMEM footprint fits `budget_bytes`."""
    # Balance the M tiles so the ragged last tile stays small.
    num_m = max(1, _cdiv(M, tm_cap))
    tm = min(tm_cap, _round_up(_cdiv(M, num_m), 8))
    tn = min(Np, tn_cap)

    def est(tm_, tn_):
        return (2 * tm_ * Kp * x_bytes            # x tile (double buffered)
                + 2 * tm_ * tn_ * out_bytes       # out tile (double buffered)
                + 2 * (4 * Kp * tn_ + tn_) * 4    # params + bias (worst case)
                + Kp * tn_ * w_bytes)             # dynamic-weight scratch

    while est(tm, tn) > budget_bytes:
        if tm > 512:
            tm = _round_up(_cdiv(tm, 2), 8)
        elif tn > n_align:
            tn = max(n_align, (tn // 2) // n_align * n_align)
        elif tm > 8:
            tm = _round_up(_cdiv(tm, 2), 8)
        else:
            raise ValueError(
                f"LiquidFunction kernel cannot fit the VMEM budget "
                f"({budget_bytes} bytes) for Kp={Kp}, Np={Np}.")
    return tm, tn, est(tm, tn)


def liquid_forward(x, weight, bias, dw_scale, db_scale, time_freq, time_phase,
                   step, *, matmul_dtype=jnp.bfloat16,
                   vmem_budget_bytes=40 << 20, tm_cap=2048, tn_cap=512):
    """x: (..., input_dim) -> (..., output_dim), fused dynamic-weight linear."""
    orig_shape = x.shape
    K = int(orig_shape[-1])
    N = int(weight.shape[0])
    x2d = x.reshape(-1, K)
    M = int(x2d.shape[0])
    out_dtype = x.dtype
    f32 = jnp.float32
    is_bf16 = jnp.dtype(matmul_dtype) == jnp.dtype(jnp.bfloat16)

    # Lane alignment.  K keeps the minimal 128 alignment (aligning K further
    # would force an extra zero-pad pass over the activations); N is aligned
    # to 256 for bf16 operands so N tiles match the 256-wide v6e/v7x MXU.
    k_align = 128
    n_align = 256 if (is_bf16 and N > 128) else 128
    Kp = _round_up(K, k_align)
    Np = _round_up(N, n_align)

    x_bytes = jnp.dtype(x.dtype).itemsize
    out_bytes = jnp.dtype(out_dtype).itemsize
    w_bytes = jnp.dtype(matmul_dtype).itemsize

    tm, tn, est_vmem = _pick_tiling(M, Kp, Np, x_bytes, out_bytes, w_bytes,
                                    n_align, vmem_budget_bytes, tm_cap, tn_cap)
    n_tiles = _cdiv(Np, tn)
    m_tiles = _cdiv(M, tm)
    Npp = n_tiles * tn

    # Weight-shaped params: transpose to (K, N) once in the wrapper (keeps the
    # XLU transpose off the kernel's critical path) and zero-pad to (Kp, Npp).
    def pad_t(a):
        a = a.astype(f32).T
        return jnp.pad(a, ((0, Kp - K), (0, Npp - N)))

    wT_p = pad_t(weight)
    dwsT_p = pad_t(dw_scale)
    tfT_p = pad_t(time_freq)
    tpT_p = pad_t(time_phase)

    # Dynamic bias is O(N): fold it in the wrapper.
    step_f = jnp.asarray(step, f32)
    b_dyn = bias.astype(f32) + db_scale.astype(f32) * jnp.sin(step_f * 0.01)
    b_dyn_p = jnp.pad(b_dyn, (0, Npp - N)).reshape(1, Npp)

    # x stays in its original dtype (cast happens in-kernel).  Only pad K when
    # it is not lane-aligned; M is left ragged (Pallas clips edge blocks).
    x_in = x2d if Kp == K else jnp.pad(x2d, ((0, 0), (0, Kp - K)))

    step_arr = jnp.asarray(step, dtype=jnp.int32).reshape(1)

    grid = (n_tiles, m_tiles)
    vmem_limit = max(32 << 20, min(int(est_vmem * 5 // 4) + (2 << 20), 56 << 20))

    cost = pl.CostEstimate(
        flops=2 * M * Npp * Kp,
        transcendentals=Kp * Npp,
        bytes_accessed=(n_tiles * M * Kp * x_bytes
                        + 4 * Kp * Npp * 4 + Npp * 4
                        + M * N * out_bytes),
    )

    def build(single_buffer_params):
        def const_spec(shape, index_map):
            # Blocks that only change with the N tile: single-buffer them to
            # save VMEM (default double-buffering is pure waste here).
            if single_buffer_params:
                return pl.BlockSpec(shape, index_map,
                                    pipeline_mode=pl.Buffered(1))
            return pl.BlockSpec(shape, index_map)

        return pl.pallas_call(
            liquid_kernel,
            out_shape=jax.ShapeDtypeStruct((M, N), out_dtype),
            grid_spec=pltpu.PrefetchScalarGridSpec(
                num_scalar_prefetch=1,                 # step -> SMEM scalar
                grid=grid,
                in_specs=[
                    pl.BlockSpec((tm, Kp), lambda i, j, s: (j, 0)),    # x
                    const_spec((Kp, tn), lambda i, j, s: (0, i)),      # weight.T
                    const_spec((Kp, tn), lambda i, j, s: (0, i)),      # dw_scale.T
                    const_spec((Kp, tn), lambda i, j, s: (0, i)),      # time_freq.T
                    const_spec((Kp, tn), lambda i, j, s: (0, i)),      # time_phase.T
                    const_spec((1, tn), lambda i, j, s: (0, i)),       # dyn bias
                ],
                out_specs=pl.BlockSpec((tm, tn), lambda i, j, s: (j, i)),
                scratch_shapes=[pltpu.VMEM((Kp, tn), matmul_dtype)],   # w_dyn
            ),
            compiler_params=pltpu.CompilerParams(
                # N tiles are independent ("parallel" -> both v7x TensorCores
                # get work and each builds its own w_dyn scratch at M step 0).
                # The M axis must stay sequential: the scratch is filled only
                # at the first M step of each N tile.
                dimension_semantics=("parallel", "arbitrary"),
                vmem_limit_bytes=vmem_limit,
            ),
            cost_estimate=cost,
        )

    args = (step_arr, x_in, wT_p, dwsT_p, tfT_p, tpT_p, b_dyn_p)
    try:
        out = build(True)(*args)
    except Exception:
        # pl.Buffered(1) not supported by this jax/libtpu combination: fall
        # back to default double-buffered specs (same semantics, more VMEM).
        out = build(False)(*args)

    return out.reshape(*orig_shape[:-1], N)


def liquid_forward_ref(x, weight, bias, dw_scale, db_scale, time_freq,
                       time_phase, step):
    """Pure-JAX reference implementation (mirrors the PyTorch module)."""
    step_f = jnp.float32(step)
    time_factor = jnp.sin(step_f * time_freq + time_phase)
    w_dyn = weight + dw_scale * time_factor
    b_dyn = bias + db_scale * jnp.sin(step_f * 0.01)
    return jnp.einsum('...k,nk->...n', x, w_dyn) + b_dyn


if __name__ == "__main__":
    key = jax.random.PRNGKey(0)
    k_x, k_w, k_tf, k_tp, k_x2, k_w2, k_tf2, k_tp2 = jax.random.split(key, 8)

    # ---- case 1: small shapes (batch=2, seq=8, in=32, out=32) -------------
    batch, seq, input_dim, output_dim, step = 2, 8, 32, 32, 3
    x = jax.random.normal(k_x, (batch, seq, input_dim), jnp.float32)
    weight = jax.random.normal(k_w, (output_dim, input_dim), jnp.float32) * 0.02
    bias = jnp.zeros((output_dim,), jnp.float32)
    dw_scale = jnp.ones((output_dim, input_dim), jnp.float32) * 0.01
    db_scale = jnp.ones((output_dim,), jnp.float32) * 0.01
    time_freq = jax.random.normal(k_tf, (output_dim, input_dim), jnp.float32) * 0.01
    time_phase = jax.random.normal(k_tp, (output_dim, input_dim), jnp.float32) * 0.01

    ref = liquid_forward_ref(x, weight, bias, dw_scale, db_scale,
                             time_freq, time_phase, step)

    out_f32 = jax.block_until_ready(
        liquid_forward(x, weight, bias, dw_scale, db_scale, time_freq,
                       time_phase, step, matmul_dtype=jnp.float32))
    assert out_f32.shape == (batch, seq, output_dim)
    assert jnp.allclose(out_f32, ref, atol=1e-5, rtol=1e-5), "case1 f32 mismatch"

    out_bf16 = jax.block_until_ready(
        liquid_forward(x, weight, bias, dw_scale, db_scale, time_freq,
                       time_phase, step))            # bf16 MXU operands (default)
    assert jnp.allclose(out_bf16, ref, atol=2e-2, rtol=2e-2), "case1 bf16 mismatch"

    # ---- case 2: ragged K/N/M, multiple M tiles with a partial edge tile ---
    b2, s2, in2, out2, step2 = 2, 300, 160, 96, 7
    x2 = jax.random.normal(k_x2, (b2, s2, in2), jnp.float32)
    w2 = jax.random.normal(k_w2, (out2, in2), jnp.float32) * 0.02
    bias2 = jnp.zeros((out2,), jnp.float32)
    dws2 = jnp.ones((out2, in2), jnp.float32) * 0.01
    dbs2 = jnp.ones((out2,), jnp.float32) * 0.01
    tf2 = jax.random.normal(k_tf2, (out2, in2), jnp.float32) * 0.01
    tp2 = jax.random.normal(k_tp2, (out2, in2), jnp.float32) * 0.01

    ref2 = liquid_forward_ref(x2, w2, bias2, dws2, dbs2, tf2, tp2, step2)

    out2_f32 = jax.block_until_ready(
        liquid_forward(x2, w2, bias2, dws2, dbs2, tf2, tp2, step2,
                       matmul_dtype=jnp.float32, tm_cap=64))
    assert out2_f32.shape == (b2, s2, out2)
    assert jnp.allclose(out2_f32, ref2, atol=1e-4, rtol=1e-4), "case2 f32 mismatch"

    out2_bf16 = jax.block_until_ready(
        liquid_forward(x2, w2, bias2, dws2, dbs2, tf2, tp2, step2, tm_cap=64))
    assert jnp.allclose(out2_bf16, ref2, atol=3e-2, rtol=3e-2), "case2 bf16 mismatch"

    print("KERNEL_OK")
</pallas_src>

<mosaic_0001>
module attributes {stable_mosaic.version = 11 : i64} {
  func.func @liquid_kernel(%arg0: i32, %arg1: i32, %arg2: memref<1xi32, #tpu.memory_space<smem>>, %arg3: memref<16x128xf32, #tpu.memory_space<vmem>>, %arg4: memref<128x128xf32, #tpu.memory_space<vmem>>, %arg5: memref<128x128xf32, #tpu.memory_space<vmem>>, %arg6: memref<128x128xf32, #tpu.memory_space<vmem>>, %arg7: memref<128x128xf32, #tpu.memory_space<vmem>>, %arg8: memref<1x128xf32, #tpu.memory_space<vmem>>, %arg9: memref<16x128xf32, #tpu.memory_space<vmem>>, %arg10: memref<128x128xf32, #tpu.memory_space<vmem>>) attributes {dimension_semantics = [#tpu.dimension_semantics<parallel>, #tpu.dimension_semantics<arbitrary>], iteration_bounds = array<i64: 1, 1>, scalar_prefetch = 1 : i64, scratch_operands = 1 : i64, tpu.core_type = #tpu.core_type<tc>, window_params = [{transform_indices = @transform_0, window_bounds = array<i64: 16, 128>}, {pipeline_mode = #tpu.pipeline_mode<synchronous>, transform_indices = @transform_1, window_bounds = array<i64: 128, 128>}, {pipeline_mode = #tpu.pipeline_mode<synchronous>, transform_indices = @transform_2, window_bounds = array<i64: 128, 128>}, {pipeline_mode = #tpu.pipeline_mode<synchronous>, transform_indices = @transform_3, window_bounds = array<i64: 128, 128>}, {pipeline_mode = #tpu.pipeline_mode<synchronous>, transform_indices = @transform_4, window_bounds = array<i64: 128, 128>}, {pipeline_mode = #tpu.pipeline_mode<synchronous>, transform_indices = @transform_5, window_bounds = array<i64: 1, 128>}, {transform_indices = @transform_6, window_bounds = array<i64: 16, 128>}]} {
    %c0_i32 = arith.constant 0 : i32
    %0 = arith.cmpi eq, %arg1, %c0_i32 : i32
    %1 = arith.extui %0 : i1 to i32
    %c0_i32_0 = arith.constant 0 : i32
    %2 = arith.cmpi ne, %1, %c0_i32_0 : i32
    scf.if %2 {
      %c0_8 = arith.constant 0 : index
      %10 = memref.load %arg2[%c0_8] : memref<1xi32, #tpu.memory_space<smem>>
      %11 = arith.sitofp %10 : i32 to f32
      %c0_9 = arith.constant 0 : index
      %c0_10 = arith.constant 0 : index
      %12 = vector.load %arg6[%c0_9, %c0_10] : memref<128x128xf32, #tpu.memory_space<vmem>>, vector<128x128xf32>
      %13 = vector.broadcast %11 : f32 to vector<128x128xf32>
      %14 = arith.mulf %13, %12 : vector<128x128xf32>
      %c0_11 = arith.constant 0 : index
      %c0_12 = arith.constant 0 : index
      %15 = vector.load %arg7[%c0_11, %c0_12] : memref<128x128xf32, #tpu.memory_space<vmem>>, vector<128x128xf32>
      %16 = arith.addf %14, %15 : vector<128x128xf32>
      %17 = math.sin %16 : vector<128x128xf32>
      %c0_13 = arith.constant 0 : index
      %c0_14 = arith.constant 0 : index
      %18 = vector.load %arg4[%c0_13, %c0_14] : memref<128x128xf32, #tpu.memory_space<vmem>>, vector<128x128xf32>
      %c0_15 = arith.constant 0 : index
      %c0_16 = arith.constant 0 : index
      %19 = vector.load %arg5[%c0_15, %c0_16] : memref<128x128xf32, #tpu.memory_space<vmem>>, vector<128x128xf32>
      %20 = arith.mulf %19, %17 : vector<128x128xf32>
      %21 = arith.addf %18, %20 : vector<128x128xf32>
      %c0_17 = arith.constant 0 : index
      %c0_18 = arith.constant 0 : index
      %22 = vector.load %arg10[%c0_17, %c0_18] : memref<128x128xf32, #tpu.memory_space<vmem>>, vector<128x128xf32>
      tpu.vector_store %arg10[%c0_17, %c0_18], %21 {strides = array<i32>} : memref<128x128xf32, #tpu.memory_space<vmem>>, vector<128x128xf32>,
    } else {
    }
    %c0 = arith.constant 0 : index
    %c0_1 = arith.constant 0 : index
    %3 = vector.load %arg3[%c0, %c0_1] : memref<16x128xf32, #tpu.memory_space<vmem>>, vector<16x128xf32>
    %c0_2 = arith.constant 0 : index
    %c0_3 = arith.constant 0 : index
    %4 = vector.load %arg10[%c0_2, %c0_3] : memref<128x128xf32, #tpu.memory_space<vmem>>, vector<128x128xf32>
    %cst = arith.constant dense<0.000000e+00> : vector<16x128xf32>
    %5 = tpu.matmul %3, %4, %cst {dimension_numbers = #tpu.dot_dimension_numbers<[1], [0], [0], [1], [0, 0, 1, 1], [], []>} : vector<16x128xf32>, vector<128x128xf32>, vector<16x128xf32> -> vector<16x128xf32>
    %c0_4 = arith.constant 0 : index
    %c0_5 = arith.constant 0 : index
    %6 = vector.load %arg8[%c0_4, %c0_5] : memref<1x128xf32, #tpu.memory_space<vmem>>, vector<1x128xf32>
    %7 = vector.broadcast %6 : vector<1x128xf32> to vector<16x128xf32>
    %8 = arith.addf %5, %7 : vector<16x128xf32>
    %c0_6 = arith.constant 0 : index
    %c0_7 = arith.constant 0 : index
    %9 = vector.load %arg9[%c0_6, %c0_7] : memref<16x128xf32, #tpu.memory_space<vmem>>, vector<16x128xf32>
    tpu.vector_store %arg9[%c0_6, %c0_7], %8 {strides = array<i32>} : memref<16x128xf32, #tpu.memory_space<vmem>>, vector<16x128xf32>,
    return
  }
  func.func @transform_0(%arg0: i32, %arg1: i32, %arg2: memref<1xi32, #tpu.memory_space<smem>>) -> (i32, i32) {
    %c0_i32 = arith.constant 0 : i32
    %c0_i32_0 = arith.constant 0 : i32
    return %arg1, %c0_i32 : i32, i32
  }
  func.func @transform_1(%arg0: i32, %arg1: i32, %arg2: memref<1xi32, #tpu.memory_space<smem>>) -> (i32, i32) {
    %c0_i32 = arith.constant 0 : i32
    %c0_i32_0 = arith.constant 0 : i32
    return %c0_i32, %arg0 : i32, i32
  }
  func.func @transform_2(%arg0: i32, %arg1: i32, %arg2: memref<1xi32, #tpu.memory_space<smem>>) -> (i32, i32) {
    %c0_i32 = arith.constant 0 : i32
    %c0_i32_0 = arith.constant 0 : i32
    return %c0_i32, %arg0 : i32, i32
  }
  func.func @transform_3(%arg0: i32, %arg1: i32, %arg2: memref<1xi32, #tpu.memory_space<smem>>) -> (i32, i32) {
    %c0_i32 = arith.constant 0 : i32
    %c0_i32_0 = arith.constant 0 : i32
    return %c0_i32, %arg0 : i32, i32
  }
  func.func @transform_4(%arg0: i32, %arg1: i32, %arg2: memref<1xi32, #tpu.memory_space<smem>>) -> (i32, i32) {
    %c0_i32 = arith.constant 0 : i32
    %c0_i32_0 = arith.constant 0 : i32
    return %c0_i32, %arg0 : i32, i32
  }
  func.func @transform_5(%arg0: i32, %arg1: i32, %arg2: memref<1xi32, #tpu.memory_space<smem>>) -> (i32, i32) {
    %c0_i32 = arith.constant 0 : i32
    %c0_i32_0 = arith.constant 0 : i32
    return %c0_i32, %arg0 : i32, i32
  }
  func.func @transform_6(%arg0: i32, %arg1: i32, %arg2: memref<1xi32, #tpu.memory_space<smem>>) -> (i32, i32) {
    %c0_i32 = arith.constant 0 : i32
    return %arg1, %arg0 : i32, i32
  }
}

module attributes {stable_mosaic.version = 11 : i64} {
  func.func @liquid_kernel(%arg0: i32, %arg1: i32, %arg2: memref<1xi32, #tpu.memory_space<smem>>, %arg3: memref<16x128xf32, #tpu.memory_space<vmem>>, %arg4: memref<128x128xf32, #tpu.memory_space<vmem>>, %arg5: memref<128x128xf32, #tpu.memory_space<vmem>>, %arg6: memref<128x128xf32, #tpu.memory_space<vmem>>, %arg7: memref<128x128xf32, #tpu.memory_space<vmem>>, %arg8: memref<1x128xf32, #tpu.memory_space<vmem>>, %arg9: memref<16x128xf32, #tpu.memory_space<vmem>>, %arg10: memref<128x128xf32, #tpu.memory_space<vmem>>) attributes {dimension_semantics = [#tpu.dimension_semantics<parallel>, #tpu.dimension_semantics<arbitrary>], iteration_bounds = array<i64: 1, 1>, scalar_prefetch = 1 : i64, scratch_operands = 1 : i64, tpu.core_type = #tpu.core_type<tc>, window_params = [{transform_indices = @transform_0, window_bounds = array<i64: 16, 128>}, {transform_indices = @transform_1, window_bounds = array<i64: 128, 128>}, {transform_indices = @transform_2, window_bounds = array<i64: 128, 128>}, {transform_indices = @transform_3, window_bounds = array<i64: 128, 128>}, {transform_indices = @transform_4, window_bounds = array<i64: 128, 128>}, {transform_indices = @transform_5, window_bounds = array<i64: 1, 128>}, {transform_indices = @transform_6, window_bounds = array<i64: 16, 128>}]} {
    %c0_i32 = arith.constant 0 : i32
    %0 = arith.cmpi eq, %arg1, %c0_i32 : i32
    %1 = arith.extui %0 : i1 to i32
    %c0_i32_0 = arith.constant 0 : i32
    %2 = arith.cmpi ne, %1, %c0_i32_0 : i32
    scf.if %2 {
      %c0_8 = arith.constant 0 : index
      %10 = memref.load %arg2[%c0_8] : memref<1xi32, #tpu.memory_space<smem>>
      %11 = arith.sitofp %10 : i32 to f32
      %c0_9 = arith.constant 0 : index
      %c0_10 = arith.constant 0 : index
      %12 = vector.load %arg6[%c0_9, %c0_10] : memref<128x128xf32, #tpu.memory_space<vmem>>, vector<128x128xf32>
      %13 = vector.broadcast %11 : f32 to vector<128x128xf32>
      %14 = arith.mulf %13, %12 : vector<128x128xf32>
      %c0_11 = arith.constant 0 : index
      %c0_12 = arith.constant 0 : index
      %15 = vector.load %arg7[%c0_11, %c0_12] : memref<128x128xf32, #tpu.memory_space<vmem>>, vector<128x128xf32>
      %16 = arith.addf %14, %15 : vector<128x128xf32>
      %17 = math.sin %16 : vector<128x128xf32>
      %c0_13 = arith.constant 0 : index
      %c0_14 = arith.constant 0 : index
      %18 = vector.load %arg4[%c0_13, %c0_14] : memref<128x128xf32, #tpu.memory_space<vmem>>, vector<128x128xf32>
      %c0_15 = arith.constant 0 : index
      %c0_16 = arith.constant 0 : index
      %19 = vector.load %arg5[%c0_15, %c0_16] : memref<128x128xf32, #tpu.memory_space<vmem>>, vector<128x128xf32>
      %20 = arith.mulf %19, %17 : vector<128x128xf32>
      %21 = arith.addf %18, %20 : vector<128x128xf32>
      %c0_17 = arith.constant 0 : index
      %c0_18 = arith.constant 0 : index
      %22 = vector.load %arg10[%c0_17, %c0_18] : memref<128x128xf32, #tpu.memory_space<vmem>>, vector<128x128xf32>
      tpu.vector_store %arg10[%c0_17, %c0_18], %21 {strides = array<i32>} : memref<128x128xf32, #tpu.memory_space<vmem>>, vector<128x128xf32>,
    } else {
    }
    %c0 = arith.constant 0 : index
    %c0_1 = arith.constant 0 : index
    %3 = vector.load %arg3[%c0, %c0_1] : memref<16x128xf32, #tpu.memory_space<vmem>>, vector<16x128xf32>
    %c0_2 = arith.constant 0 : index
    %c0_3 = arith.constant 0 : index
    %4 = vector.load %arg10[%c0_2, %c0_3] : memref<128x128xf32, #tpu.memory_space<vmem>>, vector<128x128xf32>
    %cst = arith.constant dense<0.000000e+00> : vector<16x128xf32>
    %5 = tpu.matmul %3, %4, %cst {dimension_numbers = #tpu.dot_dimension_numbers<[1], [0], [0], [1], [0, 0, 1, 1], [], []>} : vector<16x128xf32>, vector<128x128xf32>, vector<16x128xf32> -> vector<16x128xf32>
    %c0_4 = arith.constant 0 : index
    %c0_5 = arith.constant 0 : index
    %6 = vector.load %arg8[%c0_4, %c0_5] : memref<1x128xf32, #tpu.memory_space<vmem>>, vector<1x128xf32>
    %7 = vector.broadcast %6 : vector<1x128xf32> to vector<16x128xf32>
    %8 = arith.addf %5, %7 : vector<16x128xf32>
    %c0_6 = arith.constant 0 : index
    %c0_7 = arith.constant 0 : index
    %9 = vector.load %arg9[%c0_6, %c0_7] : memref<16x128xf32, #tpu.memory_space<vmem>>, vector<16x128xf32>
    tpu.vector_store %arg9[%c0_6, %c0_7], %8 {strides = array<i32>} : memref<16x128xf32, #tpu.memory_space<vmem>>, vector<16x128xf32>,
    return
  }
  func.func @transform_0(%arg0: i32, %arg1: i32, %arg2: memref<1xi32, #tpu.memory_space<smem>>) -> (i32, i32) {
    %c0_i32 = arith.constant 0 : i32
    %c0_i32_0 = arith.constant 0 : i32
    return %arg1, %c0_i32 : i32, i32
  }
  func.func @transform_1(%arg0: i32, %arg1: i32, %arg2: memref<1xi32, #tpu.memory_space<smem>>) -> (i32, i32) {
    %c0_i32 = arith.constant 0 : i32
    %c0_i32_0 = arith.constant 0 : i32
    return %c0_i32, %arg0 : i32, i32
  }
  func.func @transform_2(%arg0: i32, %arg1: i32, %arg2: memref<1xi32, #tpu.memory_space<smem>>) -> (i32, i32) {
    %c0_i32 = arith.constant 0 : i32
    %c0_i32_0 = arith.constant 0 : i32
    return %c0_i32, %arg0 : i32, i32
  }
  func.func @transform_3(%arg0: i32, %arg1: i32, %arg2: memref<1xi32, #tpu.memory_space<smem>>) -> (i32, i32) {
    %c0_i32 = arith.constant 0 : i32
    %c0_i32_0 = arith.constant 0 : i32
    return %c0_i32, %arg0 : i32, i32
  }
  func.func @transform_4(%arg0: i32, %arg1: i32, %arg2: memref<1xi32, #tpu.memory_space<smem>>) -> (i32, i32) {
    %c0_i32 = arith.constant 0 : i32
    %c0_i32_0 = arith.constant 0 : i32
    return %c0_i32, %arg0 : i32, i32
  }
  func.func @transform_5(%arg0: i32, %arg1: i32, %arg2: memref<1xi32, #tpu.memory_space<smem>>) -> (i32, i32) {
    %c0_i32 = arith.constant 0 : i32
    %c0_i32_0 = arith.constant 0 : i32
    return %c0_i32, %arg0 : i32, i32
  }
  func.func @transform_6(%arg0: i32, %arg1: i32, %arg2: memref<1xi32, #tpu.memory_space<smem>>) -> (i32, i32) {
    %c0_i32 = arith.constant 0 : i32
    return %arg1, %arg0 : i32, i32
  }
}

</mosaic_0001>

<llo_original>
// kernel: tpu_custom_call.1
$region0: #{tpu_custom_call.1}
  #allocation0 [shape = 'u32[]', space=smem, size = 0x4, offset = 0x4, fixed_abs, tag = 'smem constant byte address 0x4 - core index']
  #allocation1 [shape = 'u32[144,128]{1,0:T(1,128)}', space=vmem, size = 0x12000, scoped, tag = 'internal scratch']
  #allocation2 [shape = 'f32[128,128]{1,0:T(8,128)}', space=vmem, size = 0x10000, scoped, tag = 'scratch operand']
  #allocation3 [shape = 's32[1]{0}', space=sflag, size = 0x4, scoped, tag = 'scoped memory for tpu_custom_call.1']
  #allocation4 [shape = 's32[1]{0:T(128)S(6)}', space=smem, size = 0x200, scoped, tag = 'prefetched SMEM operand 0']
  %s0 = inlined_call_operand.<no memory space> [shape: s32[1], index: 0, kind: input, shape index: {}]
  %s1 = inlined_call_operand.hbm [shape: f32[16,128], index: 1, kind: input, shape index: {}]
  %s2 = inlined_call_operand.hbm [shape: f32[128,128], index: 2, kind: input, shape index: {}]
  %s3 = inlined_call_operand.hbm [shape: f32[128,128], index: 3, kind: input, shape index: {}]
  %s4 = inlined_call_operand.hbm [shape: f32[128,128], index: 4, kind: input, shape index: {}]
  %s5 = inlined_call_operand.hbm [shape: f32[128,128], index: 5, kind: input, shape index: {}]
  %s6 = inlined_call_operand.vmem [shape: f32[1,128], index: 6, kind: input, shape index: {}]
  %s7 = inlined_call_operand.hbm [shape: f32[16,32], index: 7, kind: output, shape index: {}]
  %s8 = sld [smem:[#allocation0]]
  $region58: #{tpu_custom_call.1} parent=0
    _
  %s10 = ssub.s32 1, %s8
  %s11 = scalar_select 0, %s10, %s8
  %12 = sst [smem:[#allocation4]] %s0
  $region1: #{tpu_custom_call.1} parent=0
    #allocation5 [shape = 'u8[8192]{0}', space=vmem, size = 0x2000, scoped, tag = 'input window, operand 1, single buffered']
    #allocation6 [shape = 's32[1]{0}', space=sflag, size = 0x4, scoped, tag = 'scoped memory for tpu_custom_call.1']
    #allocation7 [shape = 's32[1]{0}', space=sflag, size = 0x4, scoped, tag = 'scoped memory for tpu_custom_call.1']
    #allocation8 [shape = 'u8[65536]{0}', space=vmem, size = 0x10000, scoped, tag = 'input window, operand 2, single buffered']
    #allocation9 [shape = 's32[1]{0}', space=sflag, size = 0x4, scoped, tag = 'scoped memory for tpu_custom_call.1']
    #allocation10 [shape = 'u8[65536]{0}', space=vmem, size = 0x10000, scoped, tag = 'input window, operand 3, single buffered']
    #allocation11 [shape = 'u8[65536]{0}', space=vmem, size = 0x10000, scoped, tag = 'input window, operand 4, single buffered']
    #allocation12 [shape = 's32[1]{0}', space=sflag, size = 0x4, scoped, tag = 'scoped memory for tpu_custom_call.1']
    #allocation13 [shape = 'u8[65536]{0}', space=vmem, size = 0x10000, scoped, tag = 'input window, operand 5, single buffered']
    #allocation14 [shape = 'u8[8192]{0}', space=vmem, size = 0x2000, scoped, tag = 'output window, operand 0, single buffered']
    %13 = vsyncpa [#allocation6], 0
    %14 = vsyncpa [#allocation9], 0
    %15 = vsyncpa [#allocation12], 0
    %16 = vsyncpa [#allocation7], 0
    // Predicated region
    $region2: #{tpu_custom_call.1} parent=1 // pred_check
      _
    $region3: #{tpu_custom_call.1} parent=1 // pred_check_branch
      %18 = sbr.rel (0) target = $region5
    $region4: #{tpu_custom_call.1} parent=1 // pred_region
      %s20 = ssub.s32 256, 256
      %21 = vsyncadd [#allocation6], %s20
      %s22 = sshll.u32 [#allocation5], 4
      %s23 = int_to_ptr.vmem [resolvable:$true] %s22
      %28 = dma.hbm_to_vmem [thread:$0]  %s1, 256, %s23, [#allocation6], 128, 128, 8
    $region5: #{tpu_custom_call.1} parent=1 // pred_fallthru
      _
    // Predicated region
    $region6: #{tpu_custom_call.1} parent=1 // pred_check
      _
    $region7: #{tpu_custom_call.1} parent=1 // pred_check_branch
      %30 = sbr.rel (0) target = $region9
    $region8: #{tpu_custom_call.1} parent=1 // pred_region
      %s32 = ssub.s32 2048, 2048
      %33 = vsyncadd [#allocation9], %s32
      %s34 = sshll.u32 [#allocation8], 4
      %s35 = int_to_ptr.vmem [resolvable:$true] %s34
      %40 = dma.hbm_to_vmem [thread:$0]  %s2, 2048, %s35, [#allocation9], 128, 128, 8
    $region9: #{tpu_custom_call.1} parent=1 // pred_fallthru
      _
    // Predicated region
    $region10: #{tpu_custom_call.1} parent=1 // pred_check
      _
    $region11: #{tpu_custom_call.1} parent=1 // pred_check_branch
      %42 = sbr.rel (0) target = $region13
    $region12: #{tpu_custom_call.1} parent=1 // pred_region
      %s44 = ssub.s32 2048, 2048
      %45 = vsyncadd [#allocation9], %s44
      %s46 = sshll.u32 [#allocation10], 4
      %s47 = int_to_ptr.vmem [resolvable:$true] %s46
      %52 = dma.hbm_to_vmem [thread:$0]  %s3, 2048, %s47, [#allocation9], 128, 128, 8
    $region13: #{tpu_custom_call.1} parent=1 // pred_fallthru
      _
    // Predicated region
    $region14: #{tpu_custom_call.1} parent=1 // pred_check
      _
    $region15: #{tpu_custom_call.1} parent=1 // pred_check_branch
      %54 = sbr.rel (0) target = $region17
    $region16: #{tpu_custom_call.1} parent=1 // pred_region
      %s56 = ssub.s32 2048, 2048
      %57 = vsyncadd [#allocation12], %s56
      %s58 = sshll.u32 [#allocation11], 4
      %s59 = int_to_ptr.vmem [resolvable:$true] %s58
      %64 = dma.hbm_to_vmem [thread:$0]  %s4, 2048, %s59, [#allocation12], 128, 128, 8
    $region17: #{tpu_custom_call.1} parent=1 // pred_fallthru
      _
    // Predicated region
    $region18: #{tpu_custom_call.1} parent=1 // pred_check
      _
    $region19: #{tpu_custom_call.1} parent=1 // pred_check_branch
      %66 = sbr.rel (0) target = $region21
    $region20: #{tpu_custom_call.1} parent=1 // pred_region
      %s68 = ssub.s32 2048, 2048
      %69 = vsyncadd [#allocation12], %s68
      %s70 = sshll.u32 [#allocation13], 4
      %s71 = int_to_ptr.vmem [resolvable:$true] %s70
      %76 = dma.hbm_to_vmem [thread:$0]  %s5, 2048, %s71, [#allocation12], 128, 128, 8
    $region21: #{tpu_custom_call.1} parent=1 // pred_fallthru
      _
    // Predicated region
    $region22: #{tpu_custom_call.1} parent=1 // pred_check
      _
    $region23: #{tpu_custom_call.1} parent=1 // pred_check_branch
      %78 = sbr.rel (0) target = $region25
    $region24: #{tpu_custom_call.1} parent=1 // pred_region
      _
    $region25: #{tpu_custom_call.1} parent=1 // pred_fallthru
      _
    // Predicated region
    $region26: #{tpu_custom_call.1} parent=1 // pred_check
      _
    $region27: #{tpu_custom_call.1} parent=1 // pred_check_branch
      %80 = sbr.rel (0) target = $region29
    $region28: #{tpu_custom_call.1} parent=1 // pred_region
      %81 = dma.done [#allocation6], 256
    $region29: #{tpu_custom_call.1} parent=1 // pred_fallthru
      _
    // Predicated region
    $region30: #{tpu_custom_call.1} parent=1 // pred_check
      _
    $region31: #{tpu_custom_call.1} parent=1 // pred_check_branch
      %83 = sbr.rel (0) target = $region33
    $region32: #{tpu_custom_call.1} parent=1 // pred_region
      %84 = dma.done [#allocation9], 2048
    $region33: #{tpu_custom_call.1} parent=1 // pred_fallthru
      _
    // Predicated region
    $region34: #{tpu_custom_call.1} parent=1 // pred_check
      _
    $region35: #{tpu_custom_call.1} parent=1 // pred_check_branch
      %86 = sbr.rel (0) target = $region37
    $region36: #{tpu_custom_call.1} parent=1 // pred_region
      %87 = dma.done [#allocation9], 2048
    $region37: #{tpu_custom_call.1} parent=1 // pred_fallthru
      _
    // Predicated region
    $region38: #{tpu_custom_call.1} parent=1 // pred_check
      _
    $region39: #{tpu_custom_call.1} parent=1 // pred_check_branch
      %89 = sbr.rel (0) target = $region41
    $region40: #{tpu_custom_call.1} parent=1 // pred_region
      %90 = dma.done [#allocation12], 2048
    $region41: #{tpu_custom_call.1} parent=1 // pred_fallthru
      _
    // Predicated region
    $region42: #{tpu_custom_call.1} parent=1 // pred_check
      _
    $region43: #{tpu_custom_call.1} parent=1 // pred_check_branch
      %92 = sbr.rel (0) target = $region45
    $region44: #{tpu_custom_call.1} parent=1 // pred_region
      %93 = dma.done [#allocation12], 2048
    $region45: #{tpu_custom_call.1} parent=1 // pred_fallthru
      _
    %p94 = scmp.eq.s32.totalorder 0, 0
    // Predicated region
    $region46: #{tpu_custom_call.1} parent=1 // pred_check
      %p95 = pneg %p94
    $region47: #{tpu_custom_call.1} parent=1 // pred_check_branch
      %97 = sbr.rel (%p95) target = $region49
    $region48: #{tpu_custom_call.1} parent=1 // pred_region
      %s98 = sld [smem:[#allocation4]]
      %s99 = scvt.s32.f32 %s98
      %v100 = vld [vmem:[#allocation11] sm:$0xff]
      %v101 = vld [vmem:[#allocation11 + $0x8] sm:$0xff]
      %v102 = vld [vmem:[#allocation11 + $0x10] sm:$0xff]
      %v103 = vld [vmem:[#allocation11 + $0x18] sm:$0xff]
      %v104 = vld [vmem:[#allocation11 + $0x20] sm:$0xff]
      %v105 = vld [vmem:[#allocation11 + $0x28] sm:$0xff]
      %v106 = vld [vmem:[#allocation11 + $0x30] sm:$0xff]
      %v107 = vld [vmem:[#allocation11 + $0x38] sm:$0xff]
      %v108 = vld [vmem:[#allocation11 + $0x40] sm:$0xff]
      %v109 = vld [vmem:[#allocation11 + $0x48] sm:$0xff]
      %v110 = vld [vmem:[#allocation11 + $0x50] sm:$0xff]
      %v111 = vld [vmem:[#allocation11 + $0x58] sm:$0xff]
      %v112 = vld [vmem:[#allocation11 + $0x60] sm:$0xff]
      %v113 = vld [vmem:[#allocation11 + $0x68] sm:$0xff]
      %v114 = vld [vmem:[#allocation11 + $0x70] sm:$0xff]
      %v115 = vld [vmem:[#allocation11 + $0x78] sm:$0xff]
      %v116 = vstv %s99
      %v117 = vmul.f32 %v116, %v100
      %v118 = vmul.f32 %v116, %v101
      %v119 = vmul.f32 %v116, %v102
      %v120 = vmul.f32 %v116, %v103
      %v121 = vmul.f32 %v116, %v104
      %v122 = vmul.f32 %v116, %v105
      %v123 = vmul.f32 %v116, %v106
      %v124 = vmul.f32 %v116, %v107
      %v125 = vmul.f32 %v116, %v108
      %v126 = vmul.f32 %v116, %v109
      %v127 = vmul.f32 %v116, %v110
      %v128 = vmul.f32 %v116, %v111
      %v129 = vmul.f32 %v116, %v112
      %v130 = vmul.f32 %v116, %v113
      %v131 = vmul.f32 %v116, %v114
      %v132 = vmul.f32 %v116, %v115
      %v133 = vld [vmem:[#allocation13] sm:$0xff]
      %v134 = vld [vmem:[#allocation13 + $0x8] sm:$0xff]
      %v135 = vld [vmem:[#allocation13 + $0x10] sm:$0xff]
      %v136 = vld [vmem:[#allocation13 + $0x18] sm:$0xff]
      %v137 = vld [vmem:[#allocation13 + $0x20] sm:$0xff]
      %v138 = vld [vmem:[#allocation13 + $0x28] sm:$0xff]
      %v139 = vld [vmem:[#allocation13 + $0x30] sm:$0xff]
      %v140 = vld [vmem:[#allocation13 + $0x38] sm:$0xff]
      %v141 = vld [vmem:[#allocation13 + $0x40] sm:$0xff]
      %v142 = vld [vmem:[#allocation13 + $0x48] sm:$0xff]
      %v143 = vld [vmem:[#allocation13 + $0x50] sm:$0xff]
      %v144 = vld [vmem:[#allocation13 + $0x58] sm:$0xff]
      %v145 = vld [vmem:[#allocation13 + $0x60] sm:$0xff]
      %v146 = vld [vmem:[#allocation13 + $0x68] sm:$0xff]
      %v147 = vld [vmem:[#allocation13 + $0x70] sm:$0xff]
      %v148 = vld [vmem:[#allocation13 + $0x78] sm:$0xff]
      %v149 = vadd.f32 %v117, %v133
      %v150 = vadd.f32 %v118, %v134
      %v151 = vadd.f32 %v119, %v135
      %v152 = vadd.f32 %v120, %v136
      %v153 = vadd.f32 %v121, %v137
      %v154 = vadd.f32 %v122, %v138
      %v155 = vadd.f32 %v123, %v139
      %v156 = vadd.f32 %v124, %v140
      %v157 = vadd.f32 %v125, %v141
      %v158 = vadd.f32 %v126, %v142
      %v159 = vadd.f32 %v127, %v143
      %v160 = vadd.f32 %v128, %v144
      %v161 = vadd.f32 %v129, %v145
      %v162 = vadd.f32 %v130, %v146
      %v163 = vadd.f32 %v131, %v147
      %v164 = vadd.f32 %v132, %v148
      %v165 = vand.u32 2147483647, %v149
      %vm166 = vcmp.le.f32.partialorder %v165, 0.7853982
      %vm167 = vcmp.lt.s32.totalorder %v149, 0
      %v168 = vand.u32 %v149, 2139095040
      %v169 = vshrl.u32 %v168, 23
      %v170 = vsub.s32 %v169, 127
      %v171 = vand.u32 2147483647, %v149
      %v172 = vand.u32 %v171, 8388607
      %v173 = vor.u32 %v172, 8388608
      %v174 = vsub.s32 0, %v173
      %v175 = vadd.s32 %v170, 1
      %vm176 = vcmp.gt.s32.totalorder %v175, 0
      %v177 = vsel %vm176, %v175, 0
      %v178 = vshrl.u32 %v177, 5
      %v179 = vand.u32 %v177, 31
      %v180 = vsub.s32 32, %v179
      %v181 = vshrl.u32 683565275, %v180
      %v182 = vshll.u32 683565275, %v179
      %v183 = vshrl.u32 2475754826, %v180
      %v184 = vor.u32 %v182, %v183
      %v185 = vshll.u32 2475754826, %v179
      %v186 = vshrl.u32 2131351028, %v180
      %v187 = vor.u32 %v185, %v186
      %v188 = vshll.u32 2131351028, %v179
      %v189 = vshrl.u32 2102212464, %v180
      %v190 = vor.u32 %v188, %v189
      %v191 = vshll.u32 2102212464, %v179
      %v192 = vshrl.u32 920167782, %v180
      %v193 = vor.u32 %v191, %v192
      %v194 = vshll.u32 920167782, %v179
      %v195 = vshrl.u32 1326507024, %v180
      %v196 = vor.u32 %v194, %v195
      %vm197 = vcmp.lt.s32.totalorder %v178, 1
      %vm198 = vcmp.lt.s32.totalorder %v178, 2
      %vm199 = vcmp.lt.s32.totalorder %v178, 3
      %vm200 = vcmp.lt.s32.totalorder %v178, 4
      %v201 = vsel %vm197, %v181, %v184
      %v202 = vsel %vm200, %v190, 2102212464
      %v203 = vsel %vm199, %v187, %v202
      %v204 = vsel %vm198, %v201, %v203
      %v205 = vsel %vm197, %v184, %v187
      %v206 = vsel %vm200, %v193, 920167782
      %v207 = vsel %vm199, %v190, %v206
      %v208 = vsel %vm198, %v205, %v207
      %v209 = vsel %vm197, %v187, %v190
      %v210 = vsel %vm200, %v196, 1326507024
      %v211 = vsel %vm199, %v193, %v210
      %v212 = vsel %vm198, %v209, %v211
      %v213 = vshll.u32 %v173, 8
      %v214 = vmul.u32.u64.compose %v213, %v212
      %v215 = vextract.low.u32 %v214
      %v216 = vextract.high.u32 %v214
      %v217 = vmul.u32.u64.compose %v213, %v208
      %v218 = vextract.low.u32 %v217
      %v219 = vextract.high.u32 %v217
      %v220 = vmul.u32 %v213, %v204
      %v221 = vadd.s32 %v216, %v218
      %vm222 = vc.u32 %v216, %v218
      %v223 = vadd.s32 %v219, 1
      %v224 = vsel %vm222, %v223, %v219
      %v225 = vadd.s32 %v220, %v224
      %v226 = vadd.s32 %v225, 536870912
      %v227 = vshrl.u32 %v226, 30
      %v228 = vshll.u32 %v227, 30
      %v229 = vsub.s32 %v225, %v228
      %vm230 = vcmp.lt.s32.totalorder %v229, 0
      %v231 = vsub.s32 0, %v229
      %v232 = vsel %vm230, %v231, %v229
      %v233 = vclz %v232
      %v234 = vsub.s32 %v233, 2
      %vm235 = vcmp.gt.s32.totalorder 0, %v234
      %v236 = vsel %vm235, 0, %v234
      %v237 = vsub.s32 32, %v236
      %v238 = vshll.u32 %v229, %v236
      %v239 = vshrl.u32 %v221, %v237
      %v240 = vor.u32 %v238, %v239
      %v241 = vsub.s32 4294967266, %v236
      %v242 = vadd.s32 %v241, 127
      %v243 = vshll.u32 %v242, 23
      %v244 = vor.u32 4788187, %v243
      %v245 = vand.u32 2147483647, %v244
      %v247 = vcvt.s32.f32 %v240
      %v248 = vmul.f32 %v247, %v245
      %v249 = vxor.u32 %v248, 2147483648
      %v250 = vsel %vm167, %v249, %v248
      %v251 = vsub.s32 4, %v227
      %v252 = vsel %vm167, %v251, %v227
      %v253 = vsel %vm166, %v149, %v250
      %v254 = vsel %vm166, 0, %v252
      %v255 = vcosq.f32.pop %v253
      %v256 = vsinq.f32.pop %v253
      %vm257 = vweird.f32 %v149
      %v258 = vadd.s32 %v254, 3
      %v259 = vand.u32 %v258, 3
      %vm260 = vcmp.lt.s32.totalorder %v259, 2
      %vm261 = vcmp.eq.s32.totalorder %v259, 0
      %v262 = vxor.u32 %v256, 2147483648
      %v263 = vsel %vm261, %v255, %v262
      %vm264 = vcmp.eq.s32.totalorder %v259, 2
      %v265 = vxor.u32 %v255, 2147483648
      %v266 = vsel %vm264, %v265, %v256
      %v267 = vsel %vm260, %v263, %v266
      %v268 = vsel %vm257, nan, %v267
      %v269 = vand.u32 2147483647, %v150
      %vm270 = vcmp.le.f32.partialorder %v269, 0.7853982
      %vm271 = vcmp.lt.s32.totalorder %v150, 0
      %v272 = vand.u32 %v150, 2139095040
      %v273 = vshrl.u32 %v272, 23
      %v274 = vsub.s32 %v273, 127
      %v275 = vand.u32 2147483647, %v150
      %v276 = vand.u32 %v275, 8388607
      %v277 = vor.u32 %v276, 8388608
      %v278 = vsub.s32 0, %v277
      %v279 = vadd.s32 %v274, 1
      %vm280 = vcmp.gt.s32.totalorder %v279, 0
      %v281 = vsel %vm280, %v279, 0
      %v282 = vshrl.u32 %v281, 5
      %v283 = vand.u32 %v281, 31
      %v284 = vsub.s32 32, %v283
      %v285 = vshrl.u32 683565275, %v284
      %v286 = vshll.u32 683565275, %v283
      %v287 = vshrl.u32 2475754826, %v284
      %v288 = vor.u32 %v286, %v287
      %v289 = vshll.u32 2475754826, %v283
      %v290 = vshrl.u32 2131351028, %v284
      %v291 = vor.u32 %v289, %v290
      %v292 = vshll.u32 2131351028, %v283
      %v293 = vshrl.u32 2102212464, %v284
      %v294 = vor.u32 %v292, %v293
      %v295 = vshll.u32 2102212464, %v283
      %v296 = vshrl.u32 920167782, %v284
      %v297 = vor.u32 %v295, %v296
      %v298 = vshll.u32 920167782, %v283
      %v299 = vshrl.u32 1326507024, %v284
      %v300 = vor.u32 %v298, %v299
      %vm301 = vcmp.lt.s32.totalorder %v282, 1
      %vm302 = vcmp.lt.s32.totalorder %v282, 2
      %vm303 = vcmp.lt.s32.totalorder %v282, 3
      %vm304 = vcmp.lt.s32.totalorder %v282, 4
      %v305 = vsel %vm301, %v285, %v288
      %v306 = vsel %vm304, %v294, 2102212464
      %v307 = vsel %vm303, %v291, %v306
      %v308 = vsel %vm302, %v305, %v307
      %v309 = vsel %vm301, %v288, %v291
      %v310 = vsel %vm304, %v297, 920167782
      %v311 = vsel %vm303, %v294, %v310
      %v312 = vsel %vm302, %v309, %v311
      %v313 = vsel %vm301, %v291, %v294
      %v314 = vsel %vm304, %v300, 1326507024
      %v315 = vsel %vm303, %v297, %v314
      %v316 = vsel %vm302, %v313, %v315
      %v317 = vshll.u32 %v277, 8
      %v318 = vmul.u32.u64.compose %v317, %v316
      %v319 = vextract.low.u32 %v318
      %v320 = vextract.high.u32 %v318
      %v321 = vmul.u32.u64.compose %v317, %v312
      %v322 = vextract.low.u32 %v321
      %v323 = vextract.high.u32 %v321
      %v324 = vmul.u32 %v317, %v308
      %v325 = vadd.s32 %v320, %v322
      %vm326 = vc.u32 %v320, %v322
      %v327 = vadd.s32 %v323, 1
      %v328 = vsel %vm326, %v327, %v323
      %v329 = vadd.s32 %v324, %v328
      %v330 = vadd.s32 %v329, 536870912
      %v331 = vshrl.u32 %v330, 30
      %v332 = vshll.u32 %v331, 30
      %v333 = vsub.s32 %v329, %v332
      %vm334 = vcmp.lt.s32.totalorder %v333, 0
      %v335 = vsub.s32 0, %v333
      %v336 = vsel %vm334, %v335, %v333
      %v337 = vclz %v336
      %v338 = vsub.s32 %v337, 2
      %vm339 = vcmp.gt.s32.totalorder 0, %v338
      %v340 = vsel %vm339, 0, %v338
      %v341 = vsub.s32 32, %v340
      %v342 = vshll.u32 %v333, %v340
      %v343 = vshrl.u32 %v325, %v341
      %v344 = vor.u32 %v342, %v343
      %v345 = vsub.s32 4294967266, %v340
      %v346 = vadd.s32 %v345, 127
      %v347 = vshll.u32 %v346, 23
      %v348 = vor.u32 4788187, %v347
      %v349 = vand.u32 2147483647, %v348
      %v351 = vcvt.s32.f32 %v344
      %v352 = vmul.f32 %v351, %v349
      %v353 = vxor.u32 %v352, 2147483648
      %v354 = vsel %vm271, %v353, %v352
      %v355 = vsub.s32 4, %v331
      %v356 = vsel %vm271, %v355, %v331
      %v357 = vsel %vm270, %v150, %v354
      %v358 = vsel %vm270, 0, %v356
      %v359 = vcosq.f32.pop %v357
      %v360 = vsinq.f32.pop %v357
      %vm361 = vweird.f32 %v150
      %v362 = vadd.s32 %v358, 3
      %v363 = vand.u32 %v362, 3
      %vm364 = vcmp.lt.s32.totalorder %v363, 2
      %vm365 = vcmp.eq.s32.totalorder %v363, 0
      %v366 = vxor.u32 %v360, 2147483648
      %v367 = vsel %vm365, %v359, %v366
      %vm368 = vcmp.eq.s32.totalorder %v363, 2
      %v369 = vxor.u32 %v359, 2147483648
      %v370 = vsel %vm368, %v369, %v360
      %v371 = vsel %vm364, %v367, %v370
      %v372 = vsel %vm361, nan, %v371
      %v373 = vand.u32 2147483647, %v151
      %vm374 = vcmp.le.f32.partialorder %v373, 0.7853982
      %vm375 = vcmp.lt.s32.totalorder %v151, 0
      %v376 = vand.u32 %v151, 2139095040
      %v377 = vshrl.u32 %v376, 23
      %v378 = vsub.s32 %v377, 127
      %v379 = vand.u32 2147483647, %v151
      %v380 = vand.u32 %v379, 8388607
      %v381 = vor.u32 %v380, 8388608
      %v382 = vsub.s32 0, %v381
      %v383 = vadd.s32 %v378, 1
      %vm384 = vcmp.gt.s32.totalorder %v383, 0
      %v385 = vsel %vm384, %v383, 0
      %v386 = vshrl.u32 %v385, 5
      %v387 = vand.u32 %v385, 31
      %v388 = vsub.s32 32, %v387
      %v389 = vshrl.u32 683565275, %v388
      %v390 = vshll.u32 683565275, %v387
      %v391 = vshrl.u32 2475754826, %v388
      %v392 = vor.u32 %v390, %v391
      %v393 = vshll.u32 2475754826, %v387
      %v394 = vshrl.u32 2131351028, %v388
      %v395 = vor.u32 %v393, %v394
      %v396 = vshll.u32 2131351028, %v387
      %v397 = vshrl.u32 2102212464, %v388
      %v398 = vor.u32 %v396, %v397
      %v399 = vshll.u32 2102212464, %v387
      %v400 = vshrl.u32 920167782, %v388
      %v401 = vor.u32 %v399, %v400
      %v402 = vshll.u32 920167782, %v387
      %v403 = vshrl.u32 1326507024, %v388
      %v404 = vor.u32 %v402, %v403
      %vm405 = vcmp.lt.s32.totalorder %v386, 1
      %vm406 = vcmp.lt.s32.totalorder %v386, 2
      %vm407 = vcmp.lt.s32.totalorder %v386, 3
      %vm408 = vcmp.lt.s32.totalorder %v386, 4
      %v409 = vsel %vm405, %v389, %v392
      %v410 = vsel %vm408, %v398, 2102212464
      %v411 = vsel %vm407, %v395, %v410
      %v412 = vsel %vm406, %v409, %v411
      %v413 = vsel %vm405, %v392, %v395
      %v414 = vsel %vm408, %v401, 920167782
      %v415 = vsel %vm407, %v398, %v414
      %v416 = vsel %vm406, %v413, %v415
      %v417 = vsel %vm405, %v395, %v398
      %v418 = vsel %vm408, %v404, 1326507024
      %v419 = vsel %vm407, %v401, %v418
      %v420 = vsel %vm406, %v417, %v419
      %v421 = vshll.u32 %v381, 8
      %v422 = vmul.u32.u64.compose %v421, %v420
      %v423 = vextract.low.u32 %v422
      %v424 = vextract.high.u32 %v422
      %v425 = vmul.u32.u64.compose %v421, %v416
      %v426 = vextract.low.u32 %v425
      %v427 = vextract.high.u32 %v425
      %v428 = vmul.u32 %v421, %v412
      %v429 = vadd.s32 %v424, %v426
      %vm430 = vc.u32 %v424, %v426
      %v431 = vadd.s32 %v427, 1
      %v432 = vsel %vm430, %v431, %v427
      %v433 = vadd.s32 %v428, %v432
      %v434 = vadd.s32 %v433, 536870912
      %v435 = vshrl.u32 %v434, 30
      %v436 = vshll.u32 %v435, 30
      %v437 = vsub.s32 %v433, %v436
      %vm438 = vcmp.lt.s32.totalorder %v437, 0
      %v439 = vsub.s32 0, %v437
      %v440 = vsel %vm438, %v439, %v437
      %v441 = vclz %v440
      %v442 = vsub.s32 %v441, 2
      %vm443 = vcmp.gt.s32.totalorder 0, %v442
      %v444 = vsel %vm443, 0, %v442
      %v445 = vsub.s32 32, %v444
      %v446 = vshll.u32 %v437, %v444
      %v447 = vshrl.u32 %v429, %v445
      %v448 = vor.u32 %v446, %v447
      %v449 = vsub.s32 4294967266, %v444
      %v450 = vadd.s32 %v449, 127
      %v451 = vshll.u32 %v450, 23
      %v452 = vor.u32 4788187, %v451
      %v453 = vand.u32 2147483647, %v452
      %v455 = vcvt.s32.f32 %v448
      %v456 = vmul.f32 %v455, %v453
      %v457 = vxor.u32 %v456, 2147483648
      %v458 = vsel %vm375, %v457, %v456
      %v459 = vsub.s32 4, %v435
      %v460 = vsel %vm375, %v459, %v435
      %v461 = vsel %vm374, %v151, %v458
      %v462 = vsel %vm374, 0, %v460
      %v463 = vcosq.f32.pop %v461
      %v464 = vsinq.f32.pop %v461
      %vm465 = vweird.f32 %v151
      %v466 = vadd.s32 %v462, 3
      %v467 = vand.u32 %v466, 3
      %vm468 = vcmp.lt.s32.totalorder %v467, 2
      %vm469 = vcmp.eq.s32.totalorder %v467, 0
      %v470 = vxor.u32 %v464, 2147483648
      %v471 = vsel %vm469, %v463, %v470
      %vm472 = vcmp.eq.s32.totalorder %v467, 2
      %v473 = vxor.u32 %v463, 2147483648
      %v474 = vsel %vm472, %v473, %v464
      %v475 = vsel %vm468, %v471, %v474
      %v476 = vsel %vm465, nan, %v475
      %v477 = vand.u32 2147483647, %v152
      %vm478 = vcmp.le.f32.partialorder %v477, 0.7853982
      %vm479 = vcmp.lt.s32.totalorder %v152, 0
      %v480 = vand.u32 %v152, 2139095040
      %v481 = vshrl.u32 %v480, 23
      %v482 = vsub.s32 %v481, 127
      %v483 = vand.u32 2147483647, %v152
      %v484 = vand.u32 %v483, 8388607
      %v485 = vor.u32 %v484, 8388608
      %v486 = vsub.s32 0, %v485
      %v487 = vadd.s32 %v482, 1
      %vm488 = vcmp.gt.s32.totalorder %v487, 0
      %v489 = vsel %vm488, %v487, 0
      %v490 = vshrl.u32 %v489, 5
      %v491 = vand.u32 %v489, 31
      %v492 = vsub.s32 32, %v491
      %v493 = vshrl.u32 683565275, %v492
      %v494 = vshll.u32 683565275, %v491
      %v495 = vshrl.u32 2475754826, %v492
      %v496 = vor.u32 %v494, %v495
      %v497 = vshll.u32 2475754826, %v491
      %v498 = vshrl.u32 2131351028, %v492
      %v499 = vor.u32 %v497, %v498
      %v500 = vshll.u32 2131351028, %v491
      %v501 = vshrl.u32 2102212464, %v492
      %v502 = vor.u32 %v500, %v501
      %v503 = vshll.u32 2102212464, %v491
      %v504 = vshrl.u32 920167782, %v492
      %v505 = vor.u32 %v503, %v504
      %v506 = vshll.u32 920167782, %v491
      %v507 = vshrl.u32 1326507024, %v492
      %v508 = vor.u32 %v506, %v507
      %vm509 = vcmp.lt.s32.totalorder %v490, 1
      %vm510 = vcmp.lt.s32.totalorder %v490, 2
      %vm511 = vcmp.lt.s32.totalorder %v490, 3
      %vm512 = vcmp.lt.s32.totalorder %v490, 4
      %v513 = vsel %vm509, %v493, %v496
      %v514 = vsel %vm512, %v502, 2102212464
      %v515 = vsel %vm511, %v499, %v514
      %v516 = vsel %vm510, %v513, %v515
      %v517 = vsel %vm509, %v496, %v499
      %v518 = vsel %vm512, %v505, 920167782
      %v519 = vsel %vm511, %v502, %v518
      %v520 = vsel %vm510, %v517, %v519
      %v521 = vsel %vm509, %v499, %v502
      %v522 = vsel %vm512, %v508, 1326507024
      %v523 = vsel %vm511, %v505, %v522
      %v524 = vsel %vm510, %v521, %v523
      %v525 = vshll.u32 %v485, 8
      %v526 = vmul.u32.u64.compose %v525, %v524
      %v527 = vextract.low.u32 %v526
      %v528 = vextract.high.u32 %v526
      %v529 = vmul.u32.u64.compose %v525, %v520
      %v530 = vextract.low.u32 %v529
      %v531 = vextract.high.u32 %v529
      %v532 = vmul.u32 %v525, %v516
      %v533 = vadd.s32 %v528, %v530
      %vm534 = vc.u32 %v528, %v530
      %v535 = vadd.s32 %v531, 1
      %v536 = vsel %vm534, %v535, %v531
      %v537 = vadd.s32 %v532, %v536
      %v538 = vadd.s32 %v537, 536870912
      %v539 = vshrl.u32 %v538, 30
      %v540 = vshll.u32 %v539, 30
      %v541 = vsub.s32 %v537, %v540
      %vm542 = vcmp.lt.s32.totalorder %v541, 0
      %v543 = vsub.s32 0, %v541
      %v544 = vsel %vm542, %v543, %v541
      %v545 = vclz %v544
      %v546 = vsub.s32 %v545, 2
      %vm547 = vcmp.gt.s32.totalorder 0, %v546
      %v548 = vsel %vm547, 0, %v546
      %v549 = vsub.s32 32, %v548
      %v550 = vshll.u32 %v541, %v548
      %v551 = vshrl.u32 %v533, %v549
      %v552 = vor.u32 %v550, %v551
      %v553 = vsub.s32 4294967266, %v548
      %v554 = vadd.s32 %v553, 127
      %v555 = vshll.u32 %v554, 23
      %v556 = vor.u32 4788187, %v555
      %v557 = vand.u32 2147483647, %v556
      %v559 = vcvt.s32.f32 %v552
      %v560 = vmul.f32 %v559, %v557
      %v561 = vxor.u32 %v560, 2147483648
      %v562 = vsel %vm479, %v561, %v560
      %v563 = vsub.s32 4, %v539
      %v564 = vsel %vm479, %v563, %v539
      %v565 = vsel %vm478, %v152, %v562
      %v566 = vsel %vm478, 0, %v564
      %v567 = vcosq.f32.pop %v565
      %v568 = vsinq.f32.pop %v565
      %vm569 = vweird.f32 %v152
      %v570 = vadd.s32 %v566, 3
      %v571 = vand.u32 %v570, 3
      %vm572 = vcmp.lt.s32.totalorder %v571, 2
      %vm573 = vcmp.eq.s32.totalorder %v571, 0
      %v574 = vxor.u32 %v568, 2147483648
      %v575 = vsel %vm573, %v567, %v574
      %vm576 = vcmp.eq.s32.totalorder %v571, 2
      %v577 = vxor.u32 %v567, 2147483648
      %v578 = vsel %vm576, %v577, %v568
      %v579 = vsel %vm572, %v575, %v578
      %v580 = vsel %vm569, nan, %v579
      %v581 = vand.u32 2147483647, %v153
      %vm582 = vcmp.le.f32.partialorder %v581, 0.7853982
      %vm583 = vcmp.lt.s32.totalorder %v153, 0
      %v584 = vand.u32 %v153, 2139095040
      %v585 = vshrl.u32 %v584, 23
      %v586 = vsub.s32 %v585, 127
      %v587 = vand.u32 2147483647, %v153
      %v588 = vand.u32 %v587, 8388607
      %v589 = vor.u32 %v588, 8388608
      %v590 = vsub.s32 0, %v589
      %v591 = vadd.s32 %v586, 1
      %vm592 = vcmp.gt.s32.totalorder %v591, 0
      %v593 = vsel %vm592, %v591, 0
      %v594 = vshrl.u32 %v593, 5
      %v595 = vand.u32 %v593, 31
      %v596 = vsub.s32 32, %v595
      %v597 = vshrl.u32 683565275, %v596
      %v598 = vshll.u32 683565275, %v595
      %v599 = vshrl.u32 2475754826, %v596
      %v600 = vor.u32 %v598, %v599
      %v601 = vshll.u32 2475754826, %v595
      %v602 = vshrl.u32 2131351028, %v596
      %v603 = vor.u32 %v601, %v602
      %v604 = vshll.u32 2131351028, %v595
      %v605 = vshrl.u32 2102212464, %v596
      %v606 = vor.u32 %v604, %v605
      %v607 = vshll.u32 2102212464, %v595
      %v608 = vshrl.u32 920167782, %v596
      %v609 = vor.u32 %v607, %v608
      %v610 = vshll.u32 920167782, %v595
      %v611 = vshrl.u32 1326507024, %v596
      %v612 = vor.u32 %v610, %v611
      %vm613 = vcmp.lt.s32.totalorder %v594, 1
      %vm614 = vcmp.lt.s32.totalorder %v594, 2
      %vm615 = vcmp.lt.s32.totalorder %v594, 3
      %vm616 = vcmp.lt.s32.totalorder %v594, 4
      %v617 = vsel %vm613, %v597, %v600
      %v618 = vsel %vm616, %v606, 2102212464
      %v619 = vsel %vm615, %v603, %v618
      %v620 = vsel %vm614, %v617, %v619
      %v621 = vsel %vm613, %v600, %v603
      %v622 = vsel %vm616, %v609, 920167782
      %v623 = vsel %vm615, %v606, %v622
      %v624 = vsel %vm614, %v621, %v623
      %v625 = vsel %vm613, %v603, %v606
      %v626 = vsel %vm616, %v612, 1326507024
      %v627 = vsel %vm615, %v609, %v626
      %v628 = vsel %vm614, %v625, %v627
      %v629 = vshll.u32 %v589, 8
      %v630 = vmul.u32.u64.compose %v629, %v628
      %v631 = vextract.low.u32 %v630
      %v632 = vextract.high.u32 %v630
      %v633 = vmul.u32.u64.compose %v629, %v624
      %v634 = vextract.low.u32 %v633
      %v635 = vextract.high.u32 %v633
      %v636 = vmul.u32 %v629, %v620
      %v637 = vadd.s32 %v632, %v634
      %vm638 = vc.u32 %v632, %v634
      %v639 = vadd.s32 %v635, 1
      %v640 = vsel %vm638, %v639, %v635
      %v641 = vadd.s32 %v636, %v640
      %v642 = vadd.s32 %v641, 536870912
      %v643 = vshrl.u32 %v642, 30
      %v644 = vshll.u32 %v643, 30
      %v645 = vsub.s32 %v641, %v644
      %vm646 = vcmp.lt.s32.totalorder %v645, 0
      %v647 = vsub.s32 0, %v645
      %v648 = vsel %vm646, %v647, %v645
      %v649 = vclz %v648
      %v650 = vsub.s32 %v649, 2
      %vm651 = vcmp.gt.s32.totalorder 0, %v650
      %v652 = vsel %vm651, 0, %v650
      %v653 = vsub.s32 32, %v652
      %v654 = vshll.u32 %v645, %v652
      %v655 = vshrl.u32 %v637, %v653
      %v656 = vor.u32 %v654, %v655
      %v657 = vsub.s32 4294967266, %v652
      %v658 = vadd.s32 %v657, 127
      %v659 = vshll.u32 %v658, 23
      %v660 = vor.u32 4788187, %v659
      %v661 = vand.u32 2147483647, %v660
      %v663 = vcvt.s32.f32 %v656
      %v664 = vmul.f32 %v663, %v661
      %v665 = vxor.u32 %v664, 2147483648
      %v666 = vsel %vm583, %v665, %v664
      %v667 = vsub.s32 4, %v643
      %v668 = vsel %vm583, %v667, %v643
      %v669 = vsel %vm582, %v153, %v666
      %v670 = vsel %vm582, 0, %v668
      %v671 = vcosq.f32.pop %v669
      %v672 = vsinq.f32.pop %v669
      %vm673 = vweird.f32 %v153
      %v674 = vadd.s32 %v670, 3
      %v675 = vand.u32 %v674, 3
      %vm676 = vcmp.lt.s32.totalorder %v675, 2
      %vm677 = vcmp.eq.s32.totalorder %v675, 0
      %v678 = vxor.u32 %v672, 2147483648
      %v679 = vsel %vm677, %v671, %v678
      %vm680 = vcmp.eq.s32.totalorder %v675, 2
      %v681 = vxor.u32 %v671, 2147483648
      %v682 = vsel %vm680, %v681, %v672
      %v683 = vsel %vm676, %v679, %v682
      %v684 = vsel %vm673, nan, %v683
      %v685 = vand.u32 2147483647, %v154
      %vm686 = vcmp.le.f32.partialorder %v685, 0.7853982
      %vm687 = vcmp.lt.s32.totalorder %v154, 0
      %v688 = vand.u32 %v154, 2139095040
      %v689 = vshrl.u32 %v688, 23
      %v690 = vsub.s32 %v689, 127
      %v691 = vand.u32 2147483647, %v154
      %v692 = vand.u32 %v691, 8388607
      %v693 = vor.u32 %v692, 8388608
      %v694 = vsub.s32 0, %v693
      %v695 = vadd.s32 %v690, 1
      %vm696 = vcmp.gt.s32.totalorder %v695, 0
      %v697 = vsel %vm696, %v695, 0
      %v698 = vshrl.u32 %v697, 5
      %v699 = vand.u32 %v697, 31
      %v700 = vsub.s32 32, %v699
      %v701 = vshrl.u32 683565275, %v700
      %v702 = vshll.u32 683565275, %v699
      %v703 = vshrl.u32 2475754826, %v700
      %v704 = vor.u32 %v702, %v703
      %v705 = vshll.u32 2475754826, %v699
      %v706 = vshrl.u32 2131351028, %v700
      %v707 = vor.u32 %v705, %v706
      %v708 = vshll.u32 2131351028, %v699
      %v709 = vshrl.u32 2102212464, %v700
      %v710 = vor.u32 %v708, %v709
      %v711 = vshll.u32 2102212464, %v699
      %v712 = vshrl.u32 920167782, %v700
      %v713 = vor.u32 %v711, %v712
      %v714 = vshll.u32 920167782, %v699
      %v715 = vshrl.u32 1326507024, %v700
      %v716 = vor.u32 %v714, %v715
      %vm717 = vcmp.lt.s32.totalorder %v698, 1
      %vm718 = vcmp.lt.s32.totalorder %v698, 2
      %vm719 = vcmp.lt.s32.totalorder %v698, 3
      %vm720 = vcmp.lt.s32.totalorder %v698, 4
      %v721 = vsel %vm717, %v701, %v704
      %v722 = vsel %vm720, %v710, 2102212464
      %v723 = vsel %vm719, %v707, %v722
      %v724 = vsel %vm718, %v721, %v723
      %v725 = vsel %vm717, %v704, %v707
      %v726 = vsel %vm720, %v713, 920167782
      %v727 = vsel %vm719, %v710, %v726
      %v728 = vsel %vm718, %v725, %v727
      %v729 = vsel %vm717, %v707, %v710
      %v730 = vsel %vm720, %v716, 1326507024
      %v731 = vsel %vm719, %v713, %v730
      %v732 = vsel %vm718, %v729, %v731
      %v733 = vshll.u32 %v693, 8
      %v734 = vmul.u32.u64.compose %v733, %v732
      %v735 = vextract.low.u32 %v734
      %v736 = vextract.high.u32 %v734
      %v737 = vmul.u32.u64.compose %v733, %v728
      %v738 = vextract.low.u32 %v737
      %v739 = vextract.high.u32 %v737
      %v740 = vmul.u32 %v733, %v724
      %v741 = vadd.s32 %v736, %v738
      %vm742 = vc.u32 %v736, %v738
      %v743 = vadd.s32 %v739, 1
      %v744 = vsel %vm742, %v743, %v739
      %v745 = vadd.s32 %v740, %v744
      %v746 = vadd.s32 %v745, 536870912
      %v747 = vshrl.u32 %v746, 30
      %v748 = vshll.u32 %v747, 30
      %v749 = vsub.s32 %v745, %v748
      %vm750 = vcmp.lt.s32.totalorder %v749, 0
      %v751 = vsub.s32 0, %v749
      %v752 = vsel %vm750, %v751, %v749
      %v753 = vclz %v752
      %v754 = vsub.s32 %v753, 2
      %vm755 = vcmp.gt.s32.totalorder 0, %v754
      %v756 = vsel %vm755, 0, %v754
      %v757 = vsub.s32 32, %v756
      %v758 = vshll.u32 %v749, %v756
      %v759 = vshrl.u32 %v741, %v757
      %v760 = vor.u32 %v758, %v759
      %v761 = vsub.s32 4294967266, %v756
      %v762 = vadd.s32 %v761, 127
      %v763 = vshll.u32 %v762, 23
      %v764 = vor.u32 4788187, %v763
      %v765 = vand.u32 2147483647, %v764
      %v767 = vcvt.s32.f32 %v760
      %v768 = vmul.f32 %v767, %v765
      %v769 = vxor.u32 %v768, 2147483648
      %v770 = vsel %vm687, %v769, %v768
      %v771 = vsub.s32 4, %v747
      %v772 = vsel %vm687, %v771, %v747
      %v773 = vsel %vm686, %v154, %v770
      %v774 = vsel %vm686, 0, %v772
      %v775 = vcosq.f32.pop %v773
      %v776 = vsinq.f32.pop %v773
      %vm777 = vweird.f32 %v154
      %v778 = vadd.s32 %v774, 3
      %v779 = vand.u32 %v778, 3
      %vm780 = vcmp.lt.s32.totalorder %v779, 2
      %vm781 = vcmp.eq.s32.totalorder %v779, 0
      %v782 = vxor.u32 %v776, 2147483648
      %v783 = vsel %vm781, %v775, %v782
      %vm784 = vcmp.eq.s32.totalorder %v779, 2
      %v785 = vxor.u32 %v775, 2147483648
      %v786 = vsel %vm784, %v785, %v776
      %v787 = vsel %vm780, %v783, %v786
      %v788 = vsel %vm777, nan, %v787
      %v789 = vand.u32 2147483647, %v155
      %vm790 = vcmp.le.f32.partialorder %v789, 0.7853982
      %vm791 = vcmp.lt.s32.totalorder %v155, 0
      %v792 = vand.u32 %v155, 2139095040
      %v793 = vshrl.u32 %v792, 23
      %v794 = vsub.s32 %v793, 127
      %v795 = vand.u32 2147483647, %v155
      %v796 = vand.u32 %v795, 8388607
      %v797 = vor.u32 %v796, 8388608
      %v798 = vsub.s32 0, %v797
      %v799 = vadd.s32 %v794, 1
      %vm800 = vcmp.gt.s32.totalorder %v799, 0
      %v801 = vsel %vm800, %v799, 0
      %v802 = vshrl.u32 %v801, 5
      %v803 = vand.u32 %v801, 31
      %v804 = vsub.s32 32, %v803
      %v805 = vshrl.u32 683565275, %v804
      %v806 = vshll.u32 683565275, %v803
      %v807 = vshrl.u32 2475754826, %v804
      %v808 = vor.u32 %v806, %v807
      %v809 = vshll.u32 2475754826, %v803
      %v810 = vshrl.u32 2131351028, %v804
      %v811 = vor.u32 %v809, %v810
      %v812 = vshll.u32 2131351028, %v803
      %v813 = vshrl.u32 2102212464, %v804
      %v814 = vor.u32 %v812, %v813
      %v815 = vshll.u32 2102212464, %v803
      %v816 = vshrl.u32 920167782, %v804
      %v817 = vor.u32 %v815, %v816
      %v818 = vshll.u32 920167782, %v803
      %v819 = vshrl.u32 1326507024, %v804
      %v820 = vor.u32 %v818, %v819
      %vm821 = vcmp.lt.s32.totalorder %v802, 1
      %vm822 = vcmp.lt.s32.totalorder %v802, 2
      %vm823 = vcmp.lt.s32.totalorder %v802, 3
      %vm824 = vcmp.lt.s32.totalorder %v802, 4
      %v825 = vsel %vm821, %v805, %v808
      %v826 = vsel %vm824, %v814, 2102212464
      %v827 = vsel %vm823, %v811, %v826
      %v828 = vsel %vm822, %v825, %v827
      %v829 = vsel %vm821, %v808, %v811
      %v830 = vsel %vm824, %v817, 920167782
      %v831 = vsel %vm823, %v814, %v830
      %v832 = vsel %vm822, %v829, %v831
      %v833 = vsel %vm821, %v811, %v814
      %v834 = vsel %vm824, %v820, 1326507024
      %v835 = vsel %vm823, %v817, %v834
      %v836 = vsel %vm822, %v833, %v835
      %v837 = vshll.u32 %v797, 8
      %v838 = vmul.u32.u64.compose %v837, %v836
      %v839 = vextract.low.u32 %v838
      %v840 = vextract.high.u32 %v838
      %v841 = vmul.u32.u64.compose %v837, %v832
      %v842 = vextract.low.u32 %v841
      %v843 = vextract.high.u32 %v841
      %v844 = vmul.u32 %v837, %v828
      %v845 = vadd.s32 %v840, %v842
      %vm846 = vc.u32 %v840, %v842
      %v847 = vadd.s32 %v843, 1
      %v848 = vsel %vm846, %v847, %v843
      %v849 = vadd.s32 %v844, %v848
      %v850 = vadd.s32 %v849, 536870912
      %v851 = vshrl.u32 %v850, 30
      %v852 = vshll.u32 %v851, 30
      %v853 = vsub.s32 %v849, %v852
      %vm854 = vcmp.lt.s32.totalorder %v853, 0
      %v855 = vsub.s32 0, %v853
      %v856 = vsel %vm854, %v855, %v853
      %v857 = vclz %v856
      %v858 = vsub.s32 %v857, 2
      %vm859 = vcmp.gt.s32.totalorder 0, %v858
      %v860 = vsel %vm859, 0, %v858
      %v861 = vsub.s32 32, %v860
      %v862 = vshll.u32 %v853, %v860
      %v863 = vshrl.u32 %v845, %v861
      %v864 = vor.u32 %v862, %v863
      %v865 = vsub.s32 4294967266, %v860
      %v866 = vadd.s32 %v865, 127
      %v867 = vshll.u32 %v866, 23
      %v868 = vor.u32 4788187, %v867
      %v869 = vand.u32 2147483647, %v868
      %v871 = vcvt.s32.f32 %v864
      %v872 = vmul.f32 %v871, %v869
      %v873 = vxor.u32 %v872, 2147483648
      %v874 = vsel %vm791, %v873, %v872
      %v875 = vsub.s32 4, %v851
      %v876 = vsel %vm791, %v875, %v851
      %v877 = vsel %vm790, %v155, %v874
      %v878 = vsel %vm790, 0, %v876
      %v879 = vcosq.f32.pop %v877
      %v880 = vsinq.f32.pop %v877
      %vm881 = vweird.f32 %v155
      %v882 = vadd.s32 %v878, 3
      %v883 = vand.u32 %v882, 3
      %vm884 = vcmp.lt.s32.totalorder %v883, 2
      %vm885 = vcmp.eq.s32.totalorder %v883, 0
      %v886 = vxor.u32 %v880, 2147483648
      %v887 = vsel %vm885, %v879, %v886
      %vm888 = vcmp.eq.s32.totalorder %v883, 2
      %v889 = vxor.u32 %v879, 2147483648
      %v890 = vsel %vm888, %v889, %v880
      %v891 = vsel %vm884, %v887, %v890
      %v892 = vsel %vm881, nan, %v891
      %v893 = vand.u32 2147483647, %v156
      %vm894 = vcmp.le.f32.partialorder %v893, 0.7853982
      %vm895 = vcmp.lt.s32.totalorder %v156, 0
      %v896 = vand.u32 %v156, 2139095040
      %v897 = vshrl.u32 %v896, 23
      %v898 = vsub.s32 %v897, 127
      %v899 = vand.u32 2147483647, %v156
      %v900 = vand.u32 %v899, 8388607
      %v901 = vor.u32 %v900, 8388608
      %v902 = vsub.s32 0, %v901
      %v903 = vadd.s32 %v898, 1
      %vm904 = vcmp.gt.s32.totalorder %v903, 0
      %v905 = vsel %vm904, %v903, 0
      %v906 = vshrl.u32 %v905, 5
      %v907 = vand.u32 %v905, 31
      %v908 = vsub.s32 32, %v907
      %v909 = vshrl.u32 683565275, %v908
      %v910 = vshll.u32 683565275, %v907
      %v911 = vshrl.u32 2475754826, %v908
      %v912 = vor.u32 %v910, %v911
      %v913 = vshll.u32 2475754826, %v907
      %v914 = vshrl.u32 2131351028, %v908
      %v915 = vor.u32 %v913, %v914
      %v916 = vshll.u32 2131351028, %v907
      %v917 = vshrl.u32 2102212464, %v908
      %v918 = vor.u32 %v916, %v917
      %v919 = vshll.u32 2102212464, %v907
      %v920 = vshrl.u32 920167782, %v908
      %v921 = vor.u32 %v919, %v920
      %v922 = vshll.u32 920167782, %v907
      %v923 = vshrl.u32 1326507024, %v908
      %v924 = vor.u32 %v922, %v923
      %vm925 = vcmp.lt.s32.totalorder %v906, 1
      %vm926 = vcmp.lt.s32.totalorder %v906, 2
      %vm927 = vcmp.lt.s32.totalorder %v906, 3
      %vm928 = vcmp.lt.s32.totalorder %v906, 4
      %v929 = vsel %vm925, %v909, %v912
      %v930 = vsel %vm928, %v918, 2102212464
      %v931 = vsel %vm927, %v915, %v930
      %v932 = vsel %vm926, %v929, %v931
      %v933 = vsel %vm925, %v912, %v915
      %v934 = vsel %vm928, %v921, 920167782
      %v935 = vsel %vm927, %v918, %v934
      %v936 = vsel %vm926, %v933, %v935
      %v937 = vsel %vm925, %v915, %v918
      %v938 = vsel %vm928, %v924, 1326507024
      %v939 = vsel %vm927, %v921, %v938
      %v940 = vsel %vm926, %v937, %v939
      %v941 = vshll.u32 %v901, 8
      %v942 = vmul.u32.u64.compose %v941, %v940
      %v943 = vextract.low.u32 %v942
      %v944 = vextract.high.u32 %v942
      %v945 = vmul.u32.u64.compose %v941, %v936
      %v946 = vextract.low.u32 %v945
      %v947 = vextract.high.u32 %v945
      %v948 = vmul.u32 %v941, %v932
      %v949 = vadd.s32 %v944, %v946
      %vm950 = vc.u32 %v944, %v946
      %v951 = vadd.s32 %v947, 1
      %v952 = vsel %vm950, %v951, %v947
      %v953 = vadd.s32 %v948, %v952
      %v954 = vadd.s32 %v953, 536870912
      %v955 = vshrl.u32 %v954, 30
      %v956 = vshll.u32 %v955, 30
      %v957 = vsub.s32 %v953, %v956
      %vm958 = vcmp.lt.s32.totalorder %v957, 0
      %v959 = vsub.s32 0, %v957
      %v960 = vsel %vm958, %v959, %v957
      %v961 = vclz %v960
      %v962 = vsub.s32 %v961, 2
      %vm963 = vcmp.gt.s32.totalorder 0, %v962
      %v964 = vsel %vm963, 0, %v962
      %v965 = vsub.s32 32, %v964
      %v966 = vshll.u32 %v957, %v964
      %v967 = vshrl.u32 %v949, %v965
      %v968 = vor.u32 %v966, %v967
      %v969 = vsub.s32 4294967266, %v964
      %v970 = vadd.s32 %v969, 127
      %v971 = vshll.u32 %v970, 23
      %v972 = vor.u32 4788187, %v971
      %v973 = vand.u32 2147483647, %v972
      %v975 = vcvt.s32.f32 %v968
      %v976 = vmul.f32 %v975, %v973
      %v977 = vxor.u32 %v976, 2147483648
      %v978 = vsel %vm895, %v977, %v976
      %v979 = vsub.s32 4, %v955
      %v980 = vsel %vm895, %v979, %v955
      %v981 = vsel %vm894, %v156, %v978
      %v982 = vsel %vm894, 0, %v980
      %v983 = vcosq.f32.pop %v981
      %v984 = vsinq.f32.pop %v981
      %vm985 = vweird.f32 %v156
      %v986 = vadd.s32 %v982, 3
      %v987 = vand.u32 %v986, 3
      %vm988 = vcmp.lt.s32.totalorder %v987, 2
      %vm989 = vcmp.eq.s32.totalorder %v987, 0
      %v990 = vxor.u32 %v984, 2147483648
      %v991 = vsel %vm989, %v983, %v990
      %vm992 = vcmp.eq.s32.totalorder %v987, 2
      %v993 = vxor.u32 %v983, 2147483648
      %v994 = vsel %vm992, %v993, %v984
      %v995 = vsel %vm988, %v991, %v994
      %v996 = vsel %vm985, nan, %v995
      %v997 = vand.u32 2147483647, %v157
      %vm998 = vcmp.le.f32.partialorder %v997, 0.7853982
      %vm999 = vcmp.lt.s32.totalorder %v157, 0
      %v1000 = vand.u32 %v157, 2139095040
      %v1001 = vshrl.u32 %v1000, 23
      %v1002 = vsub.s32 %v1001, 127
      %v1003 = vand.u32 2147483647, %v157
      %v1004 = vand.u32 %v1003, 8388607
      %v1005 = vor.u32 %v1004, 8388608
      %v1006 = vsub.s32 0, %v1005
      %v1007 = vadd.s32 %v1002, 1
      %vm1008 = vcmp.gt.s32.totalorder %v1007, 0
      %v1009 = vsel %vm1008, %v1007, 0
      %v1010 = vshrl.u32 %v1009, 5
      %v1011 = vand.u32 %v1009, 31
      %v1012 = vsub.s32 32, %v1011
      %v1013 = vshrl.u32 683565275, %v1012
      %v1014 = vshll.u32 683565275, %v1011
      %v1015 = vshrl.u32 2475754826, %v1012
      %v1016 = vor.u32 %v1014, %v1015
      %v1017 = vshll.u32 2475754826, %v1011
      %v1018 = vshrl.u32 2131351028, %v1012
      %v1019 = vor.u32 %v1017, %v1018
      %v1020 = vshll.u32 2131351028, %v1011
      %v1021 = vshrl.u32 2102212464, %v1012
      %v1022 = vor.u32 %v1020, %v1021
      %v1023 = vshll.u32 2102212464, %v1011
      %v1024 = vshrl.u32 920167782, %v1012
      %v1025 = vor.u32 %v1023, %v1024
      %v1026 = vshll.u32 920167782, %v1011
      %v1027 = vshrl.u32 1326507024, %v1012
      %v1028 = vor.u32 %v1026, %v1027
      %vm1029 = vcmp.lt.s32.totalorder %v1010, 1
      %vm1030 = vcmp.lt.s32.totalorder %v1010, 2
      %vm1031 = vcmp.lt.s32.totalorder %v1010, 3
      %vm1032 = vcmp.lt.s32.totalorder %v1010, 4
      %v1033 = vsel %vm1029, %v1013, %v1016
      %v1034 = vsel %vm1032, %v1022, 2102212464
      %v1035 = vsel %vm1031, %v1019, %v1034
      %v1036 = vsel %vm1030, %v1033, %v1035
      %v1037 = vsel %vm1029, %v1016, %v1019
      %v1038 = vsel %vm1032, %v1025, 920167782
      %v1039 = vsel %vm1031, %v1022, %v1038
      %v1040 = vsel %vm1030, %v1037, %v1039
      %v1041 = vsel %vm1029, %v1019, %v1022
      %v1042 = vsel %vm1032, %v1028, 1326507024
      %v1043 = vsel %vm1031, %v1025, %v1042
      %v1044 = vsel %vm1030, %v1041, %v1043
      %v1045 = vshll.u32 %v1005, 8
      %v1046 = vmul.u32.u64.compose %v1045, %v1044
      %v1047 = vextract.low.u32 %v1046
      %v1048 = vextract.high.u32 %v1046
      %v1049 = vmul.u32.u64.compose %v1045, %v1040
      %v1050 = vextract.low.u32 %v1049
      %v1051 = vextract.high.u32 %v1049
      %v1052 = vmul.u32 %v1045, %v1036
      %v1053 = vadd.s32 %v1048, %v1050
      %vm1054 = vc.u32 %v1048, %v1050
      %v1055 = vadd.s32 %v1051, 1
      %v1056 = vsel %vm1054, %v1055, %v1051
      %v1057 = vadd.s32 %v1052, %v1056
      %v1058 = vadd.s32 %v1057, 536870912
      %v1059 = vshrl.u32 %v1058, 30
      %v1060 = vshll.u32 %v1059, 30
      %v1061 = vsub.s32 %v1057, %v1060
      %vm1062 = vcmp.lt.s32.totalorder %v1061, 0
      %v1063 = vsub.s32 0, %v1061
      %v1064 = vsel %vm1062, %v1063, %v1061
      %v1065 = vclz %v1064
      %v1066 = vsub.s32 %v1065, 2
      %vm1067 = vcmp.gt.s32.totalorder 0, %v1066
      %v1068 = vsel %vm1067, 0, %v1066
      %v1069 = vsub.s32 32, %v1068
      %v1070 = vshll.u32 %v1061, %v1068
      %v1071 = vshrl.u32 %v1053, %v1069
      %v1072 = vor.u32 %v1070, %v1071
      %v1073 = vsub.s32 4294967266, %v1068
      %v1074 = vadd.s32 %v1073, 127
      %v1075 = vshll.u32 %v1074, 23
      %v1076 = vor.u32 4788187, %v1075
      %v1077 = vand.u32 2147483647, %v1076
      %v1079 = vcvt.s32.f32 %v1072
      %v1080 = vmul.f32 %v1079, %v1077
      %v1081 = vxor.u32 %v1080, 2147483648
      %v1082 = vsel %vm999, %v1081, %v1080
      %v1083 = vsub.s32 4, %v1059
      %v1084 = vsel %vm999, %v1083, %v1059
      %v1085 = vsel %vm998, %v157, %v1082
      %v1086 = vsel %vm998, 0, %v1084
      %v1087 = vcosq.f32.pop %v1085
      %v1088 = vsinq.f32.pop %v1085
      %vm1089 = vweird.f32 %v157
      %v1090 = vadd.s32 %v1086, 3
      %v1091 = vand.u32 %v1090, 3
      %vm1092 = vcmp.lt.s32.totalorder %v1091, 2
      %vm1093 = vcmp.eq.s32.totalorder %v1091, 0
      %v1094 = vxor.u32 %v1088, 2147483648
      %v1095 = vsel %vm1093, %v1087, %v1094
      %vm1096 = vcmp.eq.s32.totalorder %v1091, 2
      %v1097 = vxor.u32 %v1087, 2147483648
      %v1098 = vsel %vm1096, %v1097, %v1088
      %v1099 = vsel %vm1092, %v1095, %v1098
      %v1100 = vsel %vm1089, nan, %v1099
      %v1101 = vand.u32 2147483647, %v158
      %vm1102 = vcmp.le.f32.partialorder %v1101, 0.7853982
      %vm1103 = vcmp.lt.s32.totalorder %v158, 0
      %v1104 = vand.u32 %v158, 2139095040
      %v1105 = vshrl.u32 %v1104, 23
      %v1106 = vsub.s32 %v1105, 127
      %v1107 = vand.u32 2147483647, %v158
      %v1108 = vand.u32 %v1107, 8388607
      %v1109 = vor.u32 %v1108, 8388608
      %v1110 = vsub.s32 0, %v1109
      %v1111 = vadd.s32 %v1106, 1
      %vm1112 = vcmp.gt.s32.totalorder %v1111, 0
      %v1113 = vsel %vm1112, %v1111, 0
      %v1114 = vshrl.u32 %v1113, 5
      %v1115 = vand.u32 %v1113, 31
      %v1116 = vsub.s32 32, %v1115
      %v1117 = vshrl.u32 683565275, %v1116
      %v1118 = vshll.u32 683565275, %v1115
      %v1119 = vshrl.u32 2475754826, %v1116
      %v1120 = vor.u32 %v1118, %v1119
      %v1121 = vshll.u32 2475754826, %v1115
      %v1122 = vshrl.u32 2131351028, %v1116
      %v1123 = vor.u32 %v1121, %v1122
      %v1124 = vshll.u32 2131351028, %v1115
      %v1125 = vshrl.u32 2102212464, %v1116
      %v1126 = vor.u32 %v1124, %v1125
      %v1127 = vshll.u32 2102212464, %v1115
      %v1128 = vshrl.u32 920167782, %v1116
      %v1129 = vor.u32 %v1127, %v1128
      %v1130 = vshll.u32 920167782, %v1115
      %v1131 = vshrl.u32 1326507024, %v1116
      %v1132 = vor.u32 %v1130, %v1131
      %vm1133 = vcmp.lt.s32.totalorder %v1114, 1
      %vm1134 = vcmp.lt.s32.totalorder %v1114, 2
      %vm1135 = vcmp.lt.s32.totalorder %v1114, 3
      %vm1136 = vcmp.lt.s32.totalorder %v1114, 4
      %v1137 = vsel %vm1133, %v1117, %v1120
      %v1138 = vsel %vm1136, %v1126, 2102212464
      %v1139 = vsel %vm1135, %v1123, %v1138
      %v1140 = vsel %vm1134, %v1137, %v1139
      %v1141 = vsel %vm1133, %v1120, %v1123
      %v1142 = vsel %vm1136, %v1129, 920167782
      %v1143 = vsel %vm1135, %v1126, %v1142
      %v1144 = vsel %vm1134, %v1141, %v1143
      %v1145 = vsel %vm1133, %v1123, %v1126
      %v1146 = vsel %vm1136, %v1132, 1326507024
      %v1147 = vsel %vm1135, %v1129, %v1146
      %v1148 = vsel %vm1134, %v1145, %v1147
      %v1149 = vshll.u32 %v1109, 8
      %v1150 = vmul.u32.u64.compose %v1149, %v1148
      %v1151 = vextract.low.u32 %v1150
      %v1152 = vextract.high.u32 %v1150
      %v1153 = vmul.u32.u64.compose %v1149, %v1144
      %v1154 = vextract.low.u32 %v1153
      %v1155 = vextract.high.u32 %v1153
      %v1156 = vmul.u32 %v1149, %v1140
      %v1157 = vadd.s32 %v1152, %v1154
      %vm1158 = vc.u32 %v1152, %v1154
      %v1159 = vadd.s32 %v1155, 1
      %v1160 = vsel %vm1158, %v1159, %v1155
      %v1161 = vadd.s32 %v1156, %v1160
      %v1162 = vadd.s32 %v1161, 536870912
      %v1163 = vshrl.u32 %v1162, 30
      %v1164 = vshll.u32 %v1163, 30
      %v1165 = vsub.s32 %v1161, %v1164
      %vm1166 = vcmp.lt.s32.totalorder %v1165, 0
      %v1167 = vsub.s32 0, %v1165
      %v1168 = vsel %vm1166, %v1167, %v1165
      %v1169 = vclz %v1168
      %v1170 = vsub.s32 %v1169, 2
      %vm1171 = vcmp.gt.s32.totalorder 0, %v1170
      %v1172 = vsel %vm1171, 0, %v1170
      %v1173 = vsub.s32 32, %v1172
      %v1174 = vshll.u32 %v1165, %v1172
      %v1175 = vshrl.u32 %v1157, %v1173
      %v1176 = vor.u32 %v1174, %v1175
      %v1177 = vsub.s32 4294967266, %v1172
      %v1178 = vadd.s32 %v1177, 127
      %v1179 = vshll.u32 %v1178, 23
      %v1180 = vor.u32 4788187, %v1179
      %v1181 = vand.u32 2147483647, %v1180
      %v1183 = vcvt.s32.f32 %v1176
      %v1184 = vmul.f32 %v1183, %v1181
      %v1185 = vxor.u32 %v1184, 2147483648
      %v1186 = vsel %vm1103, %v1185, %v1184
      %v1187 = vsub.s32 4, %v1163
      %v1188 = vsel %vm1103, %v1187, %v1163
      %v1189 = vsel %vm1102, %v158, %v1186
      %v1190 = vsel %vm1102, 0, %v1188
      %v1191 = vcosq.f32.pop %v1189
      %v1192 = vsinq.f32.pop %v1189
      %vm1193 = vweird.f32 %v158
      %v1194 = vadd.s32 %v1190, 3
      %v1195 = vand.u32 %v1194, 3
      %vm1196 = vcmp.lt.s32.totalorder %v1195, 2
      %vm1197 = vcmp.eq.s32.totalorder %v1195, 0
      %v1198 = vxor.u32 %v1192, 2147483648
      %v1199 = vsel %vm1197, %v1191, %v1198
      %vm1200 = vcmp.eq.s32.totalorder %v1195, 2
      %v1201 = vxor.u32 %v1191, 2147483648
      %v1202 = vsel %vm1200, %v1201, %v1192
      %v1203 = vsel %vm1196, %v1199, %v1202
      %v1204 = vsel %vm1193, nan, %v1203
      %v1205 = vand.u32 2147483647, %v159
      %vm1206 = vcmp.le.f32.partialorder %v1205, 0.7853982
      %vm1207 = vcmp.lt.s32.totalorder %v159, 0
      %v1208 = vand.u32 %v159, 2139095040
      %v1209 = vshrl.u32 %v1208, 23
      %v1210 = vsub.s32 %v1209, 127
      %v1211 = vand.u32 2147483647, %v159
      %v1212 = vand.u32 %v1211, 8388607
      %v1213 = vor.u32 %v1212, 8388608
      %v1214 = vsub.s32 0, %v1213
      %v1215 = vadd.s32 %v1210, 1
      %vm1216 = vcmp.gt.s32.totalorder %v1215, 0
      %v1217 = vsel %vm1216, %v1215, 0
      %v1218 = vshrl.u32 %v1217, 5
      %v1219 = vand.u32 %v1217, 31
      %v1220 = vsub.s32 32, %v1219
      %v1221 = vshrl.u32 683565275, %v1220
      %v1222 = vshll.u32 683565275, %v1219
      %v1223 = vshrl.u32 2475754826, %v1220
      %v1224 = vor.u32 %v1222, %v1223
      %v1225 = vshll.u32 2475754826, %v1219
      %v1226 = vshrl.u32 2131351028, %v1220
      %v1227 = vor.u32 %v1225, %v1226
      %v1228 = vshll.u32 2131351028, %v1219
      %v1229 = vshrl.u32 2102212464, %v1220
      %v1230 = vor.u32 %v1228, %v1229
      %v1231 = vshll.u32 2102212464, %v1219
      %v1232 = vshrl.u32 920167782, %v1220
      %v1233 = vor.u32 %v1231, %v1232
      %v1234 = vshll.u32 920167782, %v1219
      %v1235 = vshrl.u32 1326507024, %v1220
      %v1236 = vor.u32 %v1234, %v1235
      %vm1237 = vcmp.lt.s32.totalorder %v1218, 1
      %vm1238 = vcmp.lt.s32.totalorder %v1218, 2
      %vm1239 = vcmp.lt.s32.totalorder %v1218, 3
      %vm1240 = vcmp.lt.s32.totalorder %v1218, 4
      %v1241 = vsel %vm1237, %v1221, %v1224
      %v1242 = vsel %vm1240, %v1230, 2102212464
      %v1243 = vsel %vm1239, %v1227, %v1242
      %v1244 = vsel %vm1238, %v1241, %v1243
      %v1245 = vsel %vm1237, %v1224, %v1227
      %v1246 = vsel %vm1240, %v1233, 920167782
      %v1247 = vsel %vm1239, %v1230, %v1246
      %v1248 = vsel %vm1238, %v1245, %v1247
      %v1249 = vsel %vm1237, %v1227, %v1230
      %v1250 = vsel %vm1240, %v1236, 1326507024
      %v1251 = vsel %vm1239, %v1233, %v1250
      %v1252 = vsel %vm1238, %v1249, %v1251
      %v1253 = vshll.u32 %v1213, 8
      %v1254 = vmul.u32.u64.compose %v1253, %v1252
      %v1255 = vextract.low.u32 %v1254
      %v1256 = vextract.high.u32 %v1254
      %v1257 = vmul.u32.u64.compose %v1253, %v1248
      %v1258 = vextract.low.u32 %v1257
      %v1259 = vextract.high.u32 %v1257
      %v1260 = vmul.u32 %v1253, %v1244
      %v1261 = vadd.s32 %v1256, %v1258
      %vm1262 = vc.u32 %v1256, %v1258
      %v1263 = vadd.s32 %v1259, 1
      %v1264 = vsel %vm1262, %v1263, %v1259
      %v1265 = vadd.s32 %v1260, %v1264
      %v1266 = vadd.s32 %v1265, 536870912
      %v1267 = vshrl.u32 %v1266, 30
      %v1268 = vshll.u32 %v1267, 30
      %v1269 = vsub.s32 %v1265, %v1268
      %vm1270 = vcmp.lt.s32.totalorder %v1269, 0
      %v1271 = vsub.s32 0, %v1269
      %v1272 = vsel %vm1270, %v1271, %v1269
      %v1273 = vclz %v1272
      %v1274 = vsub.s32 %v1273, 2
      %vm1275 = vcmp.gt.s32.totalorder 0, %v1274
      %v1276 = vsel %vm1275, 0, %v1274
      %v1277 = vsub.s32 32, %v1276
      %v1278 = vshll.u32 %v1269, %v1276
      %v1279 = vshrl.u32 %v1261, %v1277
      %v1280 = vor.u32 %v1278, %v1279
      %v1281 = vsub.s32 4294967266, %v1276
      %v1282 = vadd.s32 %v1281, 127
      %v1283 = vshll.u32 %v1282, 23
      %v1284 = vor.u32 4788187, %v1283
      %v1285 = vand.u32 2147483647, %v1284
      %v1287 = vcvt.s32.f32 %v1280
      %v1288 = vmul.f32 %v1287, %v1285
      %v1289 = vxor.u32 %v1288, 2147483648
      %v1290 = vsel %vm1207, %v1289, %v1288
      %v1291 = vsub.s32 4, %v1267
      %v1292 = vsel %vm1207, %v1291, %v1267
      %v1293 = vsel %vm1206, %v159, %v1290
      %v1294 = vsel %vm1206, 0, %v1292
      %v1295 = vcosq.f32.pop %v1293
      %v1296 = vsinq.f32.pop %v1293
      %vm1297 = vweird.f32 %v159
      %v1298 = vadd.s32 %v1294, 3
      %v1299 = vand.u32 %v1298, 3
      %vm1300 = vcmp.lt.s32.totalorder %v1299, 2
      %vm1301 = vcmp.eq.s32.totalorder %v1299, 0
      %v1302 = vxor.u32 %v1296, 2147483648
      %v1303 = vsel %vm1301, %v1295, %v1302
      %vm1304 = vcmp.eq.s32.totalorder %v1299, 2
      %v1305 = vxor.u32 %v1295, 2147483648
      %v1306 = vsel %vm1304, %v1305, %v1296
      %v1307 = vsel %vm1300, %v1303, %v1306
      %v1308 = vsel %vm1297, nan, %v1307
      %v1309 = vand.u32 2147483647, %v160
      %vm1310 = vcmp.le.f32.partialorder %v1309, 0.7853982
      %vm1311 = vcmp.lt.s32.totalorder %v160, 0
      %v1312 = vand.u32 %v160, 2139095040
      %v1313 = vshrl.u32 %v1312, 23
      %v1314 = vsub.s32 %v1313, 127
      %v1315 = vand.u32 2147483647, %v160
      %v1316 = vand.u32 %v1315, 8388607
      %v1317 = vor.u32 %v1316, 8388608
      %v1318 = vsub.s32 0, %v1317
      %v1319 = vadd.s32 %v1314, 1
      %vm1320 = vcmp.gt.s32.totalorder %v1319, 0
      %v1321 = vsel %vm1320, %v1319, 0
      %v1322 = vshrl.u32 %v1321, 5
      %v1323 = vand.u32 %v1321, 31
      %v1324 = vsub.s32 32, %v1323
      %v1325 = vshrl.u32 683565275, %v1324
      %v1326 = vshll.u32 683565275, %v1323
      %v1327 = vshrl.u32 2475754826, %v1324
      %v1328 = vor.u32 %v1326, %v1327
      %v1329 = vshll.u32 2475754826, %v1323
      %v1330 = vshrl.u32 2131351028, %v1324
      %v1331 = vor.u32 %v1329, %v1330
      %v1332 = vshll.u32 2131351028, %v1323
      %v1333 = vshrl.u32 2102212464, %v1324
      %v1334 = vor.u32 %v1332, %v1333
      %v1335 = vshll.u32 2102212464, %v1323
      %v1336 = vshrl.u32 920167782, %v1324
      %v1337 = vor.u32 %v1335, %v1336
      %v1338 = vshll.u32 920167782, %v1323
      %v1339 = vshrl.u32 1326507024, %v1324
      %v1340 = vor.u32 %v1338, %v1339
      %vm1341 = vcmp.lt.s32.totalorder %v1322, 1
      %vm1342 = vcmp.lt.s32.totalorder %v1322, 2
      %vm1343 = vcmp.lt.s32.totalorder %v1322, 3
      %vm1344 = vcmp.lt.s32.totalorder %v1322, 4
      %v1345 = vsel %vm1341, %v1325, %v1328
      %v1346 = vsel %vm1344, %v1334, 2102212464
      %v1347 = vsel %vm1343, %v1331, %v1346
      %v1348 = vsel %vm1342, %v1345, %v1347
      %v1349 = vsel %vm1341, %v1328, %v1331
      %v1350 = vsel %vm1344, %v1337, 920167782
      %v1351 = vsel %vm1343, %v1334, %v1350
      %v1352 = vsel %vm1342, %v1349, %v1351
      %v1353 = vsel %vm1341, %v1331, %v1334
      %v1354 = vsel %vm1344, %v1340, 1326507024
      %v1355 = vsel %vm1343, %v1337, %v1354
      %v1356 = vsel %vm1342, %v1353, %v1355
      %v1357 = vshll.u32 %v1317, 8
      %v1358 = vmul.u32.u64.compose %v1357, %v1356
      %v1359 = vextract.low.u32 %v1358
      %v1360 = vextract.high.u32 %v1358
      %v1361 = vmul.u32.u64.compose %v1357, %v1352
      %v1362 = vextract.low.u32 %v1361
      %v1363 = vextract.high.u32 %v1361
      %v1364 = vmul.u32 %v1357, %v1348
      %v1365 = vadd.s32 %v1360, %v1362
      %vm1366 = vc.u32 %v1360, %v1362
      %v1367 = vadd.s32 %v1363, 1
      %v1368 = vsel %vm1366, %v1367, %v1363
      %v1369 = vadd.s32 %v1364, %v1368
      %v1370 = vadd.s32 %v1369, 536870912
      %v1371 = vshrl.u32 %v1370, 30
      %v1372 = vshll.u32 %v1371, 30
      %v1373 = vsub.s32 %v1369, %v1372
      %vm1374 = vcmp.lt.s32.totalorder %v1373, 0
      %v1375 = vsub.s32 0, %v1373
      %v1376 = vsel %vm1374, %v1375, %v1373
      %v1377 = vclz %v1376
      %v1378 = vsub.s32 %v1377, 2
      %vm1379 = vcmp.gt.s32.totalorder 0, %v1378
      %v1380 = vsel %vm1379, 0, %v1378
      %v1381 = vsub.s32 32, %v1380
      %v1382 = vshll.u32 %v1373, %v1380
      %v1383 = vshrl.u32 %v1365, %v1381
      %v1384 = vor.u32 %v1382, %v1383
      %v1385 = vsub.s32 4294967266, %v1380
      %v1386 = vadd.s32 %v1385, 127
      %v1387 = vshll.u32 %v1386, 23
      %v1388 = vor.u32 4788187, %v1387
      %v1389 = vand.u32 2147483647, %v1388
      %v1391 = vcvt.s32.f32 %v1384
      %v1392 = vmul.f32 %v1391, %v1389
      %v1393 = vxor.u32 %v1392, 2147483648
      %v1394 = vsel %vm1311, %v1393, %v1392
      %v1395 = vsub.s32 4, %v1371
      %v1396 = vsel %vm1311, %v1395, %v1371
      %v1397 = vsel %vm1310, %v160, %v1394
      %v1398 = vsel %vm1310, 0, %v1396
      %v1399 = vcosq.f32.pop %v1397
      %v1400 = vsinq.f32.pop %v1397
      %vm1401 = vweird.f32 %v160
      %v1402 = vadd.s32 %v1398, 3
      %v1403 = vand.u32 %v1402, 3
      %vm1404 = vcmp.lt.s32.totalorder %v1403, 2
      %vm1405 = vcmp.eq.s32.totalorder %v1403, 0
      %v1406 = vxor.u32 %v1400, 2147483648
      %v1407 = vsel %vm1405, %v1399, %v1406
      %vm1408 = vcmp.eq.s32.totalorder %v1403, 2
      %v1409 = vxor.u32 %v1399, 2147483648
      %v1410 = vsel %vm1408, %v1409, %v1400
      %v1411 = vsel %vm1404, %v1407, %v1410
      %v1412 = vsel %vm1401, nan, %v1411
      %v1413 = vand.u32 2147483647, %v161
      %vm1414 = vcmp.le.f32.partialorder %v1413, 0.7853982
      %vm1415 = vcmp.lt.s32.totalorder %v161, 0
      %v1416 = vand.u32 %v161, 2139095040
      %v1417 = vshrl.u32 %v1416, 23
      %v1418 = vsub.s32 %v1417, 127
      %v1419 = vand.u32 2147483647, %v161
      %v1420 = vand.u32 %v1419, 8388607
      %v1421 = vor.u32 %v1420, 8388608
      %v1422 = vsub.s32 0, %v1421
      %v1423 = vadd.s32 %v1418, 1
      %vm1424 = vcmp.gt.s32.totalorder %v1423, 0
      %v1425 = vsel %vm1424, %v1423, 0
      %v1426 = vshrl.u32 %v1425, 5
      %v1427 = vand.u32 %v1425, 31
      %v1428 = vsub.s32 32, %v1427
      %v1429 = vshrl.u32 683565275, %v1428
      %v1430 = vshll.u32 683565275, %v1427
      %v1431 = vshrl.u32 2475754826, %v1428
      %v1432 = vor.u32 %v1430, %v1431
      %v1433 = vshll.u32 2475754826, %v1427
      %v1434 = vshrl.u32 2131351028, %v1428
      %v1435 = vor.u32 %v1433, %v1434
      %v1436 = vshll.u32 2131351028, %v1427
      %v1437 = vshrl.u32 2102212464, %v1428
      %v1438 = vor.u32 %v1436, %v1437
      %v1439 = vshll.u32 2102212464, %v1427
      %v1440 = vshrl.u32 920167782, %v1428
      %v1441 = vor.u32 %v1439, %v1440
      %v1442 = vshll.u32 920167782, %v1427
      %v1443 = vshrl.u32 1326507024, %v1428
      %v1444 = vor.u32 %v1442, %v1443
      %vm1445 = vcmp.lt.s32.totalorder %v1426, 1
      %vm1446 = vcmp.lt.s32.totalorder %v1426, 2
      %vm1447 = vcmp.lt.s32.totalorder %v1426, 3
      %vm1448 = vcmp.lt.s32.totalorder %v1426, 4
      %v1449 = vsel %vm1445, %v1429, %v1432
      %v1450 = vsel %vm1448, %v1438, 2102212464
      %v1451 = vsel %vm1447, %v1435, %v1450
      %v1452 = vsel %vm1446, %v1449, %v1451
      %v1453 = vsel %vm1445, %v1432, %v1435
      %v1454 = vsel %vm1448, %v1441, 920167782
      %v1455 = vsel %vm1447, %v1438, %v1454
      %v1456 = vsel %vm1446, %v1453, %v1455
      %v1457 = vsel %vm1445, %v1435, %v1438
      %v1458 = vsel %vm1448, %v1444, 1326507024
      %v1459 = vsel %vm1447, %v1441, %v1458
      %v1460 = vsel %vm1446, %v1457, %v1459
      %v1461 = vshll.u32 %v1421, 8
      %v1462 = vmul.u32.u64.compose %v1461, %v1460
      %v1463 = vextract.low.u32 %v1462
      %v1464 = vextract.high.u32 %v1462
      %v1465 = vmul.u32.u64.compose %v1461, %v1456
      %v1466 = vextract.low.u32 %v1465
      %v1467 = vextract.high.u32 %v1465
      %v1468 = vmul.u32 %v1461, %v1452
      %v1469 = vadd.s32 %v1464, %v1466
      %vm1470 = vc.u32 %v1464, %v1466
      %v1471 = vadd.s32 %v1467, 1
      %v1472 = vsel %vm1470, %v1471, %v1467
      %v1473 = vadd.s32 %v1468, %v1472
      %v1474 = vadd.s32 %v1473, 536870912
      %v1475 = vshrl.u32 %v1474, 30
      %v1476 = vshll.u32 %v1475, 30
      %v1477 = vsub.s32 %v1473, %v1476
      %vm1478 = vcmp.lt.s32.totalorder %v1477, 0
      %v1479 = vsub.s32 0, %v1477
      %v1480 = vsel %vm1478, %v1479, %v1477
      %v1481 = vclz %v1480
      %v1482 = vsub.s32 %v1481, 2
      %vm1483 = vcmp.gt.s32.totalorder 0, %v1482
      %v1484 = vsel %vm1483, 0, %v1482
      %v1485 = vsub.s32 32, %v1484
      %v1486 = vshll.u32 %v1477, %v1484
      %v1487 = vshrl.u32 %v1469, %v1485
      %v1488 = vor.u32 %v1486, %v1487
      %v1489 = vsub.s32 4294967266, %v1484
      %v1490 = vadd.s32 %v1489, 127
      %v1491 = vshll.u32 %v1490, 23
      %v1492 = vor.u32 4788187, %v1491
      %v1493 = vand.u32 2147483647, %v1492
      %v1495 = vcvt.s32.f32 %v1488
      %v1496 = vmul.f32 %v1495, %v1493
      %v1497 = vxor.u32 %v1496, 2147483648
      %v1498 = vsel %vm1415, %v1497, %v1496
      %v1499 = vsub.s32 4, %v1475
      %v1500 = vsel %vm1415, %v1499, %v1475
      %v1501 = vsel %vm1414, %v161, %v1498
      %v1502 = vsel %vm1414, 0, %v1500
      %v1503 = vcosq.f32.pop %v1501
      %v1504 = vsinq.f32.pop %v1501
      %vm1505 = vweird.f32 %v161
      %v1506 = vadd.s32 %v1502, 3
      %v1507 = vand.u32 %v1506, 3
      %vm1508 = vcmp.lt.s32.totalorder %v1507, 2
      %vm1509 = vcmp.eq.s32.totalorder %v1507, 0
      %v1510 = vxor.u32 %v1504, 2147483648
      %v1511 = vsel %vm1509, %v1503, %v1510
      %vm1512 = vcmp.eq.s32.totalorder %v1507, 2
      %v1513 = vxor.u32 %v1503, 2147483648
      %v1514 = vsel %vm1512, %v1513, %v1504
      %v1515 = vsel %vm1508, %v1511, %v1514
      %v1516 = vsel %vm1505, nan, %v1515
      %v1517 = vand.u32 2147483647, %v162
      %vm1518 = vcmp.le.f32.partialorder %v1517, 0.7853982
      %vm1519 = vcmp.lt.s32.totalorder %v162, 0
      %v1520 = vand.u32 %v162, 2139095040
      %v1521 = vshrl.u32 %v1520, 23
      %v1522 = vsub.s32 %v1521, 127
      %v1523 = vand.u32 2147483647, %v162
      %v1524 = vand.u32 %v1523, 8388607
      %v1525 = vor.u32 %v1524, 8388608
      %v1526 = vsub.s32 0, %v1525
      %v1527 = vadd.s32 %v1522, 1
      %vm1528 = vcmp.gt.s32.totalorder %v1527, 0
      %v1529 = vsel %vm1528, %v1527, 0
      %v1530 = vshrl.u32 %v1529, 5
      %v1531 = vand.u32 %v1529, 31
      %v1532 = vsub.s32 32, %v1531
      %v1533 = vshrl.u32 683565275, %v1532
      %v1534 = vshll.u32 683565275, %v1531
      %v1535 = vshrl.u32 2475754826, %v1532
      %v1536 = vor.u32 %v1534, %v1535
      %v1537 = vshll.u32 2475754826, %v1531
      %v1538 = vshrl.u32 2131351028, %v1532
      %v1539 = vor.u32 %v1537, %v1538
      %v1540 = vshll.u32 2131351028, %v1531
      %v1541 = vshrl.u32 2102212464, %v1532
      %v1542 = vor.u32 %v1540, %v1541
      %v1543 = vshll.u32 2102212464, %v1531
      %v1544 = vshrl.u32 920167782, %v1532
      %v1545 = vor.u32 %v1543, %v1544
      %v1546 = vshll.u32 920167782, %v1531
      %v1547 = vshrl.u32 1326507024, %v1532
      %v1548 = vor.u32 %v1546, %v1547
      %vm1549 = vcmp.lt.s32.totalorder %v1530, 1
      %vm1550 = vcmp.lt.s32.totalorder %v1530, 2
      %vm1551 = vcmp.lt.s32.totalorder %v1530, 3
      %vm1552 = vcmp.lt.s32.totalorder %v1530, 4
      %v1553 = vsel %vm1549, %v1533, %v1536
      %v1554 = vsel %vm1552, %v1542, 2102212464
      %v1555 = vsel %vm1551, %v1539, %v1554
      %v1556 = vsel %vm1550, %v1553, %v1555
      %v1557 = vsel %vm1549, %v1536, %v1539
      %v1558 = vsel %vm1552, %v1545, 920167782
      %v1559 = vsel %vm1551, %v1542, %v1558
      %v1560 = vsel %vm1550, %v1557, %v1559
      %v1561 = vsel %vm1549, %v1539, %v1542
      %v1562 = vsel %vm1552, %v1548, 1326507024
      %v1563 = vsel %vm1551, %v1545, %v1562
      %v1564 = vsel %vm1550, %v1561, %v1563
      %v1565 = vshll.u32 %v1525, 8
      %v1566 = vmul.u32.u64.compose %v1565, %v1564
      %v1567 = vextract.low.u32 %v1566
      %v1568 = vextract.high.u32 %v1566
      %v1569 = vmul.u32.u64.compose %v1565, %v1560
      %v1570 = vextract.low.u32 %v1569
      %v1571 = vextract.high.u32 %v1569
      %v1572 = vmul.u32 %v1565, %v1556
      %v1573 = vadd.s32 %v1568, %v1570
      %vm1574 = vc.u32 %v1568, %v1570
      %v1575 = vadd.s32 %v1571, 1
      %v1576 = vsel %vm1574, %v1575, %v1571
      %v1577 = vadd.s32 %v1572, %v1576
      %v1578 = vadd.s32 %v1577, 536870912
      %v1579 = vshrl.u32 %v1578, 30
      %v1580 = vshll.u32 %v1579, 30
      %v1581 = vsub.s32 %v1577, %v1580
      %vm1582 = vcmp.lt.s32.totalorder %v1581, 0
      %v1583 = vsub.s32 0, %v1581
      %v1584 = vsel %vm1582, %v1583, %v1581
      %v1585 = vclz %v1584
      %v1586 = vsub.s32 %v1585, 2
      %vm1587 = vcmp.gt.s32.totalorder 0, %v1586
      %v1588 = vsel %vm1587, 0, %v1586
      %v1589 = vsub.s32 32, %v1588
      %v1590 = vshll.u32 %v1581, %v1588
      %v1591 = vshrl.u32 %v1573, %v1589
      %v1592 = vor.u32 %v1590, %v1591
      %v1593 = vsub.s32 4294967266, %v1588
      %v1594 = vadd.s32 %v1593, 127
      %v1595 = vshll.u32 %v1594, 23
      %v1596 = vor.u32 4788187, %v1595
      %v1597 = vand.u32 2147483647, %v1596
      %v1599 = vcvt.s32.f32 %v1592
      %v1600 = vmul.f32 %v1599, %v1597
      %v1601 = vxor.u32 %v1600, 2147483648
      %v1602 = vsel %vm1519, %v1601, %v1600
      %v1603 = vsub.s32 4, %v1579
      %v1604 = vsel %vm1519, %v1603, %v1579
      %v1605 = vsel %vm1518, %v162, %v1602
      %v1606 = vsel %vm1518, 0, %v1604
      %v1607 = vcosq.f32.pop %v1605
      %v1608 = vsinq.f32.pop %v1605
      %vm1609 = vweird.f32 %v162
      %v1610 = vadd.s32 %v1606, 3
      %v1611 = vand.u32 %v1610, 3
      %vm1612 = vcmp.lt.s32.totalorder %v1611, 2
      %vm1613 = vcmp.eq.s32.totalorder %v1611, 0
      %v1614 = vxor.u32 %v1608, 2147483648
      %v1615 = vsel %vm1613, %v1607, %v1614
      %vm1616 = vcmp.eq.s32.totalorder %v1611, 2
      %v1617 = vxor.u32 %v1607, 2147483648
      %v1618 = vsel %vm1616, %v1617, %v1608
      %v1619 = vsel %vm1612, %v1615, %v1618
      %v1620 = vsel %vm1609, nan, %v1619
      %v1621 = vand.u32 2147483647, %v163
      %vm1622 = vcmp.le.f32.partialorder %v1621, 0.7853982
      %vm1623 = vcmp.lt.s32.totalorder %v163, 0
      %v1624 = vand.u32 %v163, 2139095040
      %v1625 = vshrl.u32 %v1624, 23
      %v1626 = vsub.s32 %v1625, 127
      %v1627 = vand.u32 2147483647, %v163
      %v1628 = vand.u32 %v1627, 8388607
      %v1629 = vor.u32 %v1628, 8388608
      %v1630 = vsub.s32 0, %v1629
      %v1631 = vadd.s32 %v1626, 1
      %vm1632 = vcmp.gt.s32.totalorder %v1631, 0
      %v1633 = vsel %vm1632, %v1631, 0
      %v1634 = vshrl.u32 %v1633, 5
      %v1635 = vand.u32 %v1633, 31
      %v1636 = vsub.s32 32, %v1635
      %v1637 = vshrl.u32 683565275, %v1636
      %v1638 = vshll.u32 683565275, %v1635
      %v1639 = vshrl.u32 2475754826, %v1636
      %v1640 = vor.u32 %v1638, %v1639
      %v1641 = vshll.u32 2475754826, %v1635
      %v1642 = vshrl.u32 2131351028, %v1636
      %v1643 = vor.u32 %v1641, %v1642
      %v1644 = vshll.u32 2131351028, %v1635
      %v1645 = vshrl.u32 2102212464, %v1636
      %v1646 = vor.u32 %v1644, %v1645
      %v1647 = vshll.u32 2102212464, %v1635
      %v1648 = vshrl.u32 920167782, %v1636
      %v1649 = vor.u32 %v1647, %v1648
      %v1650 = vshll.u32 920167782, %v1635
      %v1651 = vshrl.u32 1326507024, %v1636
      %v1652 = vor.u32 %v1650, %v1651
      %vm1653 = vcmp.lt.s32.totalorder %v1634, 1
      %vm1654 = vcmp.lt.s32.totalorder %v1634, 2
      %vm1655 = vcmp.lt.s32.totalorder %v1634, 3
      %vm1656 = vcmp.lt.s32.totalorder %v1634, 4
      %v1657 = vsel %vm1653, %v1637, %v1640
      %v1658 = vsel %vm1656, %v1646, 2102212464
      %v1659 = vsel %vm1655, %v1643, %v1658
      %v1660 = vsel %vm1654, %v1657, %v1659
      %v1661 = vsel %vm1653, %v1640, %v1643
      %v1662 = vsel %vm1656, %v1649, 920167782
      %v1663 = vsel %vm1655, %v1646, %v1662
      %v1664 = vsel %vm1654, %v1661, %v1663
      %v1665 = vsel %vm1653, %v1643, %v1646
      %v1666 = vsel %vm1656, %v1652, 1326507024
      %v1667 = vsel %vm1655, %v1649, %v1666
      %v1668 = vsel %vm1654, %v1665, %v1667
      %v1669 = vshll.u32 %v1629, 8
      %v1670 = vmul.u32.u64.compose %v1669, %v1668
      %v1671 = vextract.low.u32 %v1670
      %v1672 = vextract.high.u32 %v1670
      %v1673 = vmul.u32.u64.compose %v1669, %v1664
      %v1674 = vextract.low.u32 %v1673
      %v1675 = vextract.high.u32 %v1673
      %v1676 = vmul.u32 %v1669, %v1660
      %v1677 = vadd.s32 %v1672, %v1674
      %vm1678 = vc.u32 %v1672, %v1674
      %v1679 = vadd.s32 %v1675, 1
      %v1680 = vsel %vm1678, %v1679, %v1675
      %v1681 = vadd.s32 %v1676, %v1680
      %v1682 = vadd.s32 %v1681, 536870912
      %v1683 = vshrl.u32 %v1682, 30
      %v1684 = vshll.u32 %v1683, 30
      %v1685 = vsub.s32 %v1681, %v1684
      %vm1686 = vcmp.lt.s32.totalorder %v1685, 0
      %v1687 = vsub.s32 0, %v1685
      %v1688 = vsel %vm1686, %v1687, %v1685
      %v1689 = vclz %v1688
      %v1690 = vsub.s32 %v1689, 2
      %vm1691 = vcmp.gt.s32.totalorder 0, %v1690
      %v1692 = vsel %vm1691, 0, %v1690
      %v1693 = vsub.s32 32, %v1692
      %v1694 = vshll.u32 %v1685, %v1692
      %v1695 = vshrl.u32 %v1677, %v1693
      %v1696 = vor.u32 %v1694, %v1695
      %v1697 = vsub.s32 4294967266, %v1692
      %v1698 = vadd.s32 %v1697, 127
      %v1699 = vshll.u32 %v1698, 23
      %v1700 = vor.u32 4788187, %v1699
      %v1701 = vand.u32 2147483647, %v1700
      %v1703 = vcvt.s32.f32 %v1696
      %v1704 = vmul.f32 %v1703, %v1701
      %v1705 = vxor.u32 %v1704, 2147483648
      %v1706 = vsel %vm1623, %v1705, %v1704
      %v1707 = vsub.s32 4, %v1683
      %v1708 = vsel %vm1623, %v1707, %v1683
      %v1709 = vsel %vm1622, %v163, %v1706
      %v1710 = vsel %vm1622, 0, %v1708
      %v1711 = vcosq.f32.pop %v1709
      %v1712 = vsinq.f32.pop %v1709
      %vm1713 = vweird.f32 %v163
      %v1714 = vadd.s32 %v1710, 3
      %v1715 = vand.u32 %v1714, 3
      %vm1716 = vcmp.lt.s32.totalorder %v1715, 2
      %vm1717 = vcmp.eq.s32.totalorder %v1715, 0
      %v1718 = vxor.u32 %v1712, 2147483648
      %v1719 = vsel %vm1717, %v1711, %v1718
      %vm1720 = vcmp.eq.s32.totalorder %v1715, 2
      %v1721 = vxor.u32 %v1711, 2147483648
      %v1722 = vsel %vm1720, %v1721, %v1712
      %v1723 = vsel %vm1716, %v1719, %v1722
      %v1724 = vsel %vm1713, nan, %v1723
      %v1725 = vand.u32 2147483647, %v164
      %vm1726 = vcmp.le.f32.partialorder %v1725, 0.7853982
      %vm1727 = vcmp.lt.s32.totalorder %v164, 0
      %v1728 = vand.u32 %v164, 2139095040
      %v1729 = vshrl.u32 %v1728, 23
      %v1730 = vsub.s32 %v1729, 127
      %v1731 = vand.u32 2147483647, %v164
      %v1732 = vand.u32 %v1731, 8388607
      %v1733 = vor.u32 %v1732, 8388608
      %v1734 = vsub.s32 0, %v1733
      %v1735 = vadd.s32 %v1730, 1
      %vm1736 = vcmp.gt.s32.totalorder %v1735, 0
      %v1737 = vsel %vm1736, %v1735, 0
      %v1738 = vshrl.u32 %v1737, 5
      %v1739 = vand.u32 %v1737, 31
      %v1740 = vsub.s32 32, %v1739
      %v1741 = vshrl.u32 683565275, %v1740
      %v1742 = vshll.u32 683565275, %v1739
      %v1743 = vshrl.u32 2475754826, %v1740
      %v1744 = vor.u32 %v1742, %v1743
      %v1745 = vshll.u32 2475754826, %v1739
      %v1746 = vshrl.u32 2131351028, %v1740
      %v1747 = vor.u32 %v1745, %v1746
      %v1748 = vshll.u32 2131351028, %v1739
      %v1749 = vshrl.u32 2102212464, %v1740
      %v1750 = vor.u32 %v1748, %v1749
      %v1751 = vshll.u32 2102212464, %v1739
      %v1752 = vshrl.u32 920167782, %v1740
      %v1753 = vor.u32 %v1751, %v1752
      %v1754 = vshll.u32 920167782, %v1739
      %v1755 = vshrl.u32 1326507024, %v1740
      %v1756 = vor.u32 %v1754, %v1755
      %vm1757 = vcmp.lt.s32.totalorder %v1738, 1
      %vm1758 = vcmp.lt.s32.totalorder %v1738, 2
      %vm1759 = vcmp.lt.s32.totalorder %v1738, 3
      %vm1760 = vcmp.lt.s32.totalorder %v1738, 4
      %v1761 = vsel %vm1757, %v1741, %v1744
      %v1762 = vsel %vm1760, %v1750, 2102212464
      %v1763 = vsel %vm1759, %v1747, %v1762
      %v1764 = vsel %vm1758, %v1761, %v1763
      %v1765 = vsel %vm1757, %v1744, %v1747
      %v1766 = vsel %vm1760, %v1753, 920167782
      %v1767 = vsel %vm1759, %v1750, %v1766
      %v1768 = vsel %vm1758, %v1765, %v1767
      %v1769 = vsel %vm1757, %v1747, %v1750
      %v1770 = vsel %vm1760, %v1756, 1326507024
      %v1771 = vsel %vm1759, %v1753, %v1770
      %v1772 = vsel %vm1758, %v1769, %v1771
      %v1773 = vshll.u32 %v1733, 8
      %v1774 = vmul.u32.u64.compose %v1773, %v1772
      %v1775 = vextract.low.u32 %v1774
      %v1776 = vextract.high.u32 %v1774
      %v1777 = vmul.u32.u64.compose %v1773, %v1768
      %v1778 = vextract.low.u32 %v1777
      %v1779 = vextract.high.u32 %v1777
      %v1780 = vmul.u32 %v1773, %v1764
      %v1781 = vadd.s32 %v1776, %v1778
      %vm1782 = vc.u32 %v1776, %v1778
      %v1783 = vadd.s32 %v1779, 1
      %v1784 = vsel %vm1782, %v1783, %v1779
      %v1785 = vadd.s32 %v1780, %v1784
      %v1786 = vadd.s32 %v1785, 536870912
      %v1787 = vshrl.u32 %v1786, 30
      %v1788 = vshll.u32 %v1787, 30
      %v1789 = vsub.s32 %v1785, %v1788
      %vm1790 = vcmp.lt.s32.totalorder %v1789, 0
      %v1791 = vsub.s32 0, %v1789
      %v1792 = vsel %vm1790, %v1791, %v1789
      %v1793 = vclz %v1792
      %v1794 = vsub.s32 %v1793, 2
      %vm1795 = vcmp.gt.s32.totalorder 0, %v1794
      %v1796 = vsel %vm1795, 0, %v1794
      %v1797 = vsub.s32 32, %v1796
      %v1798 = vshll.u32 %v1789, %v1796
      %v1799 = vshrl.u32 %v1781, %v1797
      %v1800 = vor.u32 %v1798, %v1799
      %v1801 = vsub.s32 4294967266, %v1796
      %v1802 = vadd.s32 %v1801, 127
      %v1803 = vshll.u32 %v1802, 23
      %v1804 = vor.u32 4788187, %v1803
      %v1805 = vand.u32 2147483647, %v1804
      %v1807 = vcvt.s32.f32 %v1800
      %v1808 = vmul.f32 %v1807, %v1805
      %v1809 = vxor.u32 %v1808, 2147483648
      %v1810 = vsel %vm1727, %v1809, %v1808
      %v1811 = vsub.s32 4, %v1787
      %v1812 = vsel %vm1727, %v1811, %v1787
      %v1813 = vsel %vm1726, %v164, %v1810
      %v1814 = vsel %vm1726, 0, %v1812
      %v1815 = vcosq.f32.pop %v1813
      %v1816 = vsinq.f32.pop %v1813
      %vm1817 = vweird.f32 %v164
      %v1818 = vadd.s32 %v1814, 3
      %v1819 = vand.u32 %v1818, 3
      %vm1820 = vcmp.lt.s32.totalorder %v1819, 2
      %vm1821 = vcmp.eq.s32.totalorder %v1819, 0
      %v1822 = vxor.u32 %v1816, 2147483648
      %v1823 = vsel %vm1821, %v1815, %v1822
      %vm1824 = vcmp.eq.s32.totalorder %v1819, 2
      %v1825 = vxor.u32 %v1815, 2147483648
      %v1826 = vsel %vm1824, %v1825, %v1816
      %v1827 = vsel %vm1820, %v1823, %v1826
      %v1828 = vsel %vm1817, nan, %v1827
      %v1829 = vld [vmem:[#allocation8] sm:$0xff]
      %v1830 = vld [vmem:[#allocation8 + $0x8] sm:$0xff]
      %v1831 = vld [vmem:[#allocation8 + $0x10] sm:$0xff]
      %v1832 = vld [vmem:[#allocation8 + $0x18] sm:$0xff]
      %v1833 = vld [vmem:[#allocation8 + $0x20] sm:$0xff]
      %v1834 = vld [vmem:[#allocation8 + $0x28] sm:$0xff]
      %v1835 = vld [vmem:[#allocation8 + $0x30] sm:$0xff]
      %v1836 = vld [vmem:[#allocation8 + $0x38] sm:$0xff]
      %v1837 = vld [vmem:[#allocation8 + $0x40] sm:$0xff]
      %v1838 = vld [vmem:[#allocation8 + $0x48] sm:$0xff]
      %v1839 = vld [vmem:[#allocation8 + $0x50] sm:$0xff]
      %v1840 = vld [vmem:[#allocation8 + $0x58] sm:$0xff]
      %v1841 = vld [vmem:[#allocation8 + $0x60] sm:$0xff]
      %v1842 = vld [vmem:[#allocation8 + $0x68] sm:$0xff]
      %v1843 = vld [vmem:[#allocation8 + $0x70] sm:$0xff]
      %v1844 = vld [vmem:[#allocation8 + $0x78] sm:$0xff]
      %v1845 = vld [vmem:[#allocation10] sm:$0xff]
      %v1846 = vld [vmem:[#allocation10 + $0x8] sm:$0xff]
      %v1847 = vld [vmem:[#allocation10 + $0x10] sm:$0xff]
      %v1848 = vld [vmem:[#allocation10 + $0x18] sm:$0xff]
      %v1849 = vld [vmem:[#allocation10 + $0x20] sm:$0xff]
      %v1850 = vld [vmem:[#allocation10 + $0x28] sm:$0xff]
      %v1851 = vld [vmem:[#allocation10 + $0x30] sm:$0xff]
      %v1852 = vld [vmem:[#allocation10 + $0x38] sm:$0xff]
      %v1853 = vld [vmem:[#allocation10 + $0x40] sm:$0xff]
      %v1854 = vld [vmem:[#allocation10 + $0x48] sm:$0xff]
      %v1855 = vld [vmem:[#allocation10 + $0x50] sm:$0xff]
      %v1856 = vld [vmem:[#allocation10 + $0x58] sm:$0xff]
      %v1857 = vld [vmem:[#allocation10 + $0x60] sm:$0xff]
      %v1858 = vld [vmem:[#allocation10 + $0x68] sm:$0xff]
      %v1859 = vld [vmem:[#allocation10 + $0x70] sm:$0xff]
      %v1860 = vld [vmem:[#allocation10 + $0x78] sm:$0xff]
      %v1861 = vmul.f32 %v1845, %v268
      %v1862 = vmul.f32 %v1846, %v372
      %v1863 = vmul.f32 %v1847, %v476
      %v1864 = vmul.f32 %v1848, %v580
      %v1865 = vmul.f32 %v1849, %v684
      %v1866 = vmul.f32 %v1850, %v788
      %v1867 = vmul.f32 %v1851, %v892
      %v1868 = vmul.f32 %v1852, %v996
      %v1869 = vmul.f32 %v1853, %v1100
      %v1870 = vmul.f32 %v1854, %v1204
      %v1871 = vmul.f32 %v1855, %v1308
      %v1872 = vmul.f32 %v1856, %v1412
      %v1873 = vmul.f32 %v1857, %v1516
      %v1874 = vmul.f32 %v1858, %v1620
      %v1875 = vmul.f32 %v1859, %v1724
      %v1876 = vmul.f32 %v1860, %v1828
      %v1877 = vadd.f32 %v1829, %v1861
      %v1878 = vadd.f32 %v1830, %v1862
      %v1879 = vadd.f32 %v1831, %v1863
      %v1880 = vadd.f32 %v1832, %v1864
      %v1881 = vadd.f32 %v1833, %v1865
      %v1882 = vadd.f32 %v1834, %v1866
      %v1883 = vadd.f32 %v1835, %v1867
      %v1884 = vadd.f32 %v1836, %v1868
      %v1885 = vadd.f32 %v1837, %v1869
      %v1886 = vadd.f32 %v1838, %v1870
      %v1887 = vadd.f32 %v1839, %v1871
      %v1888 = vadd.f32 %v1840, %v1872
      %v1889 = vadd.f32 %v1841, %v1873
      %v1890 = vadd.f32 %v1842, %v1874
      %v1891 = vadd.f32 %v1843, %v1875
      %v1892 = vadd.f32 %v1844, %v1876
      %1893 = vst [vmem:[#allocation2] sm:$0xff] %v1877
      %1894 = vst [vmem:[#allocation2 + $0x8] sm:$0xff] %v1878
      %1895 = vst [vmem:[#allocation2 + $0x10] sm:$0xff] %v1879
      %1896 = vst [vmem:[#allocation2 + $0x18] sm:$0xff] %v1880
      %1897 = vst [vmem:[#allocation2 + $0x20] sm:$0xff] %v1881
      %1898 = vst [vmem:[#allocation2 + $0x28] sm:$0xff] %v1882
      %1899 = vst [vmem:[#allocation2 + $0x30] sm:$0xff] %v1883
      %1900 = vst [vmem:[#allocation2 + $0x38] sm:$0xff] %v1884
      %1901 = vst [vmem:[#allocation2 + $0x40] sm:$0xff] %v1885
      %1902 = vst [vmem:[#allocation2 + $0x48] sm:$0xff] %v1886
      %1903 = vst [vmem:[#allocation2 + $0x50] sm:$0xff] %v1887
      %1904 = vst [vmem:[#allocation2 + $0x58] sm:$0xff] %v1888
      %1905 = vst [vmem:[#allocation2 + $0x60] sm:$0xff] %v1889
      %1906 = vst [vmem:[#allocation2 + $0x68] sm:$0xff] %v1890
      %1907 = vst [vmem:[#allocation2 + $0x70] sm:$0xff] %v1891
      %1908 = vst [vmem:[#allocation2 + $0x78] sm:$0xff] %v1892
    $region49: #{tpu_custom_call.1} parent=1 // pred_fallthru
      _
    %v1909 = vld [vmem:[#allocation5] sm:$0xff]
    %v1910 = vld [vmem:[#allocation5 + $0x8] sm:$0xff]
    %v1911 = vld [vmem:[#allocation2] sm:$0xff]
    %v1912 = vld [vmem:[#allocation2 + $0x8] sm:$0xff]
    %v1913 = vld [vmem:[#allocation2 + $0x10] sm:$0xff]
    %v1914 = vld [vmem:[#allocation2 + $0x18] sm:$0xff]
    %v1915 = vld [vmem:[#allocation2 + $0x20] sm:$0xff]
    %v1916 = vld [vmem:[#allocation2 + $0x28] sm:$0xff]
    %v1917 = vld [vmem:[#allocation2 + $0x30] sm:$0xff]
    %v1918 = vld [vmem:[#allocation2 + $0x38] sm:$0xff]
    %v1919 = vld [vmem:[#allocation2 + $0x40] sm:$0xff]
    %v1920 = vld [vmem:[#allocation2 + $0x48] sm:$0xff]
    %v1921 = vld [vmem:[#allocation2 + $0x50] sm:$0xff]
    %v1922 = vld [vmem:[#allocation2 + $0x58] sm:$0xff]
    %v1923 = vld [vmem:[#allocation2 + $0x60] sm:$0xff]
    %v1924 = vld [vmem:[#allocation2 + $0x68] sm:$0xff]
    %v1925 = vld [vmem:[#allocation2 + $0x70] sm:$0xff]
    %v1926 = vld [vmem:[#allocation2 + $0x78] sm:$0xff]
    %v1927 = vld [vmem:[%s6] sm:$0x1]
    %v1929 = vlaneseq
    %v1930 = vshrl.u32 %v1929, 7
    %v1931 = vsub.s32 0, %v1930
    %v1932 = vrot.slane %v1927, %v1931
    %1934 = vmatprep.subr.mxu0 0.0
    %1935 = vmatpush1.msra.mxu0 %v1911
    %1936 = vmatprep.subr.mxu0 0.0
    %1937 = vmatpush1.msra.mxu0 %v1912
    %1938 = vmatprep.subr.mxu0 0.0
    %1939 = vmatpush1.msra.mxu0 %v1913
    %1940 = vmatprep.subr.mxu0 0.0
    %1941 = vmatpush1.msra.mxu0 %v1914
    %1942 = vmatprep.subr.mxu0 0.0
    %1943 = vmatpush1.msra.mxu0 %v1915
    %1944 = vmatprep.subr.mxu0 0.0
    %1945 = vmatpush1.msra.mxu0 %v1916
    %1946 = vmatprep.subr.mxu0 0.0
    %1947 = vmatpush1.msra.mxu0 %v1917
    %1948 = vmatprep.subr.mxu0 0.0
    %1949 = vmatpush1.msra.mxu0 %v1918
    %1950 = vmatprep.subr.mxu0 0.0
    %1951 = vmatpush1.msra.mxu0 %v1919
    %1952 = vmatprep.subr.mxu0 0.0
    %1953 = vmatpush1.msra.mxu0 %v1920
    %1954 = vmatprep.subr.mxu0 0.0
    %1955 = vmatpush1.msra.mxu0 %v1921
    %1956 = vmatprep.subr.mxu0 0.0
    %1957 = vmatpush1.msra.mxu0 %v1922
    %1958 = vmatprep.subr.mxu0 0.0
    %1959 = vmatpush1.msra.mxu0 %v1923
    %1960 = vmatprep.subr.mxu0 0.0
    %1961 = vmatpush1.msra.mxu0 %v1924
    %1962 = vmatprep.subr.mxu0 0.0
    %1963 = vmatpush1.msra.mxu0 %v1925
    %1964 = vmatprep.subr.mxu0 0.0
    %1965 = vmatpush1.msra.mxu0 %v1926
    %1966 = vmatprep.subr.mxu0 0.0
    %1967 = vmatpush1.msra.mxu0 0.0
    %1968 = vmatprep.subr.mxu0 0.0
    %1969 = vmatpush1.msra.mxu0 0.0
    %1970 = vmatprep.subr.mxu0 0.0
    %1971 = vmatpush1.msra.mxu0 0.0
    %1972 = vmatprep.subr.mxu0 0.0
    %1973 = vmatpush1.msra.mxu0 0.0
    %1974 = vmatprep.subr.mxu0 0.0
    %1975 = vmatpush1.msra.mxu0 0.0
    %1976 = vmatprep.subr.mxu0 0.0
    %1977 = vmatpush1.msra.mxu0 0.0
    %1978 = vmatprep.subr.mxu0 0.0
    %1979 = vmatpush1.msra.mxu0 0.0
    %1980 = vmatprep.subr.mxu0 0.0
    %1981 = vmatpush1.msra.mxu0 0.0
    %1982 = vmatprep.subr.mxu0 0.0
    %1983 = vmatpush1.msra.mxu0 0.0
    %1984 = vmatprep.subr.mxu0 0.0
    %1985 = vmatpush1.msra.mxu0 0.0
    %1986 = vmatprep.subr.mxu0 0.0
    %1987 = vmatpush1.msra.mxu0 0.0
    %1988 = vmatprep.subr.mxu0 0.0
    %1989 = vmatpush1.msra.mxu0 0.0
    %1990 = vmatprep.subr.mxu0 0.0
    %1991 = vmatpush1.msra.mxu0 0.0
    %1992 = vmatprep.subr.mxu0 0.0
    %1993 = vmatpush1.msra.mxu0 0.0
    %1994 = vmatprep.subr.mxu0 0.0
    %1995 = vmatpush1.msra.mxu0 0.0
    %1996 = vmatprep.subr.mxu0 0.0
    %1997 = vmatpush1.msra.mxu0 0.0
    %1998 = vmatprep.mubr.f32.mxu0 0.0
    %1999 = vmatmul.mubr.f32.gmra.mrb[0].mxu0 %v1909
    %v2000 = vpop.f32.mrb[0].mxu0
    %v2001 = vadd.f32 %v1932, %v2000
    %v2002 = vpop.f32.mrb[0].mxu0
    %2003 = vmatprep.mubr.f32.mxu0 0.0
    %2004 = vmatmul.mubr.f32.gmra.mrb[0].mxu0 %v1910
    %v2005 = vpop.f32.mrb[0].mxu0
    %v2006 = vadd.f32 %v1932, %v2005
    %v2007 = vpop.f32.mrb[0].mxu0
    %2008 = vdwg.mxu0
    %2009 = vst [vmem:[#allocation14] sm:$0xff] %v2001
    %2010 = vst [vmem:[#allocation14 + $0x8] sm:$0xff] %v2006
    // Predicated region
    $region50: #{tpu_custom_call.1} parent=1 // pred_check
      _
    $region51: #{tpu_custom_call.1} parent=1 // pred_check_branch
      %2012 = sbr.rel (0) target = $region53
    $region52: #{tpu_custom_call.1} parent=1 // pred_region
      %s2014 = ssub.s32 256, 256
      %2015 = vsyncadd [#allocation7], %s2014
      %s2016 = sshll.u32 [#allocation14], 4
      %s2017 = int_to_ptr.vmem [resolvable:$true] %s2016
      %2022 = dma.vmem_to_hbm [thread:$0]  %s2017, 256, %s7, [#allocation7], 128, 128, 8
    $region53: #{tpu_custom_call.1} parent=1 // pred_fallthru
      _
    // Predicated region
    $region54: #{tpu_custom_call.1} parent=1 // pred_check
      _
    $region55: #{tpu_custom_call.1} parent=1 // pred_check_branch
      %2024 = sbr.rel (0) target = $region57
    $region56: #{tpu_custom_call.1} parent=1 // pred_region
      %2025 = dma.done [#allocation7], 256
    $region57: #{tpu_custom_call.1} parent=1 // pred_fallthru
      _
    %2026 = vsyncpa [#allocation6], 1
    %2027 = vsyncpa [#allocation9], 1
    %2028 = vsyncpa [#allocation12], 1
    %2029 = vsyncpa [#allocation7], 1

// kernel: tpu_custom_call.1
$region0: #{tpu_custom_call.1}
  #allocation0 [shape = 'u32[]', space=smem, size = 0x4, offset = 0x4, fixed_abs, tag = 'smem constant byte address 0x4 - core index']
  #allocation1 [shape = 'u32[144,128]{1,0:T(1,128)}', space=vmem, size = 0x12000, scoped, tag = 'internal scratch']
  #allocation2 [shape = 'f32[128,128]{1,0:T(8,128)}', space=vmem, size = 0x10000, scoped, tag = 'scratch operand']
  #allocation3 [shape = 's32[1]{0}', space=sflag, size = 0x4, scoped, tag = 'scoped memory for tpu_custom_call.1']
  #allocation4 [shape = 's32[1]{0:T(128)S(6)}', space=smem, size = 0x200, scoped, tag = 'prefetched SMEM operand 0']
  %s0 = inlined_call_operand.<no memory space> [shape: s32[1], index: 0, kind: input, shape index: {}]
  %s1 = inlined_call_operand.hbm [shape: f32[16,128], index: 1, kind: input, shape index: {}]
  %s2 = inlined_call_operand.hbm [shape: f32[128,128], index: 2, kind: input, shape index: {}]
  %s3 = inlined_call_operand.hbm [shape: f32[128,128], index: 3, kind: input, shape index: {}]
  %s4 = inlined_call_operand.hbm [shape: f32[128,128], index: 4, kind: input, shape index: {}]
  %s5 = inlined_call_operand.hbm [shape: f32[128,128], index: 5, kind: input, shape index: {}]
  %s6 = inlined_call_operand.vmem [shape: f32[1,128], index: 6, kind: input, shape index: {}]
  %s7 = inlined_call_operand.hbm [shape: f32[16,32], index: 7, kind: output, shape index: {}]
  %s8 = sld [smem:[#allocation0]]
  $region58: #{tpu_custom_call.1} parent=0
    _
  %s10 = ssub.s32 1, %s8
  %s11 = scalar_select 0, %s10, %s8
  %12 = sst [smem:[#allocation4]] %s0
  $region1: #{tpu_custom_call.1} parent=0
    #allocation5 [shape = 'u8[8192]{0}', space=vmem, size = 0x2000, scoped, tag = 'input window, operand 1, single buffered']
    #allocation6 [shape = 's32[1]{0}', space=sflag, size = 0x4, scoped, tag = 'scoped memory for tpu_custom_call.1']
    #allocation7 [shape = 's32[1]{0}', space=sflag, size = 0x4, scoped, tag = 'scoped memory for tpu_custom_call.1']
    #allocation8 [shape = 'u8[65536]{0}', space=vmem, size = 0x10000, scoped, tag = 'input window, operand 2, single buffered']
    #allocation9 [shape = 's32[1]{0}', space=sflag, size = 0x4, scoped, tag = 'scoped memory for tpu_custom_call.1']
    #allocation10 [shape = 'u8[65536]{0}', space=vmem, size = 0x10000, scoped, tag = 'input window, operand 3, single buffered']
    #allocation11 [shape = 'u8[65536]{0}', space=vmem, size = 0x10000, scoped, tag = 'input window, operand 4, single buffered']
    #allocation12 [shape = 's32[1]{0}', space=sflag, size = 0x4, scoped, tag = 'scoped memory for tpu_custom_call.1']
    #allocation13 [shape = 'u8[65536]{0}', space=vmem, size = 0x10000, scoped, tag = 'input window, operand 5, single buffered']
    #allocation14 [shape = 'u8[8192]{0}', space=vmem, size = 0x2000, scoped, tag = 'output window, operand 0, single buffered']
    %13 = vsyncpa [#allocation6], 0
    %14 = vsyncpa [#allocation9], 0
    %15 = vsyncpa [#allocation12], 0
    %16 = vsyncpa [#allocation7], 0
    // Predicated region
    $region2: #{tpu_custom_call.1} parent=1 // pred_check
      _
    $region3: #{tpu_custom_call.1} parent=1 // pred_check_branch
      %18 = sbr.rel (0) target = $region5
    $region4: #{tpu_custom_call.1} parent=1 // pred_region
      %s20 = ssub.s32 256, 256
      %21 = vsyncadd [#allocation6], %s20
      %s22 = sshll.u32 [#allocation5], 4
      %s23 = int_to_ptr.vmem [resolvable:$true] %s22
      %28 = dma.hbm_to_vmem [thread:$0]  %s1, 256, %s23, [#allocation6], 128, 128, 8
    $region5: #{tpu_custom_call.1} parent=1 // pred_fallthru
      _
    // Predicated region
    $region6: #{tpu_custom_call.1} parent=1 // pred_check
      _
    $region7: #{tpu_custom_call.1} parent=1 // pred_check_branch
      %30 = sbr.rel (0) target = $region9
    $region8: #{tpu_custom_call.1} parent=1 // pred_region
      %s32 = ssub.s32 2048, 2048
      %33 = vsyncadd [#allocation9], %s32
      %s34 = sshll.u32 [#allocation8], 4
      %s35 = int_to_ptr.vmem [resolvable:$true] %s34
      %40 = dma.hbm_to_vmem [thread:$0]  %s2, 2048, %s35, [#allocation9], 128, 128, 8
    $region9: #{tpu_custom_call.1} parent=1 // pred_fallthru
      _
    // Predicated region
    $region10: #{tpu_custom_call.1} parent=1 // pred_check
      _
    $region11: #{tpu_custom_call.1} parent=1 // pred_check_branch
      %42 = sbr.rel (0) target = $region13
    $region12: #{tpu_custom_call.1} parent=1 // pred_region
      %s44 = ssub.s32 2048, 2048
      %45 = vsyncadd [#allocation9], %s44
      %s46 = sshll.u32 [#allocation10], 4
      %s47 = int_to_ptr.vmem [resolvable:$true] %s46
      %52 = dma.hbm_to_vmem [thread:$0]  %s3, 2048, %s47, [#allocation9], 128, 128, 8
    $region13: #{tpu_custom_call.1} parent=1 // pred_fallthru
      _
    // Predicated region
    $region14: #{tpu_custom_call.1} parent=1 // pred_check
      _
    $region15: #{tpu_custom_call.1} parent=1 // pred_check_branch
      %54 = sbr.rel (0) target = $region17
    $region16: #{tpu_custom_call.1} parent=1 // pred_region
      %s56 = ssub.s32 2048, 2048
      %57 = vsyncadd [#allocation12], %s56
      %s58 = sshll.u32 [#allocation11], 4
      %s59 = int_to_ptr.vmem [resolvable:$true] %s58
      %64 = dma.hbm_to_vmem [thread:$0]  %s4, 2048, %s59, [#allocation12], 128, 128, 8
    $region17: #{tpu_custom_call.1} parent=1 // pred_fallthru
      _
    // Predicated region
    $region18: #{tpu_custom_call.1} parent=1 // pred_check
      _
    $region19: #{tpu_custom_call.1} parent=1 // pred_check_branch
      %66 = sbr.rel (0) target = $region21
    $region20: #{tpu_custom_call.1} parent=1 // pred_region
      %s68 = ssub.s32 2048, 2048
      %69 = vsyncadd [#allocation12], %s68
      %s70 = sshll.u32 [#allocation13], 4
      %s71 = int_to_ptr.vmem [resolvable:$true] %s70
      %76 = dma.hbm_to_vmem [thread:$0]  %s5, 2048, %s71, [#allocation12], 128, 128, 8
    $region21: #{tpu_custom_call.1} parent=1 // pred_fallthru
      _
    // Predicated region
    $region22: #{tpu_custom_call.1} parent=1 // pred_check
      _
    $region23: #{tpu_custom_call.1} parent=1 // pred_check_branch
      %78 = sbr.rel (0) target = $region25
    $region24: #{tpu_custom_call.1} parent=1 // pred_region
      _
    $region25: #{tpu_custom_call.1} parent=1 // pred_fallthru
      _
    // Predicated region
    $region26: #{tpu_custom_call.1} parent=1 // pred_check
      _
    $region27: #{tpu_custom_call.1} parent=1 // pred_check_branch
      %80 = sbr.rel (0) target = $region29
    $region28: #{tpu_custom_call.1} parent=1 // pred_region
      %81 = dma.done [#allocation6], 256
    $region29: #{tpu_custom_call.1} parent=1 // pred_fallthru
      _
    // Predicated region
    $region30: #{tpu_custom_call.1} parent=1 // pred_check
      _
    $region31: #{tpu_custom_call.1} parent=1 // pred_check_branch
      %83 = sbr.rel (0) target = $region33
    $region32: #{tpu_custom_call.1} parent=1 // pred_region
      %84 = dma.done [#allocation9], 2048
    $region33: #{tpu_custom_call.1} parent=1 // pred_fallthru
      _
    // Predicated region
    $region34: #{tpu_custom_call.1} parent=1 // pred_check
      _
    $region35: #{tpu_custom_call.1} parent=1 // pred_check_branch
      %86 = sbr.rel (0) target = $region37
    $region36: #{tpu_custom_call.1} parent=1 // pred_region
      %87 = dma.done [#allocation9], 2048
    $region37: #{tpu_custom_call.1} parent=1 // pred_fallthru
      _
    // Predicated region
    $region38: #{tpu_custom_call.1} parent=1 // pred_check
      _
    $region39: #{tpu_custom_call.1} parent=1 // pred_check_branch
      %89 = sbr.rel (0) target = $region41
    $region40: #{tpu_custom_call.1} parent=1 // pred_region
      %90 = dma.done [#allocation12], 2048
    $region41: #{tpu_custom_call.1} parent=1 // pred_fallthru
      _
    // Predicated region
    $region42: #{tpu_custom_call.1} parent=1 // pred_check
      _
    $region43: #{tpu_custom_call.1} parent=1 // pred_check_branch
      %92 = sbr.rel (0) target = $region45
    $region44: #{tpu_custom_call.1} parent=1 // pred_region
      %93 = dma.done [#allocation12], 2048
    $region45: #{tpu_custom_call.1} parent=1 // pred_fallthru
      _
    %p94 = scmp.eq.s32.totalorder 0, 0
    // Predicated region
    $region46: #{tpu_custom_call.1} parent=1 // pred_check
      %p95 = pneg %p94
    $region47: #{tpu_custom_call.1} parent=1 // pred_check_branch
      %97 = sbr.rel (%p95) target = $region49
    $region48: #{tpu_custom_call.1} parent=1 // pred_region
      %s98 = sld [smem:[#allocation4]]
      %s99 = scvt.s32.f32 %s98
      %v100 = vld [vmem:[#allocation11] sm:$0xff]
      %v101 = vld [vmem:[#allocation11 + $0x8] sm:$0xff]
      %v102 = vld [vmem:[#allocation11 + $0x10] sm:$0xff]
      %v103 = vld [vmem:[#allocation11 + $0x18] sm:$0xff]
      %v104 = vld [vmem:[#allocation11 + $0x20] sm:$0xff]
      %v105 = vld [vmem:[#allocation11 + $0x28] sm:$0xff]
      %v106 = vld [vmem:[#allocation11 + $0x30] sm:$0xff]
      %v107 = vld [vmem:[#allocation11 + $0x38] sm:$0xff]
      %v108 = vld [vmem:[#allocation11 + $0x40] sm:$0xff]
      %v109 = vld [vmem:[#allocation11 + $0x48] sm:$0xff]
      %v110 = vld [vmem:[#allocation11 + $0x50] sm:$0xff]
      %v111 = vld [vmem:[#allocation11 + $0x58] sm:$0xff]
      %v112 = vld [vmem:[#allocation11 + $0x60] sm:$0xff]
      %v113 = vld [vmem:[#allocation11 + $0x68] sm:$0xff]
      %v114 = vld [vmem:[#allocation11 + $0x70] sm:$0xff]
      %v115 = vld [vmem:[#allocation11 + $0x78] sm:$0xff]
      %v116 = vstv %s99
      %v117 = vmul.f32 %v116, %v100
      %v118 = vmul.f32 %v116, %v101
      %v119 = vmul.f32 %v116, %v102
      %v120 = vmul.f32 %v116, %v103
      %v121 = vmul.f32 %v116, %v104
      %v122 = vmul.f32 %v116, %v105
      %v123 = vmul.f32 %v116, %v106
      %v124 = vmul.f32 %v116, %v107
      %v125 = vmul.f32 %v116, %v108
      %v126 = vmul.f32 %v116, %v109
      %v127 = vmul.f32 %v116, %v110
      %v128 = vmul.f32 %v116, %v111
      %v129 = vmul.f32 %v116, %v112
      %v130 = vmul.f32 %v116, %v113
      %v131 = vmul.f32 %v116, %v114
      %v132 = vmul.f32 %v116, %v115
      %v133 = vld [vmem:[#allocation13] sm:$0xff]
      %v134 = vld [vmem:[#allocation13 + $0x8] sm:$0xff]
      %v135 = vld [vmem:[#allocation13 + $0x10] sm:$0xff]
      %v136 = vld [vmem:[#allocation13 + $0x18] sm:$0xff]
      %v137 = vld [vmem:[#allocation13 + $0x20] sm:$0xff]
      %v138 = vld [vmem:[#allocation13 + $0x28] sm:$0xff]
      %v139 = vld [vmem:[#allocation13 + $0x30] sm:$0xff]
      %v140 = vld [vmem:[#allocation13 + $0x38] sm:$0xff]
      %v141 = vld [vmem:[#allocation13 + $0x40] sm:$0xff]
      %v142 = vld [vmem:[#allocation13 + $0x48] sm:$0xff]
      %v143 = vld [vmem:[#allocation13 + $0x50] sm:$0xff]
      %v144 = vld [vmem:[#allocation13 + $0x58] sm:$0xff]
      %v145 = vld [vmem:[#allocation13 + $0x60] sm:$0xff]
      %v146 = vld [vmem:[#allocation13 + $0x68] sm:$0xff]
      %v147 = vld [vmem:[#allocation13 + $0x70] sm:$0xff]
      %v148 = vld [vmem:[#allocation13 + $0x78] sm:$0xff]
      %v149 = vadd.f32 %v117, %v133
      %v150 = vadd.f32 %v118, %v134
      %v151 = vadd.f32 %v119, %v135
      %v152 = vadd.f32 %v120, %v136
      %v153 = vadd.f32 %v121, %v137
      %v154 = vadd.f32 %v122, %v138
      %v155 = vadd.f32 %v123, %v139
      %v156 = vadd.f32 %v124, %v140
      %v157 = vadd.f32 %v125, %v141
      %v158 = vadd.f32 %v126, %v142
      %v159 = vadd.f32 %v127, %v143
      %v160 = vadd.f32 %v128, %v144
      %v161 = vadd.f32 %v129, %v145
      %v162 = vadd.f32 %v130, %v146
      %v163 = vadd.f32 %v131, %v147
      %v164 = vadd.f32 %v132, %v148
      %v165 = vand.u32 2147483647, %v149
      %vm166 = vcmp.le.f32.partialorder %v165, 0.7853982
      %vm167 = vcmp.lt.s32.totalorder %v149, 0
      %v168 = vand.u32 %v149, 2139095040
      %v169 = vshrl.u32 %v168, 23
      %v170 = vsub.s32 %v169, 127
      %v171 = vand.u32 2147483647, %v149
      %v172 = vand.u32 %v171, 8388607
      %v173 = vor.u32 %v172, 8388608
      %v174 = vsub.s32 0, %v173
      %v175 = vadd.s32 %v170, 1
      %vm176 = vcmp.gt.s32.totalorder %v175, 0
      %v177 = vsel %vm176, %v175, 0
      %v178 = vshrl.u32 %v177, 5
      %v179 = vand.u32 %v177, 31
      %v180 = vsub.s32 32, %v179
      %v181 = vshrl.u32 683565275, %v180
      %v182 = vshll.u32 683565275, %v179
      %v183 = vshrl.u32 2475754826, %v180
      %v184 = vor.u32 %v182, %v183
      %v185 = vshll.u32 2475754826, %v179
      %v186 = vshrl.u32 2131351028, %v180
      %v187 = vor.u32 %v185, %v186
      %v188 = vshll.u32 2131351028, %v179
      %v189 = vshrl.u32 2102212464, %v180
      %v190 = vor.u32 %v188, %v189
      %v191 = vshll.u32 2102212464, %v179
      %v192 = vshrl.u32 920167782, %v180
      %v193 = vor.u32 %v191, %v192
      %v194 = vshll.u32 920167782, %v179
      %v195 = vshrl.u32 1326507024, %v180
      %v196 = vor.u32 %v194, %v195
      %vm197 = vcmp.lt.s32.totalorder %v178, 1
      %vm198 = vcmp.lt.s32.totalorder %v178, 2
      %vm199 = vcmp.lt.s32.totalorder %v178, 3
      %vm200 = vcmp.lt.s32.totalorder %v178, 4
      %v201 = vsel %vm197, %v181, %v184
      %v202 = vsel %vm200, %v190, 2102212464
      %v203 = vsel %vm199, %v187, %v202
      %v204 = vsel %vm198, %v201, %v203
      %v205 = vsel %vm197, %v184, %v187
      %v206 = vsel %vm200, %v193, 920167782
      %v207 = vsel %vm199, %v190, %v206
      %v208 = vsel %vm198, %v205, %v207
      %v209 = vsel %vm197, %v187, %v190
      %v210 = vsel %vm200, %v196, 1326507024
      %v211 = vsel %vm199, %v193, %v210
      %v212 = vsel %vm198, %v209, %v211
      %v213 = vshll.u32 %v173, 8
      %v214 = vmul.u32.u64.compose %v213, %v212
      %v215 = vextract.low.u32 %v214
      %v216 = vextract.high.u32 %v214
      %v217 = vmul.u32.u64.compose %v213, %v208
      %v218 = vextract.low.u32 %v217
      %v219 = vextract.high.u32 %v217
      %v220 = vmul.u32 %v213, %v204
      %v221 = vadd.s32 %v216, %v218
      %vm222 = vc.u32 %v216, %v218
      %v223 = vadd.s32 %v219, 1
      %v224 = vsel %vm222, %v223, %v219
      %v225 = vadd.s32 %v220, %v224
      %v226 = vadd.s32 %v225, 536870912
      %v227 = vshrl.u32 %v226, 30
      %v228 = vshll.u32 %v227, 30
      %v229 = vsub.s32 %v225, %v228
      %vm230 = vcmp.lt.s32.totalorder %v229, 0
      %v231 = vsub.s32 0, %v229
      %v232 = vsel %vm230, %v231, %v229
      %v233 = vclz %v232
      %v234 = vsub.s32 %v233, 2
      %vm235 = vcmp.gt.s32.totalorder 0, %v234
      %v236 = vsel %vm235, 0, %v234
      %v237 = vsub.s32 32, %v236
      %v238 = vshll.u32 %v229, %v236
      %v239 = vshrl.u32 %v221, %v237
      %v240 = vor.u32 %v238, %v239
      %v241 = vsub.s32 4294967266, %v236
      %v242 = vadd.s32 %v241, 127
      %v243 = vshll.u32 %v242, 23
      %v244 = vor.u32 4788187, %v243
      %v245 = vand.u32 2147483647, %v244
      %v247 = vcvt.s32.f32 %v240
      %v248 = vmul.f32 %v247, %v245
      %v249 = vxor.u32 %v248, 2147483648
      %v250 = vsel %vm167, %v249, %v248
      %v251 = vsub.s32 4, %v227
      %v252 = vsel %vm167, %v251, %v227
      %v253 = vsel %vm166, %v149, %v250
      %v254 = vsel %vm166, 0, %v252
      %v255 = vcosq.f32.pop %v253
      %v256 = vsinq.f32.pop %v253
      %vm257 = vweird.f32 %v149
      %v258 = vadd.s32 %v254, 3
      %v259 = vand.u32 %v258, 3
      %vm260 = vcmp.lt.s32.totalorder %v259, 2
      %vm261 = vcmp.eq.s32.totalorder %v259, 0
      %v262 = vxor.u32 %v256, 2147483648
      %v263 = vsel %vm261, %v255, %v262
      %vm264 = vcmp.eq.s32.totalorder %v259, 2
      %v265 = vxor.u32 %v255, 2147483648
      %v266 = vsel %vm264, %v265, %v256
      %v267 = vsel %vm260, %v263, %v266
      %v268 = vsel %vm257, nan, %v267
      %v269 = vand.u32 2147483647, %v150
      %vm270 = vcmp.le.f32.partialorder %v269, 0.7853982
      %vm271 = vcmp.lt.s32.totalorder %v150, 0
      %v272 = vand.u32 %v150, 2139095040
      %v273 = vshrl.u32 %v272, 23
      %v274 = vsub.s32 %v273, 127
      %v275 = vand.u32 2147483647, %v150
      %v276 = vand.u32 %v275, 8388607
      %v277 = vor.u32 %v276, 8388608
      %v278 = vsub.s32 0, %v277
      %v279 = vadd.s32 %v274, 1
      %vm280 = vcmp.gt.s32.totalorder %v279, 0
      %v281 = vsel %vm280, %v279, 0
      %v282 = vshrl.u32 %v281, 5
      %v283 = vand.u32 %v281, 31
      %v284 = vsub.s32 32, %v283
      %v285 = vshrl.u32 683565275, %v284
      %v286 = vshll.u32 683565275, %v283
      %v287 = vshrl.u32 2475754826, %v284
      %v288 = vor.u32 %v286, %v287
      %v289 = vshll.u32 2475754826, %v283
      %v290 = vshrl.u32 2131351028, %v284
      %v291 = vor.u32 %v289, %v290
      %v292 = vshll.u32 2131351028, %v283
      %v293 = vshrl.u32 2102212464, %v284
      %v294 = vor.u32 %v292, %v293
      %v295 = vshll.u32 2102212464, %v283
      %v296 = vshrl.u32 920167782, %v284
      %v297 = vor.u32 %v295, %v296
      %v298 = vshll.u32 920167782, %v283
      %v299 = vshrl.u32 1326507024, %v284
      %v300 = vor.u32 %v298, %v299
      %vm301 = vcmp.lt.s32.totalorder %v282, 1
      %vm302 = vcmp.lt.s32.totalorder %v282, 2
      %vm303 = vcmp.lt.s32.totalorder %v282, 3
      %vm304 = vcmp.lt.s32.totalorder %v282, 4
      %v305 = vsel %vm301, %v285, %v288
      %v306 = vsel %vm304, %v294, 2102212464
      %v307 = vsel %vm303, %v291, %v306
      %v308 = vsel %vm302, %v305, %v307
      %v309 = vsel %vm301, %v288, %v291
      %v310 = vsel %vm304, %v297, 920167782
      %v311 = vsel %vm303, %v294, %v310
      %v312 = vsel %vm302, %v309, %v311
      %v313 = vsel %vm301, %v291, %v294
      %v314 = vsel %vm304, %v300, 1326507024
      %v315 = vsel %vm303, %v297, %v314
      %v316 = vsel %vm302, %v313, %v315
      %v317 = vshll.u32 %v277, 8
      %v318 = vmul.u32.u64.compose %v317, %v316
      %v319 = vextract.low.u32 %v318
      %v320 = vextract.high.u32 %v318
      %v321 = vmul.u32.u64.compose %v317, %v312
      %v322 = vextract.low.u32 %v321
      %v323 = vextract.high.u32 %v321
      %v324 = vmul.u32 %v317, %v308
      %v325 = vadd.s32 %v320, %v322
      %vm326 = vc.u32 %v320, %v322
      %v327 = vadd.s32 %v323, 1
      %v328 = vsel %vm326, %v327, %v323
      %v329 = vadd.s32 %v324, %v328
      %v330 = vadd.s32 %v329, 536870912
      %v331 = vshrl.u32 %v330, 30
      %v332 = vshll.u32 %v331, 30
      %v333 = vsub.s32 %v329, %v332
      %vm334 = vcmp.lt.s32.totalorder %v333, 0
      %v335 = vsub.s32 0, %v333
      %v336 = vsel %vm334, %v335, %v333
      %v337 = vclz %v336
      %v338 = vsub.s32 %v337, 2
      %vm339 = vcmp.gt.s32.totalorder 0, %v338
      %v340 = vsel %vm339, 0, %v338
      %v341 = vsub.s32 32, %v340
      %v342 = vshll.u32 %v333, %v340
      %v343 = vshrl.u32 %v325, %v341
      %v344 = vor.u32 %v342, %v343
      %v345 = vsub.s32 4294967266, %v340
      %v346 = vadd.s32 %v345, 127
      %v347 = vshll.u32 %v346, 23
      %v348 = vor.u32 4788187, %v347
      %v349 = vand.u32 2147483647, %v348
      %v351 = vcvt.s32.f32 %v344
      %v352 = vmul.f32 %v351, %v349
      %v353 = vxor.u32 %v352, 2147483648
      %v354 = vsel %vm271, %v353, %v352
      %v355 = vsub.s32 4, %v331
      %v356 = vsel %vm271, %v355, %v331
      %v357 = vsel %vm270, %v150, %v354
      %v358 = vsel %vm270, 0, %v356
      %v359 = vcosq.f32.pop %v357
      %v360 = vsinq.f32.pop %v357
      %vm361 = vweird.f32 %v150
      %v362 = vadd.s32 %v358, 3
      %v363 = vand.u32 %v362, 3
      %vm364 = vcmp.lt.s32.totalorder %v363, 2
      %vm365 = vcmp.eq.s32.totalorder %v363, 0
      %v366 = vxor.u32 %v360, 2147483648
      %v367 = vsel %vm365, %v359, %v366
      %vm368 = vcmp.eq.s32.totalorder %v363, 2
      %v369 = vxor.u32 %v359, 2147483648
      %v370 = vsel %vm368, %v369, %v360
      %v371 = vsel %vm364, %v367, %v370
      %v372 = vsel %vm361, nan, %v371
      %v373 = vand.u32 2147483647, %v151
      %vm374 = vcmp.le.f32.partialorder %v373, 0.7853982
      %vm375 = vcmp.lt.s32.totalorder %v151, 0
      %v376 = vand.u32 %v151, 2139095040
      %v377 = vshrl.u32 %v376, 23
      %v378 = vsub.s32 %v377, 127
      %v379 = vand.u32 2147483647, %v151
      %v380 = vand.u32 %v379, 8388607
      %v381 = vor.u32 %v380, 8388608
      %v382 = vsub.s32 0, %v381
      %v383 = vadd.s32 %v378, 1
      %vm384 = vcmp.gt.s32.totalorder %v383, 0
      %v385 = vsel %vm384, %v383, 0
      %v386 = vshrl.u32 %v385, 5
      %v387 = vand.u32 %v385, 31
      %v388 = vsub.s32 32, %v387
      %v389 = vshrl.u32 683565275, %v388
      %v390 = vshll.u32 683565275, %v387
      %v391 = vshrl.u32 2475754826, %v388
      %v392 = vor.u32 %v390, %v391
      %v393 = vshll.u32 2475754826, %v387
      %v394 = vshrl.u32 2131351028, %v388
      %v395 = vor.u32 %v393, %v394
      %v396 = vshll.u32 2131351028, %v387
      %v397 = vshrl.u32 2102212464, %v388
      %v398 = vor.u32 %v396, %v397
      %v399 = vshll.u32 2102212464, %v387
      %v400 = vshrl.u32 920167782, %v388
      %v401 = vor.u32 %v399, %v400
      %v402 = vshll.u32 920167782, %v387
      %v403 = vshrl.u32 1326507024, %v388
      %v404 = vor.u32 %v402, %v403
      %vm405 = vcmp.lt.s32.totalorder %v386, 1
      %vm406 = vcmp.lt.s32.totalorder %v386, 2
      %vm407 = vcmp.lt.s32.totalorder %v386, 3
      %vm408 = vcmp.lt.s32.totalorder %v386, 4
      %v409 = vsel %vm405, %v389, %v392
      %v410 = vsel %vm408, %v398, 2102212464
      %v411 = vsel %vm407, %v395, %v410
      %v412 = vsel %vm406, %v409, %v411
      %v413 = vsel %vm405, %v392, %v395
      %v414 = vsel %vm408, %v401, 920167782
      %v415 = vsel %vm407, %v398, %v414
      %v416 = vsel %vm406, %v413, %v415
      %v417 = vsel %vm405, %v395, %v398
      %v418 = vsel %vm408, %v404, 1326507024
      %v419 = vsel %vm407, %v401, %v418
      %v420 = vsel %vm406, %v417, %v419
      %v421 = vshll.u32 %v381, 8
      %v422 = vmul.u32.u64.compose %v421, %v420
      %v423 = vextract.low.u32 %v422
      %v424 = vextract.high.u32 %v422
      %v425 = vmul.u32.u64.compose %v421, %v416
      %v426 = vextract.low.u32 %v425
      %v427 = vextract.high.u32 %v425
      %v428 = vmul.u32 %v421, %v412
      %v429 = vadd.s32 %v424, %v426
      %vm430 = vc.u32 %v424, %v426
      %v431 = vadd.s32 %v427, 1
      %v432 = vsel %vm430, %v431, %v427
      %v433 = vadd.s32 %v428, %v432
      %v434 = vadd.s32 %v433, 536870912
      %v435 = vshrl.u32 %v434, 30
      %v436 = vshll.u32 %v435, 30
      %v437 = vsub.s32 %v433, %v436
      %vm438 = vcmp.lt.s32.totalorder %v437, 0
      %v439 = vsub.s32 0, %v437
      %v440 = vsel %vm438, %v439, %v437
      %v441 = vclz %v440
      %v442 = vsub.s32 %v441, 2
      %vm443 = vcmp.gt.s32.totalorder 0, %v442
      %v444 = vsel %vm443, 0, %v442
      %v445 = vsub.s32 32, %v444
      %v446 = vshll.u32 %v437, %v444
      %v447 = vshrl.u32 %v429, %v445
      %v448 = vor.u32 %v446, %v447
      %v449 = vsub.s32 4294967266, %v444
      %v450 = vadd.s32 %v449, 127
      %v451 = vshll.u32 %v450, 23
      %v452 = vor.u32 4788187, %v451
      %v453 = vand.u32 2147483647, %v452
      %v455 = vcvt.s32.f32 %v448
      %v456 = vmul.f32 %v455, %v453
      %v457 = vxor.u32 %v456, 2147483648
      %v458 = vsel %vm375, %v457, %v456
      %v459 = vsub.s32 4, %v435
      %v460 = vsel %vm375, %v459, %v435
      %v461 = vsel %vm374, %v151, %v458
      %v462 = vsel %vm374, 0, %v460
      %v463 = vcosq.f32.pop %v461
      %v464 = vsinq.f32.pop %v461
      %vm465 = vweird.f32 %v151
      %v466 = vadd.s32 %v462, 3
      %v467 = vand.u32 %v466, 3
      %vm468 = vcmp.lt.s32.totalorder %v467, 2
      %vm469 = vcmp.eq.s32.totalorder %v467, 0
      %v470 = vxor.u32 %v464, 2147483648
      %v471 = vsel %vm469, %v463, %v470
      %vm472 = vcmp.eq.s32.totalorder %v467, 2
      %v473 = vxor.u32 %v463, 2147483648
      %v474 = vsel %vm472, %v473, %v464
      %v475 = vsel %vm468, %v471, %v474
      %v476 = vsel %vm465, nan, %v475
      %v477 = vand.u32 2147483647, %v152
      %vm478 = vcmp.le.f32.partialorder %v477, 0.7853982
      %vm479 = vcmp.lt.s32.totalorder %v152, 0
      %v480 = vand.u32 %v152, 2139095040
      %v481 = vshrl.u32 %v480, 23
      %v482 = vsub.s32 %v481, 127
      %v483 = vand.u32 2147483647, %v152
      %v484 = vand.u32 %v483, 8388607
      %v485 = vor.u32 %v484, 8388608
      %v486 = vsub.s32 0, %v485
      %v487 = vadd.s32 %v482, 1
      %vm488 = vcmp.gt.s32.totalorder %v487, 0
      %v489 = vsel %vm488, %v487, 0
      %v490 = vshrl.u32 %v489, 5
      %v491 = vand.u32 %v489, 31
      %v492 = vsub.s32 32, %v491
      %v493 = vshrl.u32 683565275, %v492
      %v494 = vshll.u32 683565275, %v491
      %v495 = vshrl.u32 2475754826, %v492
      %v496 = vor.u32 %v494, %v495
      %v497 = vshll.u32 2475754826, %v491
      %v498 = vshrl.u32 2131351028, %v492
      %v499 = vor.u32 %v497, %v498
      %v500 = vshll.u32 2131351028, %v491
      %v501 = vshrl.u32 2102212464, %v492
      %v502 = vor.u32 %v500, %v501
      %v503 = vshll.u32 2102212464, %v491
      %v504 = vshrl.u32 920167782, %v492
      %v505 = vor.u32 %v503, %v504
      %v506 = vshll.u32 920167782, %v491
      %v507 = vshrl.u32 1326507024, %v492
      %v508 = vor.u32 %v506, %v507
      %vm509 = vcmp.lt.s32.totalorder %v490, 1
      %vm510 = vcmp.lt.s32.totalorder %v490, 2
      %vm511 = vcmp.lt.s32.totalorder %v490, 3
      %vm512 = vcmp.lt.s32.totalorder %v490, 4
      %v513 = vsel %vm509, %v493, %v496
      %v514 = vsel %vm512, %v502, 2102212464
      %v515 = vsel %vm511, %v499, %v514
      %v516 = vsel %vm510, %v513, %v515
      %v517 = vsel %vm509, %v496, %v499
      %v518 = vsel %vm512, %v505, 920167782
      %v519 = vsel %vm511, %v502, %v518
      %v520 = vsel %vm510, %v517, %v519
      %v521 = vsel %vm509, %v499, %v502
      %v522 = vsel %vm512, %v508, 1326507024
      %v523 = vsel %vm511, %v505, %v522
      %v524 = vsel %vm510, %v521, %v523
      %v525 = vshll.u32 %v485, 8
      %v526 = vmul.u32.u64.compose %v525, %v524
      %v527 = vextract.low.u32 %v526
      %v528 = vextract.high.u32 %v526
      %v529 = vmul.u32.u64.compose %v525, %v520
      %v530 = vextract.low.u32 %v529
      %v531 = vextract.high.u32 %v529
      %v532 = vmul.u32 %v525, %v516
      %v533 = vadd.s32 %v528, %v530
      %vm534 = vc.u32 %v528, %v530
      %v535 = vadd.s32 %v531, 1
      %v536 = vsel %vm534, %v535, %v531
      %v537 = vadd.s32 %v532, %v536
      %v538 = vadd.s32 %v537, 536870912
      %v539 = vshrl.u32 %v538, 30
      %v540 = vshll.u32 %v539, 30
      %v541 = vsub.s32 %v537, %v540
      %vm542 = vcmp.lt.s32.totalorder %v541, 0
      %v543 = vsub.s32 0, %v541
      %v544 = vsel %vm542, %v543, %v541
      %v545 = vclz %v544
      %v546 = vsub.s32 %v545, 2
      %vm547 = vcmp.gt.s32.totalorder 0, %v546
      %v548 = vsel %vm547, 0, %v546
      %v549 = vsub.s32 32, %v548
      %v550 = vshll.u32 %v541, %v548
      %v551 = vshrl.u32 %v533, %v549
      %v552 = vor.u32 %v550, %v551
      %v553 = vsub.s32 4294967266, %v548
      %v554 = vadd.s32 %v553, 127
      %v555 = vshll.u32 %v554, 23
      %v556 = vor.u32 4788187, %v555
      %v557 = vand.u32 2147483647, %v556
      %v559 = vcvt.s32.f32 %v552
      %v560 = vmul.f32 %v559, %v557
      %v561 = vxor.u32 %v560, 2147483648
      %v562 = vsel %vm479, %v561, %v560
      %v563 = vsub.s32 4, %v539
      %v564 = vsel %vm479, %v563, %v539
      %v565 = vsel %vm478, %v152, %v562
      %v566 = vsel %vm478, 0, %v564
      %v567 = vcosq.f32.pop %v565
      %v568 = vsinq.f32.pop %v565
      %vm569 = vweird.f32 %v152
      %v570 = vadd.s32 %v566, 3
      %v571 = vand.u32 %v570, 3
      %vm572 = vcmp.lt.s32.totalorder %v571, 2
      %vm573 = vcmp.eq.s32.totalorder %v571, 0
      %v574 = vxor.u32 %v568, 2147483648
      %v575 = vsel %vm573, %v567, %v574
      %vm576 = vcmp.eq.s32.totalorder %v571, 2
      %v577 = vxor.u32 %v567, 2147483648
      %v578 = vsel %vm576, %v577, %v568
      %v579 = vsel %vm572, %v575, %v578
      %v580 = vsel %vm569, nan, %v579
      %v581 = vand.u32 2147483647, %v153
      %vm582 = vcmp.le.f32.partialorder %v581, 0.7853982
      %vm583 = vcmp.lt.s32.totalorder %v153, 0
      %v584 = vand.u32 %v153, 2139095040
      %v585 = vshrl.u32 %v584, 23
      %v586 = vsub.s32 %v585, 127
      %v587 = vand.u32 2147483647, %v153
      %v588 = vand.u32 %v587, 8388607
      %v589 = vor.u32 %v588, 8388608
      %v590 = vsub.s32 0, %v589
      %v591 = vadd.s32 %v586, 1
      %vm592 = vcmp.gt.s32.totalorder %v591, 0
      %v593 = vsel %vm592, %v591, 0
      %v594 = vshrl.u32 %v593, 5
      %v595 = vand.u32 %v593, 31
      %v596 = vsub.s32 32, %v595
      %v597 = vshrl.u32 683565275, %v596
      %v598 = vshll.u32 683565275, %v595
      %v599 = vshrl.u32 2475754826, %v596
      %v600 = vor.u32 %v598, %v599
      %v601 = vshll.u32 2475754826, %v595
      %v602 = vshrl.u32 2131351028, %v596
      %v603 = vor.u32 %v601, %v602
      %v604 = vshll.u32 2131351028, %v595
      %v605 = vshrl.u32 2102212464, %v596
      %v606 = vor.u32 %v604, %v605
      %v607 = vshll.u32 2102212464, %v595
      %v608 = vshrl.u32 920167782, %v596
      %v609 = vor.u32 %v607, %v608
      %v610 = vshll.u32 920167782, %v595
      %v611 = vshrl.u32 1326507024, %v596
      %v612 = vor.u32 %v610, %v611
      %vm613 = vcmp.lt.s32.totalorder %v594, 1
      %vm614 = vcmp.lt.s32.totalorder %v594, 2
      %vm615 = vcmp.lt.s32.totalorder %v594, 3
      %vm616 = vcmp.lt.s32.totalorder %v594, 4
      %v617 = vsel %vm613, %v597, %v600
      %v618 = vsel %vm616, %v606, 2102212464
      %v619 = vsel %vm615, %v603, %v618
      %v620 = vsel %vm614, %v617, %v619
      %v621 = vsel %vm613, %v600, %v603
      %v622 = vsel %vm616, %v609, 920167782
      %v623 = vsel %vm615, %v606, %v622
      %v624 = vsel %vm614, %v621, %v623
      %v625 = vsel %vm613, %v603, %v606
      %v626 = vsel %vm616, %v612, 1326507024
      %v627 = vsel %vm615, %v609, %v626
      %v628 = vsel %vm614, %v625, %v627
      %v629 = vshll.u32 %v589, 8
      %v630 = vmul.u32.u64.compose %v629, %v628
      %v631 = vextract.low.u32 %v630
      %v632 = vextract.high.u32 %v630
      %v633 = vmul.u32.u64.compose %v629, %v624
      %v634 = vextract.low.u32 %v633
      %v635 = vextract.high.u32 %v633
      %v636 = vmul.u32 %v629, %v620
      %v637 = vadd.s32 %v632, %v634
      %vm638 = vc.u32 %v632, %v634
      %v639 = vadd.s32 %v635, 1
      %v640 = vsel %vm638, %v639, %v635
      %v641 = vadd.s32 %v636, %v640
      %v642 = vadd.s32 %v641, 536870912
      %v643 = vshrl.u32 %v642, 30
      %v644 = vshll.u32 %v643, 30
      %v645 = vsub.s32 %v641, %v644
      %vm646 = vcmp.lt.s32.totalorder %v645, 0
      %v647 = vsub.s32 0, %v645
      %v648 = vsel %vm646, %v647, %v645
      %v649 = vclz %v648
      %v650 = vsub.s32 %v649, 2
      %vm651 = vcmp.gt.s32.totalorder 0, %v650
      %v652 = vsel %vm651, 0, %v650
      %v653 = vsub.s32 32, %v652
      %v654 = vshll.u32 %v645, %v652
      %v655 = vshrl.u32 %v637, %v653
      %v656 = vor.u32 %v654, %v655
      %v657 = vsub.s32 4294967266, %v652
      %v658 = vadd.s32 %v657, 127
      %v659 = vshll.u32 %v658, 23
      %v660 = vor.u32 4788187, %v659
      %v661 = vand.u32 2147483647, %v660
      %v663 = vcvt.s32.f32 %v656
      %v664 = vmul.f32 %v663, %v661
      %v665 = vxor.u32 %v664, 2147483648
      %v666 = vsel %vm583, %v665, %v664
      %v667 = vsub.s32 4, %v643
      %v668 = vsel %vm583, %v667, %v643
      %v669 = vsel %vm582, %v153, %v666
      %v670 = vsel %vm582, 0, %v668
      %v671 = vcosq.f32.pop %v669
      %v672 = vsinq.f32.pop %v669
      %vm673 = vweird.f32 %v153
      %v674 = vadd.s32 %v670, 3
      %v675 = vand.u32 %v674, 3
      %vm676 = vcmp.lt.s32.totalorder %v675, 2
      %vm677 = vcmp.eq.s32.totalorder %v675, 0
      %v678 = vxor.u32 %v672, 2147483648
      %v679 = vsel %vm677, %v671, %v678
      %vm680 = vcmp.eq.s32.totalorder %v675, 2
      %v681 = vxor.u32 %v671, 2147483648
      %v682 = vsel %vm680, %v681, %v672
      %v683 = vsel %vm676, %v679, %v682
      %v684 = vsel %vm673, nan, %v683
      %v685 = vand.u32 2147483647, %v154
      %vm686 = vcmp.le.f32.partialorder %v685, 0.7853982
      %vm687 = vcmp.lt.s32.totalorder %v154, 0
      %v688 = vand.u32 %v154, 2139095040
      %v689 = vshrl.u32 %v688, 23
      %v690 = vsub.s32 %v689, 127
      %v691 = vand.u32 2147483647, %v154
      %v692 = vand.u32 %v691, 8388607
      %v693 = vor.u32 %v692, 8388608
      %v694 = vsub.s32 0, %v693
      %v695 = vadd.s32 %v690, 1
      %vm696 = vcmp.gt.s32.totalorder %v695, 0
      %v697 = vsel %vm696, %v695, 0
      %v698 = vshrl.u32 %v697, 5
      %v699 = vand.u32 %v697, 31
      %v700 = vsub.s32 32, %v699
      %v701 = vshrl.u32 683565275, %v700
      %v702 = vshll.u32 683565275, %v699
      %v703 = vshrl.u32 2475754826, %v700
      %v704 = vor.u32 %v702, %v703
      %v705 = vshll.u32 2475754826, %v699
      %v706 = vshrl.u32 2131351028, %v700
      %v707 = vor.u32 %v705, %v706
      %v708 = vshll.u32 2131351028, %v699
      %v709 = vshrl.u32 2102212464, %v700
      %v710 = vor.u32 %v708, %v709
      %v711 = vshll.u32 2102212464, %v699
      %v712 = vshrl.u32 920167782, %v700
      %v713 = vor.u32 %v711, %v712
      %v714 = vshll.u32 920167782, %v699
      %v715 = vshrl.u32 1326507024, %v700
      %v716 = vor.u32 %v714, %v715
      %vm717 = vcmp.lt.s32.totalorder %v698, 1
      %vm718 = vcmp.lt.s32.totalorder %v698, 2
      %vm719 = vcmp.lt.s32.totalorder %v698, 3
      %vm720 = vcmp.lt.s32.totalorder %v698, 4
      %v721 = vsel %vm717, %v701, %v704
      %v722 = vsel %vm720, %v710, 2102212464
      %v723 = vsel %vm719, %v707, %v722
      %v724 = vsel %vm718, %v721, %v723
      %v725 = vsel %vm717, %v704, %v707
      %v726 = vsel %vm720, %v713, 920167782
      %v727 = vsel %vm719, %v710, %v726
      %v728 = vsel %vm718, %v725, %v727
      %v729 = vsel %vm717, %v707, %v710
      %v730 = vsel %vm720, %v716, 1326507024
      %v731 = vsel %vm719, %v713, %v730
      %v732 = vsel %vm718, %v729, %v731
      %v733 = vshll.u32 %v693, 8
      %v734 = vmul.u32.u64.compose %v733, %v732
      %v735 = vextract.low.u32 %v734
      %v736 = vextract.high.u32 %v734
      %v737 = vmul.u32.u64.compose %v733, %v728
      %v738 = vextract.low.u32 %v737
      %v739 = vextract.high.u32 %v737
      %v740 = vmul.u32 %v733, %v724
      %v741 = vadd.s32 %v736, %v738
      %vm742 = vc.u32 %v736, %v738
      %v743 = vadd.s32 %v739, 1
      %v744 = vsel %vm742, %v743, %v739
      %v745 = vadd.s32 %v740, %v744
      %v746 = vadd.s32 %v745, 536870912
      %v747 = vshrl.u32 %v746, 30
      %v748 = vshll.u32 %v747, 30
      %v749 = vsub.s32 %v745, %v748
      %vm750 = vcmp.lt.s32.totalorder %v749, 0
      %v751 = vsub.s32 0, %v749
      %v752 = vsel %vm750, %v751, %v749
      %v753 = vclz %v752
      %v754 = vsub.s32 %v753, 2
      %vm755 = vcmp.gt.s32.totalorder 0, %v754
      %v756 = vsel %vm755, 0, %v754
      %v757 = vsub.s32 32, %v756
      %v758 = vshll.u32 %v749, %v756
      %v759 = vshrl.u32 %v741, %v757
      %v760 = vor.u32 %v758, %v759
      %v761 = vsub.s32 4294967266, %v756
      %v762 = vadd.s32 %v761, 127
      %v763 = vshll.u32 %v762, 23
      %v764 = vor.u32 4788187, %v763
      %v765 = vand.u32 2147483647, %v764
      %v767 = vcvt.s32.f32 %v760
      %v768 = vmul.f32 %v767, %v765
      %v769 = vxor.u32 %v768, 2147483648
      %v770 = vsel %vm687, %v769, %v768
      %v771 = vsub.s32 4, %v747
      %v772 = vsel %vm687, %v771, %v747
      %v773 = vsel %vm686, %v154, %v770
      %v774 = vsel %vm686, 0, %v772
      %v775 = vcosq.f32.pop %v773
      %v776 = vsinq.f32.pop %v773
      %vm777 = vweird.f32 %v154
      %v778 = vadd.s32 %v774, 3
      %v779 = vand.u32 %v778, 3
      %vm780 = vcmp.lt.s32.totalorder %v779, 2
      %vm781 = vcmp.eq.s32.totalorder %v779, 0
      %v782 = vxor.u32 %v776, 2147483648
      %v783 = vsel %vm781, %v775, %v782
      %vm784 = vcmp.eq.s32.totalorder %v779, 2
      %v785 = vxor.u32 %v775, 2147483648
      %v786 = vsel %vm784, %v785, %v776
      %v787 = vsel %vm780, %v783, %v786
      %v788 = vsel %vm777, nan, %v787
      %v789 = vand.u32 2147483647, %v155
      %vm790 = vcmp.le.f32.partialorder %v789, 0.7853982
      %vm791 = vcmp.lt.s32.totalorder %v155, 0
      %v792 = vand.u32 %v155, 2139095040
      %v793 = vshrl.u32 %v792, 23
      %v794 = vsub.s32 %v793, 127
      %v795 = vand.u32 2147483647, %v155
      %v796 = vand.u32 %v795, 8388607
      %v797 = vor.u32 %v796, 8388608
      %v798 = vsub.s32 0, %v797
      %v799 = vadd.s32 %v794, 1
      %vm800 = vcmp.gt.s32.totalorder %v799, 0
      %v801 = vsel %vm800, %v799, 0
      %v802 = vshrl.u32 %v801, 5
      %v803 = vand.u32 %v801, 31
      %v804 = vsub.s32 32, %v803
      %v805 = vshrl.u32 683565275, %v804
      %v806 = vshll.u32 683565275, %v803
      %v807 = vshrl.u32 2475754826, %v804
      %v808 = vor.u32 %v806, %v807
      %v809 = vshll.u32 2475754826, %v803
      %v810 = vshrl.u32 2131351028, %v804
      %v811 = vor.u32 %v809, %v810
      %v812 = vshll.u32 2131351028, %v803
      %v813 = vshrl.u32 2102212464, %v804
      %v814 = vor.u32 %v812, %v813
      %v815 = vshll.u32 2102212464, %v803
      %v816 = vshrl.u32 920167782, %v804
      %v817 = vor.u32 %v815, %v816
      %v818 = vshll.u32 920167782, %v803
      %v819 = vshrl.u32 1326507024, %v804
      %v820 = vor.u32 %v818, %v819
      %vm821 = vcmp.lt.s32.totalorder %v802, 1
      %vm822 = vcmp.lt.s32.totalorder %v802, 2
      %vm823 = vcmp.lt.s32.totalorder %v802, 3
      %vm824 = vcmp.lt.s32.totalorder %v802, 4
      %v825 = vsel %vm821, %v805, %v808
      %v826 = vsel %vm824, %v814, 2102212464
      %v827 = vsel %vm823, %v811, %v826
      %v828 = vsel %vm822, %v825, %v827
      %v829 = vsel %vm821, %v808, %v811
      %v830 = vsel %vm824, %v817, 920167782
      %v831 = vsel %vm823, %v814, %v830
      %v832 = vsel %vm822, %v829, %v831
      %v833 = vsel %vm821, %v811, %v814
      %v834 = vsel %vm824, %v820, 1326507024
      %v835 = vsel %vm823, %v817, %v834
      %v836 = vsel %vm822, %v833, %v835
      %v837 = vshll.u32 %v797, 8
      %v838 = vmul.u32.u64.compose %v837, %v836
      %v839 = vextract.low.u32 %v838
      %v840 = vextract.high.u32 %v838
      %v841 = vmul.u32.u64.compose %v837, %v832
      %v842 = vextract.low.u32 %v841
      %v843 = vextract.high.u32 %v841
      %v844 = vmul.u32 %v837, %v828
      %v845 = vadd.s32 %v840, %v842
      %vm846 = vc.u32 %v840, %v842
      %v847 = vadd.s32 %v843, 1
      %v848 = vsel %vm846, %v847, %v843
      %v849 = vadd.s32 %v844, %v848
      %v850 = vadd.s32 %v849, 536870912
      %v851 = vshrl.u32 %v850, 30
      %v852 = vshll.u32 %v851, 30
      %v853 = vsub.s32 %v849, %v852
      %vm854 = vcmp.lt.s32.totalorder %v853, 0
      %v855 = vsub.s32 0, %v853
      %v856 = vsel %vm854, %v855, %v853
      %v857 = vclz %v856
      %v858 = vsub.s32 %v857, 2
      %vm859 = vcmp.gt.s32.totalorder 0, %v858
      %v860 = vsel %vm859, 0, %v858
      %v861 = vsub.s32 32, %v860
      %v862 = vshll.u32 %v853, %v860
      %v863 = vshrl.u32 %v845, %v861
      %v864 = vor.u32 %v862, %v863
      %v865 = vsub.s32 4294967266, %v860
      %v866 = vadd.s32 %v865, 127
      %v867 = vshll.u32 %v866, 23
      %v868 = vor.u32 4788187, %v867
      %v869 = vand.u32 2147483647, %v868
      %v871 = vcvt.s32.f32 %v864
      %v872 = vmul.f32 %v871, %v869
      %v873 = vxor.u32 %v872, 2147483648
      %v874 = vsel %vm791, %v873, %v872
      %v875 = vsub.s32 4, %v851
      %v876 = vsel %vm791, %v875, %v851
      %v877 = vsel %vm790, %v155, %v874
      %v878 = vsel %vm790, 0, %v876
      %v879 = vcosq.f32.pop %v877
      %v880 = vsinq.f32.pop %v877
      %vm881 = vweird.f32 %v155
      %v882 = vadd.s32 %v878, 3
      %v883 = vand.u32 %v882, 3
      %vm884 = vcmp.lt.s32.totalorder %v883, 2
      %vm885 = vcmp.eq.s32.totalorder %v883, 0
      %v886 = vxor.u32 %v880, 2147483648
      %v887 = vsel %vm885, %v879, %v886
      %vm888 = vcmp.eq.s32.totalorder %v883, 2
      %v889 = vxor.u32 %v879, 2147483648
      %v890 = vsel %vm888, %v889, %v880
      %v891 = vsel %vm884, %v887, %v890
      %v892 = vsel %vm881, nan, %v891
      %v893 = vand.u32 2147483647, %v156
      %vm894 = vcmp.le.f32.partialorder %v893, 0.7853982
      %vm895 = vcmp.lt.s32.totalorder %v156, 0
      %v896 = vand.u32 %v156, 2139095040
      %v897 = vshrl.u32 %v896, 23
      %v898 = vsub.s32 %v897, 127
      %v899 = vand.u32 2147483647, %v156
      %v900 = vand.u32 %v899, 8388607
      %v901 = vor.u32 %v900, 8388608
      %v902 = vsub.s32 0, %v901
      %v903 = vadd.s32 %v898, 1
      %vm904 = vcmp.gt.s32.totalorder %v903, 0
      %v905 = vsel %vm904, %v903, 0
      %v906 = vshrl.u32 %v905, 5
      %v907 = vand.u32 %v905, 31
      %v908 = vsub.s32 32, %v907
      %v909 = vshrl.u32 683565275, %v908
      %v910 = vshll.u32 683565275, %v907
      %v911 = vshrl.u32 2475754826, %v908
      %v912 = vor.u32 %v910, %v911
      %v913 = vshll.u32 2475754826, %v907
      %v914 = vshrl.u32 2131351028, %v908
      %v915 = vor.u32 %v913, %v914
      %v916 = vshll.u32 2131351028, %v907
      %v917 = vshrl.u32 2102212464, %v908
      %v918 = vor.u32 %v916, %v917
      %v919 = vshll.u32 2102212464, %v907
      %v920 = vshrl.u32 920167782, %v908
      %v921 = vor.u32 %v919, %v920
      %v922 = vshll.u32 920167782, %v907
      %v923 = vshrl.u32 1326507024, %v908
      %v924 = vor.u32 %v922, %v923
      %vm925 = vcmp.lt.s32.totalorder %v906, 1
      %vm926 = vcmp.lt.s32.totalorder %v906, 2
      %vm927 = vcmp.lt.s32.totalorder %v906, 3
      %vm928 = vcmp.lt.s32.totalorder %v906, 4
      %v929 = vsel %vm925, %v909, %v912
      %v930 = vsel %vm928, %v918, 2102212464
      %v931 = vsel %vm927, %v915, %v930
      %v932 = vsel %vm926, %v929, %v931
      %v933 = vsel %vm925, %v912, %v915
      %v934 = vsel %vm928, %v921, 920167782
      %v935 = vsel %vm927, %v918, %v934
      %v936 = vsel %vm926, %v933, %v935
      %v937 = vsel %vm925, %v915, %v918
      %v938 = vsel %vm928, %v924, 1326507024
      %v939 = vsel %vm927, %v921, %v938
      %v940 = vsel %vm926, %v937, %v939
      %v941 = vshll.u32 %v901, 8
      %v942 = vmul.u32.u64.compose %v941, %v940
      %v943 = vextract.low.u32 %v942
      %v944 = vextract.high.u32 %v942
      %v945 = vmul.u32.u64.compose %v941, %v936
      %v946 = vextract.low.u32 %v945
      %v947 = vextract.high.u32 %v945
      %v948 = vmul.u32 %v941, %v932
      %v949 = vadd.s32 %v944, %v946
      %vm950 = vc.u32 %v944, %v946
      %v951 = vadd.s32 %v947, 1
      %v952 = vsel %vm950, %v951, %v947
      %v953 = vadd.s32 %v948, %v952
      %v954 = vadd.s32 %v953, 536870912
      %v955 = vshrl.u32 %v954, 30
      %v956 = vshll.u32 %v955, 30
      %v957 = vsub.s32 %v953, %v956
      %vm958 = vcmp.lt.s32.totalorder %v957, 0
      %v959 = vsub.s32 0, %v957
      %v960 = vsel %vm958, %v959, %v957
      %v961 = vclz %v960
      %v962 = vsub.s32 %v961, 2
      %vm963 = vcmp.gt.s32.totalorder 0, %v962
      %v964 = vsel %vm963, 0, %v962
      %v965 = vsub.s32 32, %v964
      %v966 = vshll.u32 %v957, %v964
      %v967 = vshrl.u32 %v949, %v965
      %v968 = vor.u32 %v966, %v967
      %v969 = vsub.s32 4294967266, %v964
      %v970 = vadd.s32 %v969, 127
      %v971 = vshll.u32 %v970, 23
      %v972 = vor.u32 4788187, %v971
      %v973 = vand.u32 2147483647, %v972
      %v975 = vcvt.s32.f32 %v968
      %v976 = vmul.f32 %v975, %v973
      %v977 = vxor.u32 %v976, 2147483648
      %v978 = vsel %vm895, %v977, %v976
      %v979 = vsub.s32 4, %v955
      %v980 = vsel %vm895, %v979, %v955
      %v981 = vsel %vm894, %v156, %v978
      %v982 = vsel %vm894, 0, %v980
      %v983 = vcosq.f32.pop %v981
      %v984 = vsinq.f32.pop %v981
      %vm985 = vweird.f32 %v156
      %v986 = vadd.s32 %v982, 3
      %v987 = vand.u32 %v986, 3
      %vm988 = vcmp.lt.s32.totalorder %v987, 2
      %vm989 = vcmp.eq.s32.totalorder %v987, 0
      %v990 = vxor.u32 %v984, 2147483648
      %v991 = vsel %vm989, %v983, %v990
      %vm992 = vcmp.eq.s32.totalorder %v987, 2
      %v993 = vxor.u32 %v983, 2147483648
      %v994 = vsel %vm992, %v993, %v984
      %v995 = vsel %vm988, %v991, %v994
      %v996 = vsel %vm985, nan, %v995
      %v997 = vand.u32 2147483647, %v157
      %vm998 = vcmp.le.f32.partialorder %v997, 0.7853982
      %vm999 = vcmp.lt.s32.totalorder %v157, 0
      %v1000 = vand.u32 %v157, 2139095040
      %v1001 = vshrl.u32 %v1000, 23
      %v1002 = vsub.s32 %v1001, 127
      %v1003 = vand.u32 2147483647, %v157
      %v1004 = vand.u32 %v1003, 8388607
      %v1005 = vor.u32 %v1004, 8388608
      %v1006 = vsub.s32 0, %v1005
      %v1007 = vadd.s32 %v1002, 1
      %vm1008 = vcmp.gt.s32.totalorder %v1007, 0
      %v1009 = vsel %vm1008, %v1007, 0
      %v1010 = vshrl.u32 %v1009, 5
      %v1011 = vand.u32 %v1009, 31
      %v1012 = vsub.s32 32, %v1011
      %v1013 = vshrl.u32 683565275, %v1012
      %v1014 = vshll.u32 683565275, %v1011
      %v1015 = vshrl.u32 2475754826, %v1012
      %v1016 = vor.u32 %v1014, %v1015
      %v1017 = vshll.u32 2475754826, %v1011
      %v1018 = vshrl.u32 2131351028, %v1012
      %v1019 = vor.u32 %v1017, %v1018
      %v1020 = vshll.u32 2131351028, %v1011
      %v1021 = vshrl.u32 2102212464, %v1012
      %v1022 = vor.u32 %v1020, %v1021
      %v1023 = vshll.u32 2102212464, %v1011
      %v1024 = vshrl.u32 920167782, %v1012
      %v1025 = vor.u32 %v1023, %v1024
      %v1026 = vshll.u32 920167782, %v1011
      %v1027 = vshrl.u32 1326507024, %v1012
      %v1028 = vor.u32 %v1026, %v1027
      %vm1029 = vcmp.lt.s32.totalorder %v1010, 1
      %vm1030 = vcmp.lt.s32.totalorder %v1010, 2
      %vm1031 = vcmp.lt.s32.totalorder %v1010, 3
      %vm1032 = vcmp.lt.s32.totalorder %v1010, 4
      %v1033 = vsel %vm1029, %v1013, %v1016
      %v1034 = vsel %vm1032, %v1022, 2102212464
      %v1035 = vsel %vm1031, %v1019, %v1034
      %v1036 = vsel %vm1030, %v1033, %v1035
      %v1037 = vsel %vm1029, %v1016, %v1019
      %v1038 = vsel %vm1032, %v1025, 920167782
      %v1039 = vsel %vm1031, %v1022, %v1038
      %v1040 = vsel %vm1030, %v1037, %v1039
      %v1041 = vsel %vm1029, %v1019, %v1022
      %v1042 = vsel %vm1032, %v1028, 1326507024
      %v1043 = vsel %vm1031, %v1025, %v1042
      %v1044 = vsel %vm1030, %v1041, %v1043
      %v1045 = vshll.u32 %v1005, 8
      %v1046 = vmul.u32.u64.compose %v1045, %v1044
      %v1047 = vextract.low.u32 %v1046
      %v1048 = vextract.high.u32 %v1046
      %v1049 = vmul.u32.u64.compose %v1045, %v1040
      %v1050 = vextract.low.u32 %v1049
      %v1051 = vextract.high.u32 %v1049
      %v1052 = vmul.u32 %v1045, %v1036
      %v1053 = vadd.s32 %v1048, %v1050
      %vm1054 = vc.u32 %v1048, %v1050
      %v1055 = vadd.s32 %v1051, 1
      %v1056 = vsel %vm1054, %v1055, %v1051
      %v1057 = vadd.s32 %v1052, %v1056
      %v1058 = vadd.s32 %v1057, 536870912
      %v1059 = vshrl.u32 %v1058, 30
      %v1060 = vshll.u32 %v1059, 30
      %v1061 = vsub.s32 %v1057, %v1060
      %vm1062 = vcmp.lt.s32.totalorder %v1061, 0
      %v1063 = vsub.s32 0, %v1061
      %v1064 = vsel %vm1062, %v1063, %v1061
      %v1065 = vclz %v1064
      %v1066 = vsub.s32 %v1065, 2
      %vm1067 = vcmp.gt.s32.totalorder 0, %v1066
      %v1068 = vsel %vm1067, 0, %v1066
      %v1069 = vsub.s32 32, %v1068
      %v1070 = vshll.u32 %v1061, %v1068
      %v1071 = vshrl.u32 %v1053, %v1069
      %v1072 = vor.u32 %v1070, %v1071
      %v1073 = vsub.s32 4294967266, %v1068
      %v1074 = vadd.s32 %v1073, 127
      %v1075 = vshll.u32 %v1074, 23
      %v1076 = vor.u32 4788187, %v1075
      %v1077 = vand.u32 2147483647, %v1076
      %v1079 = vcvt.s32.f32 %v1072
      %v1080 = vmul.f32 %v1079, %v1077
      %v1081 = vxor.u32 %v1080, 2147483648
      %v1082 = vsel %vm999, %v1081, %v1080
      %v1083 = vsub.s32 4, %v1059
      %v1084 = vsel %vm999, %v1083, %v1059
      %v1085 = vsel %vm998, %v157, %v1082
      %v1086 = vsel %vm998, 0, %v1084
      %v1087 = vcosq.f32.pop %v1085
      %v1088 = vsinq.f32.pop %v1085
      %vm1089 = vweird.f32 %v157
      %v1090 = vadd.s32 %v1086, 3
      %v1091 = vand.u32 %v1090, 3
      %vm1092 = vcmp.lt.s32.totalorder %v1091, 2
      %vm1093 = vcmp.eq.s32.totalorder %v1091, 0
      %v1094 = vxor.u32 %v1088, 2147483648
      %v1095 = vsel %vm1093, %v1087, %v1094
      %vm1096 = vcmp.eq.s32.totalorder %v1091, 2
      %v1097 = vxor.u32 %v1087, 2147483648
      %v1098 = vsel %vm1096, %v1097, %v1088
      %v1099 = vsel %vm1092, %v1095, %v1098
      %v1100 = vsel %vm1089, nan, %v1099
      %v1101 = vand.u32 2147483647, %v158
      %vm1102 = vcmp.le.f32.partialorder %v1101, 0.7853982
      %vm1103 = vcmp.lt.s32.totalorder %v158, 0
      %v1104 = vand.u32 %v158, 2139095040
      %v1105 = vshrl.u32 %v1104, 23
      %v1106 = vsub.s32 %v1105, 127
      %v1107 = vand.u32 2147483647, %v158
      %v1108 = vand.u32 %v1107, 8388607
      %v1109 = vor.u32 %v1108, 8388608
      %v1110 = vsub.s32 0, %v1109
      %v1111 = vadd.s32 %v1106, 1
      %vm1112 = vcmp.gt.s32.totalorder %v1111, 0
      %v1113 = vsel %vm1112, %v1111, 0
      %v1114 = vshrl.u32 %v1113, 5
      %v1115 = vand.u32 %v1113, 31
      %v1116 = vsub.s32 32, %v1115
      %v1117 = vshrl.u32 683565275, %v1116
      %v1118 = vshll.u32 683565275, %v1115
      %v1119 = vshrl.u32 2475754826, %v1116
      %v1120 = vor.u32 %v1118, %v1119
      %v1121 = vshll.u32 2475754826, %v1115
      %v1122 = vshrl.u32 2131351028, %v1116
      %v1123 = vor.u32 %v1121, %v1122
      %v1124 = vshll.u32 2131351028, %v1115
      %v1125 = vshrl.u32 2102212464, %v1116
      %v1126 = vor.u32 %v1124, %v1125
      %v1127 = vshll.u32 2102212464, %v1115
      %v1128 = vshrl.u32 920167782, %v1116
      %v1129 = vor.u32 %v1127, %v1128
      %v1130 = vshll.u32 920167782, %v1115
      %v1131 = vshrl.u32 1326507024, %v1116
      %v1132 = vor.u32 %v1130, %v1131
      %vm1133 = vcmp.lt.s32.totalorder %v1114, 1
      %vm1134 = vcmp.lt.s32.totalorder %v1114, 2
      %vm1135 = vcmp.lt.s32.totalorder %v1114, 3
      %vm1136 = vcmp.lt.s32.totalorder %v1114, 4
      %v1137 = vsel %vm1133, %v1117, %v1120
      %v1138 = vsel %vm1136, %v1126, 2102212464
      %v1139 = vsel %vm1135, %v1123, %v1138
      %v1140 = vsel %vm1134, %v1137, %v1139
      %v1141 = vsel %vm1133, %v1120, %v1123
      %v1142 = vsel %vm1136, %v1129, 920167782
      %v1143 = vsel %vm1135, %v1126, %v1142
      %v1144 = vsel %vm1134, %v1141, %v1143
      %v1145 = vsel %vm1133, %v1123, %v1126
      %v1146 = vsel %vm1136, %v1132, 1326507024
      %v1147 = vsel %vm1135, %v1129, %v1146
      %v1148 = vsel %vm1134, %v1145, %v1147
      %v1149 = vshll.u32 %v1109, 8
      %v1150 = vmul.u32.u64.compose %v1149, %v1148
      %v1151 = vextract.low.u32 %v1150
      %v1152 = vextract.high.u32 %v1150
      %v1153 = vmul.u32.u64.compose %v1149, %v1144
      %v1154 = vextract.low.u32 %v1153
      %v1155 = vextract.high.u32 %v1153
      %v1156 = vmul.u32 %v1149, %v1140
      %v1157 = vadd.s32 %v1152, %v1154
      %vm1158 = vc.u32 %v1152, %v1154
      %v1159 = vadd.s32 %v1155, 1
      %v1160 = vsel %vm1158, %v1159, %v1155
      %v1161 = vadd.s32 %v1156, %v1160
      %v1162 = vadd.s32 %v1161, 536870912
      %v1163 = vshrl.u32 %v1162, 30
      %v1164 = vshll.u32 %v1163, 30
      %v1165 = vsub.s32 %v1161, %v1164
      %vm1166 = vcmp.lt.s32.totalorder %v1165, 0
      %v1167 = vsub.s32 0, %v1165
      %v1168 = vsel %vm1166, %v1167, %v1165
      %v1169 = vclz %v1168
      %v1170 = vsub.s32 %v1169, 2
      %vm1171 = vcmp.gt.s32.totalorder 0, %v1170
      %v1172 = vsel %vm1171, 0, %v1170
      %v1173 = vsub.s32 32, %v1172
      %v1174 = vshll.u32 %v1165, %v1172
      %v1175 = vshrl.u32 %v1157, %v1173
      %v1176 = vor.u32 %v1174, %v1175
      %v1177 = vsub.s32 4294967266, %v1172
      %v1178 = vadd.s32 %v1177, 127
      %v1179 = vshll.u32 %v1178, 23
      %v1180 = vor.u32 4788187, %v1179
      %v1181 = vand.u32 2147483647, %v1180
      %v1183 = vcvt.s32.f32 %v1176
      %v1184 = vmul.f32 %v1183, %v1181
      %v1185 = vxor.u32 %v1184, 2147483648
      %v1186 = vsel %vm1103, %v1185, %v1184
      %v1187 = vsub.s32 4, %v1163
      %v1188 = vsel %vm1103, %v1187, %v1163
      %v1189 = vsel %vm1102, %v158, %v1186
      %v1190 = vsel %vm1102, 0, %v1188
      %v1191 = vcosq.f32.pop %v1189
      %v1192 = vsinq.f32.pop %v1189
      %vm1193 = vweird.f32 %v158
      %v1194 = vadd.s32 %v1190, 3
      %v1195 = vand.u32 %v1194, 3
      %vm1196 = vcmp.lt.s32.totalorder %v1195, 2
      %vm1197 = vcmp.eq.s32.totalorder %v1195, 0
      %v1198 = vxor.u32 %v1192, 2147483648
      %v1199 = vsel %vm1197, %v1191, %v1198
      %vm1200 = vcmp.eq.s32.totalorder %v1195, 2
      %v1201 = vxor.u32 %v1191, 2147483648
      %v1202 = vsel %vm1200, %v1201, %v1192
      %v1203 = vsel %vm1196, %v1199, %v1202
      %v1204 = vsel %vm1193, nan, %v1203
      %v1205 = vand.u32 2147483647, %v159
      %vm1206 = vcmp.le.f32.partialorder %v1205, 0.7853982
      %vm1207 = vcmp.lt.s32.totalorder %v159, 0
      %v1208 = vand.u32 %v159, 2139095040
      %v1209 = vshrl.u32 %v1208, 23
      %v1210 = vsub.s32 %v1209, 127
      %v1211 = vand.u32 2147483647, %v159
      %v1212 = vand.u32 %v1211, 8388607
      %v1213 = vor.u32 %v1212, 8388608
      %v1214 = vsub.s32 0, %v1213
      %v1215 = vadd.s32 %v1210, 1
      %vm1216 = vcmp.gt.s32.totalorder %v1215, 0
      %v1217 = vsel %vm1216, %v1215, 0
      %v1218 = vshrl.u32 %v1217, 5
      %v1219 = vand.u32 %v1217, 31
      %v1220 = vsub.s32 32, %v1219
      %v1221 = vshrl.u32 683565275, %v1220
      %v1222 = vshll.u32 683565275, %v1219
      %v1223 = vshrl.u32 2475754826, %v1220
      %v1224 = vor.u32 %v1222, %v1223
      %v1225 = vshll.u32 2475754826, %v1219
      %v1226 = vshrl.u32 2131351028, %v1220
      %v1227 = vor.u32 %v1225, %v1226
      %v1228 = vshll.u32 2131351028, %v1219
      %v1229 = vshrl.u32 2102212464, %v1220
      %v1230 = vor.u32 %v1228, %v1229
      %v1231 = vshll.u32 2102212464, %v1219
      %v1232 = vshrl.u32 920167782, %v1220
      %v1233 = vor.u32 %v1231, %v1232
      %v1234 = vshll.u32 920167782, %v1219
      %v1235 = vshrl.u32 1326507024, %v1220
      %v1236 = vor.u32 %v1234, %v1235
      %vm1237 = vcmp.lt.s32.totalorder %v1218, 1
      %vm1238 = vcmp.lt.s32.totalorder %v1218, 2
      %vm1239 = vcmp.lt.s32.totalorder %v1218, 3
      %vm1240 = vcmp.lt.s32.totalorder %v1218, 4
      %v1241 = vsel %vm1237, %v1221, %v1224
      %v1242 = vsel %vm1240, %v1230, 2102212464
      %v1243 = vsel %vm1239, %v1227, %v1242
      %v1244 = vsel %vm1238, %v1241, %v1243
      %v1245 = vsel %vm1237, %v1224, %v1227
      %v1246 = vsel %vm1240, %v1233, 920167782
      %v1247 = vsel %vm1239, %v1230, %v1246
      %v1248 = vsel %vm1238, %v1245, %v1247
      %v1249 = vsel %vm1237, %v1227, %v1230
      %v1250 = vsel %vm1240, %v1236, 1326507024
      %v1251 = vsel %vm1239, %v1233, %v1250
      %v1252 = vsel %vm1238, %v1249, %v1251
      %v1253 = vshll.u32 %v1213, 8
      %v1254 = vmul.u32.u64.compose %v1253, %v1252
      %v1255 = vextract.low.u32 %v1254
      %v1256 = vextract.high.u32 %v1254
      %v1257 = vmul.u32.u64.compose %v1253, %v1248
      %v1258 = vextract.low.u32 %v1257
      %v1259 = vextract.high.u32 %v1257
      %v1260 = vmul.u32 %v1253, %v1244
      %v1261 = vadd.s32 %v1256, %v1258
      %vm1262 = vc.u32 %v1256, %v1258
      %v1263 = vadd.s32 %v1259, 1
      %v1264 = vsel %vm1262, %v1263, %v1259
      %v1265 = vadd.s32 %v1260, %v1264
      %v1266 = vadd.s32 %v1265, 536870912
      %v1267 = vshrl.u32 %v1266, 30
      %v1268 = vshll.u32 %v1267, 30
      %v1269 = vsub.s32 %v1265, %v1268
      %vm1270 = vcmp.lt.s32.totalorder %v1269, 0
      %v1271 = vsub.s32 0, %v1269
      %v1272 = vsel %vm1270, %v1271, %v1269
      %v1273 = vclz %v1272
      %v1274 = vsub.s32 %v1273, 2
      %vm1275 = vcmp.gt.s32.totalorder 0, %v1274
      %v1276 = vsel %vm1275, 0, %v1274
      %v1277 = vsub.s32 32, %v1276
      %v1278 = vshll.u32 %v1269, %v1276
      %v1279 = vshrl.u32 %v1261, %v1277
      %v1280 = vor.u32 %v1278, %v1279
      %v1281 = vsub.s32 4294967266, %v1276
      %v1282 = vadd.s32 %v1281, 127
      %v1283 = vshll.u32 %v1282, 23
      %v1284 = vor.u32 4788187, %v1283
      %v1285 = vand.u32 2147483647, %v1284
      %v1287 = vcvt.s32.f32 %v1280
      %v1288 = vmul.f32 %v1287, %v1285
      %v1289 = vxor.u32 %v1288, 2147483648
      %v1290 = vsel %vm1207, %v1289, %v1288
      %v1291 = vsub.s32 4, %v1267
      %v1292 = vsel %vm1207, %v1291, %v1267
      %v1293 = vsel %vm1206, %v159, %v1290
      %v1294 = vsel %vm1206, 0, %v1292
      %v1295 = vcosq.f32.pop %v1293
      %v1296 = vsinq.f32.pop %v1293
      %vm1297 = vweird.f32 %v159
      %v1298 = vadd.s32 %v1294, 3
      %v1299 = vand.u32 %v1298, 3
      %vm1300 = vcmp.lt.s32.totalorder %v1299, 2
      %vm1301 = vcmp.eq.s32.totalorder %v1299, 0
      %v1302 = vxor.u32 %v1296, 2147483648
      %v1303 = vsel %vm1301, %v1295, %v1302
      %vm1304 = vcmp.eq.s32.totalorder %v1299, 2
      %v1305 = vxor.u32 %v1295, 2147483648
      %v1306 = vsel %vm1304, %v1305, %v1296
      %v1307 = vsel %vm1300, %v1303, %v1306
      %v1308 = vsel %vm1297, nan, %v1307
      %v1309 = vand.u32 2147483647, %v160
      %vm1310 = vcmp.le.f32.partialorder %v1309, 0.7853982
      %vm1311 = vcmp.lt.s32.totalorder %v160, 0
      %v1312 = vand.u32 %v160, 2139095040
      %v1313 = vshrl.u32 %v1312, 23
      %v1314 = vsub.s32 %v1313, 127
      %v1315 = vand.u32 2147483647, %v160
      %v1316 = vand.u32 %v1315, 8388607
      %v1317 = vor.u32 %v1316, 8388608
      %v1318 = vsub.s32 0, %v1317
      %v1319 = vadd.s32 %v1314, 1
      %vm1320 = vcmp.gt.s32.totalorder %v1319, 0
      %v1321 = vsel %vm1320, %v1319, 0
      %v1322 = vshrl.u32 %v1321, 5
      %v1323 = vand.u32 %v1321, 31
      %v1324 = vsub.s32 32, %v1323
      %v1325 = vshrl.u32 683565275, %v1324
      %v1326 = vshll.u32 683565275, %v1323
      %v1327 = vshrl.u32 2475754826, %v1324
      %v1328 = vor.u32 %v1326, %v1327
      %v1329 = vshll.u32 2475754826, %v1323
      %v1330 = vshrl.u32 2131351028, %v1324
      %v1331 = vor.u32 %v1329, %v1330
      %v1332 = vshll.u32 2131351028, %v1323
      %v1333 = vshrl.u32 2102212464, %v1324
      %v1334 = vor.u32 %v1332, %v1333
      %v1335 = vshll.u32 2102212464, %v1323
      %v1336 = vshrl.u32 920167782, %v1324
      %v1337 = vor.u32 %v1335, %v1336
      %v1338 = vshll.u32 920167782, %v1323
      %v1339 = vshrl.u32 1326507024, %v1324
      %v1340 = vor.u32 %v1338, %v1339
      %vm1341 = vcmp.lt.s32.totalorder %v1322, 1
      %vm1342 = vcmp.lt.s32.totalorder %v1322, 2
      %vm1343 = vcmp.lt.s32.totalorder %v1322, 3
      %vm1344 = vcmp.lt.s32.totalorder %v1322, 4
      %v1345 = vsel %vm1341, %v1325, %v1328
      %v1346 = vsel %vm1344, %v1334, 2102212464
      %v1347 = vsel %vm1343, %v1331, %v1346
      %v1348 = vsel %vm1342, %v1345, %v1347
      %v1349 = vsel %vm1341, %v1328, %v1331
      %v1350 = vsel %vm1344, %v1337, 920167782
      %v1351 = vsel %vm1343, %v1334, %v1350
      %v1352 = vsel %vm1342, %v1349, %v1351
      %v1353 = vsel %vm1341, %v1331, %v1334
      %v1354 = vsel %vm1344, %v1340, 1326507024
      %v1355 = vsel %vm1343, %v1337, %v1354
      %v1356 = vsel %vm1342, %v1353, %v1355
      %v1357 = vshll.u32 %v1317, 8
      %v1358 = vmul.u32.u64.compose %v1357, %v1356
      %v1359 = vextract.low.u32 %v1358
      %v1360 = vextract.high.u32 %v1358
      %v1361 = vmul.u32.u64.compose %v1357, %v1352
      %v1362 = vextract.low.u32 %v1361
      %v1363 = vextract.high.u32 %v1361
      %v1364 = vmul.u32 %v1357, %v1348
      %v1365 = vadd.s32 %v1360, %v1362
      %vm1366 = vc.u32 %v1360, %v1362
      %v1367 = vadd.s32 %v1363, 1
      %v1368 = vsel %vm1366, %v1367, %v1363
      %v1369 = vadd.s32 %v1364, %v1368
      %v1370 = vadd.s32 %v1369, 536870912
      %v1371 = vshrl.u32 %v1370, 30
      %v1372 = vshll.u32 %v1371, 30
      %v1373 = vsub.s32 %v1369, %v1372
      %vm1374 = vcmp.lt.s32.totalorder %v1373, 0
      %v1375 = vsub.s32 0, %v1373
      %v1376 = vsel %vm1374, %v1375, %v1373
      %v1377 = vclz %v1376
      %v1378 = vsub.s32 %v1377, 2
      %vm1379 = vcmp.gt.s32.totalorder 0, %v1378
      %v1380 = vsel %vm1379, 0, %v1378
      %v1381 = vsub.s32 32, %v1380
      %v1382 = vshll.u32 %v1373, %v1380
      %v1383 = vshrl.u32 %v1365, %v1381
      %v1384 = vor.u32 %v1382, %v1383
      %v1385 = vsub.s32 4294967266, %v1380
      %v1386 = vadd.s32 %v1385, 127
      %v1387 = vshll.u32 %v1386, 23
      %v1388 = vor.u32 4788187, %v1387
      %v1389 = vand.u32 2147483647, %v1388
      %v1391 = vcvt.s32.f32 %v1384
      %v1392 = vmul.f32 %v1391, %v1389
      %v1393 = vxor.u32 %v1392, 2147483648
      %v1394 = vsel %vm1311, %v1393, %v1392
      %v1395 = vsub.s32 4, %v1371
      %v1396 = vsel %vm1311, %v1395, %v1371
      %v1397 = vsel %vm1310, %v160, %v1394
      %v1398 = vsel %vm1310, 0, %v1396
      %v1399 = vcosq.f32.pop %v1397
      %v1400 = vsinq.f32.pop %v1397
      %vm1401 = vweird.f32 %v160
      %v1402 = vadd.s32 %v1398, 3
      %v1403 = vand.u32 %v1402, 3
      %vm1404 = vcmp.lt.s32.totalorder %v1403, 2
      %vm1405 = vcmp.eq.s32.totalorder %v1403, 0
      %v1406 = vxor.u32 %v1400, 2147483648
      %v1407 = vsel %vm1405, %v1399, %v1406
      %vm1408 = vcmp.eq.s32.totalorder %v1403, 2
      %v1409 = vxor.u32 %v1399, 2147483648
      %v1410 = vsel %vm1408, %v1409, %v1400
      %v1411 = vsel %vm1404, %v1407, %v1410
      %v1412 = vsel %vm1401, nan, %v1411
      %v1413 = vand.u32 2147483647, %v161
      %vm1414 = vcmp.le.f32.partialorder %v1413, 0.7853982
      %vm1415 = vcmp.lt.s32.totalorder %v161, 0
      %v1416 = vand.u32 %v161, 2139095040
      %v1417 = vshrl.u32 %v1416, 23
      %v1418 = vsub.s32 %v1417, 127
      %v1419 = vand.u32 2147483647, %v161
      %v1420 = vand.u32 %v1419, 8388607
      %v1421 = vor.u32 %v1420, 8388608
      %v1422 = vsub.s32 0, %v1421
      %v1423 = vadd.s32 %v1418, 1
      %vm1424 = vcmp.gt.s32.totalorder %v1423, 0
      %v1425 = vsel %vm1424, %v1423, 0
      %v1426 = vshrl.u32 %v1425, 5
      %v1427 = vand.u32 %v1425, 31
      %v1428 = vsub.s32 32, %v1427
      %v1429 = vshrl.u32 683565275, %v1428
      %v1430 = vshll.u32 683565275, %v1427
      %v1431 = vshrl.u32 2475754826, %v1428
      %v1432 = vor.u32 %v1430, %v1431
      %v1433 = vshll.u32 2475754826, %v1427
      %v1434 = vshrl.u32 2131351028, %v1428
      %v1435 = vor.u32 %v1433, %v1434
      %v1436 = vshll.u32 2131351028, %v1427
      %v1437 = vshrl.u32 2102212464, %v1428
      %v1438 = vor.u32 %v1436, %v1437
      %v1439 = vshll.u32 2102212464, %v1427
      %v1440 = vshrl.u32 920167782, %v1428
      %v1441 = vor.u32 %v1439, %v1440
      %v1442 = vshll.u32 920167782, %v1427
      %v1443 = vshrl.u32 1326507024, %v1428
      %v1444 = vor.u32 %v1442, %v1443
      %vm1445 = vcmp.lt.s32.totalorder %v1426, 1
      %vm1446 = vcmp.lt.s32.totalorder %v1426, 2
      %vm1447 = vcmp.lt.s32.totalorder %v1426, 3
      %vm1448 = vcmp.lt.s32.totalorder %v1426, 4
      %v1449 = vsel %vm1445, %v1429, %v1432
      %v1450 = vsel %vm1448, %v1438, 2102212464
      %v1451 = vsel %vm1447, %v1435, %v1450
      %v1452 = vsel %vm1446, %v1449, %v1451
      %v1453 = vsel %vm1445, %v1432, %v1435
      %v1454 = vsel %vm1448, %v1441, 920167782
      %v1455 = vsel %vm1447, %v1438, %v1454
      %v1456 = vsel %vm1446, %v1453, %v1455
      %v1457 = vsel %vm1445, %v1435, %v1438
      %v1458 = vsel %vm1448, %v1444, 1326507024
      %v1459 = vsel %vm1447, %v1441, %v1458
      %v1460 = vsel %vm1446, %v1457, %v1459
      %v1461 = vshll.u32 %v1421, 8
      %v1462 = vmul.u32.u64.compose %v1461, %v1460
      %v1463 = vextract.low.u32 %v1462
      %v1464 = vextract.high.u32 %v1462
      %v1465 = vmul.u32.u64.compose %v1461, %v1456
      %v1466 = vextract.low.u32 %v1465
      %v1467 = vextract.high.u32 %v1465
      %v1468 = vmul.u32 %v1461, %v1452
      %v1469 = vadd.s32 %v1464, %v1466
      %vm1470 = vc.u32 %v1464, %v1466
      %v1471 = vadd.s32 %v1467, 1
      %v1472 = vsel %vm1470, %v1471, %v1467
      %v1473 = vadd.s32 %v1468, %v1472
      %v1474 = vadd.s32 %v1473, 536870912
      %v1475 = vshrl.u32 %v1474, 30
      %v1476 = vshll.u32 %v1475, 30
      %v1477 = vsub.s32 %v1473, %v1476
      %vm1478 = vcmp.lt.s32.totalorder %v1477, 0
      %v1479 = vsub.s32 0, %v1477
      %v1480 = vsel %vm1478, %v1479, %v1477
      %v1481 = vclz %v1480
      %v1482 = vsub.s32 %v1481, 2
      %vm1483 = vcmp.gt.s32.totalorder 0, %v1482
      %v1484 = vsel %vm1483, 0, %v1482
      %v1485 = vsub.s32 32, %v1484
      %v1486 = vshll.u32 %v1477, %v1484
      %v1487 = vshrl.u32 %v1469, %v1485
      %v1488 = vor.u32 %v1486, %v1487
      %v1489 = vsub.s32 4294967266, %v1484
      %v1490 = vadd.s32 %v1489, 127
      %v1491 = vshll.u32 %v1490, 23
      %v1492 = vor.u32 4788187, %v1491
      %v1493 = vand.u32 2147483647, %v1492
      %v1495 = vcvt.s32.f32 %v1488
      %v1496 = vmul.f32 %v1495, %v1493
      %v1497 = vxor.u32 %v1496, 2147483648
      %v1498 = vsel %vm1415, %v1497, %v1496
      %v1499 = vsub.s32 4, %v1475
      %v1500 = vsel %vm1415, %v1499, %v1475
      %v1501 = vsel %vm1414, %v161, %v1498
      %v1502 = vsel %vm1414, 0, %v1500
      %v1503 = vcosq.f32.pop %v1501
      %v1504 = vsinq.f32.pop %v1501
      %vm1505 = vweird.f32 %v161
      %v1506 = vadd.s32 %v1502, 3
      %v1507 = vand.u32 %v1506, 3
      %vm1508 = vcmp.lt.s32.totalorder %v1507, 2
      %vm1509 = vcmp.eq.s32.totalorder %v1507, 0
      %v1510 = vxor.u32 %v1504, 2147483648
      %v1511 = vsel %vm1509, %v1503, %v1510
      %vm1512 = vcmp.eq.s32.totalorder %v1507, 2
      %v1513 = vxor.u32 %v1503, 2147483648
      %v1514 = vsel %vm1512, %v1513, %v1504
      %v1515 = vsel %vm1508, %v1511, %v1514
      %v1516 = vsel %vm1505, nan, %v1515
      %v1517 = vand.u32 2147483647, %v162
      %vm1518 = vcmp.le.f32.partialorder %v1517, 0.7853982
      %vm1519 = vcmp.lt.s32.totalorder %v162, 0
      %v1520 = vand.u32 %v162, 2139095040
      %v1521 = vshrl.u32 %v1520, 23
      %v1522 = vsub.s32 %v1521, 127
      %v1523 = vand.u32 2147483647, %v162
      %v1524 = vand.u32 %v1523, 8388607
      %v1525 = vor.u32 %v1524, 8388608
      %v1526 = vsub.s32 0, %v1525
      %v1527 = vadd.s32 %v1522, 1
      %vm1528 = vcmp.gt.s32.totalorder %v1527, 0
      %v1529 = vsel %vm1528, %v1527, 0
      %v1530 = vshrl.u32 %v1529, 5
      %v1531 = vand.u32 %v1529, 31
      %v1532 = vsub.s32 32, %v1531
      %v1533 = vshrl.u32 683565275, %v1532
      %v1534 = vshll.u32 683565275, %v1531
      %v1535 = vshrl.u32 2475754826, %v1532
      %v1536 = vor.u32 %v1534, %v1535
      %v1537 = vshll.u32 2475754826, %v1531
      %v1538 = vshrl.u32 2131351028, %v1532
      %v1539 = vor.u32 %v1537, %v1538
      %v1540 = vshll.u32 2131351028, %v1531
      %v1541 = vshrl.u32 2102212464, %v1532
      %v1542 = vor.u32 %v1540, %v1541
      %v1543 = vshll.u32 2102212464, %v1531
      %v1544 = vshrl.u32 920167782, %v1532
      %v1545 = vor.u32 %v1543, %v1544
      %v1546 = vshll.u32 920167782, %v1531
      %v1547 = vshrl.u32 1326507024, %v1532
      %v1548 = vor.u32 %v1546, %v1547
      %vm1549 = vcmp.lt.s32.totalorder %v1530, 1
      %vm1550 = vcmp.lt.s32.totalorder %v1530, 2
      %vm1551 = vcmp.lt.s32.totalorder %v1530, 3
      %vm1552 = vcmp.lt.s32.totalorder %v1530, 4
      %v1553 = vsel %vm1549, %v1533, %v1536
      %v1554 = vsel %vm1552, %v1542, 2102212464
      %v1555 = vsel %vm1551, %v1539, %v1554
      %v1556 = vsel %vm1550, %v1553, %v1555
      %v1557 = vsel %vm1549, %v1536, %v1539
      %v1558 = vsel %vm1552, %v1545, 920167782
      %v1559 = vsel %vm1551, %v1542, %v1558
      %v1560 = vsel %vm1550, %v1557, %v1559
      %v1561 = vsel %vm1549, %v1539, %v1542
      %v1562 = vsel %vm1552, %v1548, 1326507024
      %v1563 = vsel %vm1551, %v1545, %v1562
      %v1564 = vsel %vm1550, %v1561, %v1563
      %v1565 = vshll.u32 %v1525, 8
      %v1566 = vmul.u32.u64.compose %v1565, %v1564
      %v1567 = vextract.low.u32 %v1566
      %v1568 = vextract.high.u32 %v1566
      %v1569 = vmul.u32.u64.compose %v1565, %v1560
      %v1570 = vextract.low.u32 %v1569
      %v1571 = vextract.high.u32 %v1569
      %v1572 = vmul.u32 %v1565, %v1556
      %v1573 = vadd.s32 %v1568, %v1570
      %vm1574 = vc.u32 %v1568, %v1570
      %v1575 = vadd.s32 %v1571, 1
      %v1576 = vsel %vm1574, %v1575, %v1571
      %v1577 = vadd.s32 %v1572, %v1576
      %v1578 = vadd.s32 %v1577, 536870912
      %v1579 = vshrl.u32 %v1578, 30
      %v1580 = vshll.u32 %v1579, 30
      %v1581 = vsub.s32 %v1577, %v1580
      %vm1582 = vcmp.lt.s32.totalorder %v1581, 0
      %v1583 = vsub.s32 0, %v1581
      %v1584 = vsel %vm1582, %v1583, %v1581
      %v1585 = vclz %v1584
      %v1586 = vsub.s32 %v1585, 2
      %vm1587 = vcmp.gt.s32.totalorder 0, %v1586
      %v1588 = vsel %vm1587, 0, %v1586
      %v1589 = vsub.s32 32, %v1588
      %v1590 = vshll.u32 %v1581, %v1588
      %v1591 = vshrl.u32 %v1573, %v1589
      %v1592 = vor.u32 %v1590, %v1591
      %v1593 = vsub.s32 4294967266, %v1588
      %v1594 = vadd.s32 %v1593, 127
      %v1595 = vshll.u32 %v1594, 23
      %v1596 = vor.u32 4788187, %v1595
      %v1597 = vand.u32 2147483647, %v1596
      %v1599 = vcvt.s32.f32 %v1592
      %v1600 = vmul.f32 %v1599, %v1597
      %v1601 = vxor.u32 %v1600, 2147483648
      %v1602 = vsel %vm1519, %v1601, %v1600
      %v1603 = vsub.s32 4, %v1579
      %v1604 = vsel %vm1519, %v1603, %v1579
      %v1605 = vsel %vm1518, %v162, %v1602
      %v1606 = vsel %vm1518, 0, %v1604
      %v1607 = vcosq.f32.pop %v1605
      %v1608 = vsinq.f32.pop %v1605
      %vm1609 = vweird.f32 %v162
      %v1610 = vadd.s32 %v1606, 3
      %v1611 = vand.u32 %v1610, 3
      %vm1612 = vcmp.lt.s32.totalorder %v1611, 2
      %vm1613 = vcmp.eq.s32.totalorder %v1611, 0
      %v1614 = vxor.u32 %v1608, 2147483648
      %v1615 = vsel %vm1613, %v1607, %v1614
      %vm1616 = vcmp.eq.s32.totalorder %v1611, 2
      %v1617 = vxor.u32 %v1607, 2147483648
      %v1618 = vsel %vm1616, %v1617, %v1608
      %v1619 = vsel %vm1612, %v1615, %v1618
      %v1620 = vsel %vm1609, nan, %v1619
      %v1621 = vand.u32 2147483647, %v163
      %vm1622 = vcmp.le.f32.partialorder %v1621, 0.7853982
      %vm1623 = vcmp.lt.s32.totalorder %v163, 0
      %v1624 = vand.u32 %v163, 2139095040
      %v1625 = vshrl.u32 %v1624, 23
      %v1626 = vsub.s32 %v1625, 127
      %v1627 = vand.u32 2147483647, %v163
      %v1628 = vand.u32 %v1627, 8388607
      %v1629 = vor.u32 %v1628, 8388608
      %v1630 = vsub.s32 0, %v1629
      %v1631 = vadd.s32 %v1626, 1
      %vm1632 = vcmp.gt.s32.totalorder %v1631, 0
      %v1633 = vsel %vm1632, %v1631, 0
      %v1634 = vshrl.u32 %v1633, 5
      %v1635 = vand.u32 %v1633, 31
      %v1636 = vsub.s32 32, %v1635
      %v1637 = vshrl.u32 683565275, %v1636
      %v1638 = vshll.u32 683565275, %v1635
      %v1639 = vshrl.u32 2475754826, %v1636
      %v1640 = vor.u32 %v1638, %v1639
      %v1641 = vshll.u32 2475754826, %v1635
      %v1642 = vshrl.u32 2131351028, %v1636
      %v1643 = vor.u32 %v1641, %v1642
      %v1644 = vshll.u32 2131351028, %v1635
      %v1645 = vshrl.u32 2102212464, %v1636
      %v1646 = vor.u32 %v1644, %v1645
      %v1647 = vshll.u32 2102212464, %v1635
      %v1648 = vshrl.u32 920167782, %v1636
      %v1649 = vor.u32 %v1647, %v1648
      %v1650 = vshll.u32 920167782, %v1635
      %v1651 = vshrl.u32 1326507024, %v1636
      %v1652 = vor.u32 %v1650, %v1651
      %vm1653 = vcmp.lt.s32.totalorder %v1634, 1
      %vm1654 = vcmp.lt.s32.totalorder %v1634, 2
      %vm1655 = vcmp.lt.s32.totalorder %v1634, 3
      %vm1656 = vcmp.lt.s32.totalorder %v1634, 4
      %v1657 = vsel %vm1653, %v1637, %v1640
      %v1658 = vsel %vm1656, %v1646, 2102212464
      %v1659 = vsel %vm1655, %v1643, %v1658
      %v1660 = vsel %vm1654, %v1657, %v1659
      %v1661 = vsel %vm1653, %v1640, %v1643
      %v1662 = vsel %vm1656, %v1649, 920167782
      %v1663 = vsel %vm1655, %v1646, %v1662
      %v1664 = vsel %vm1654, %v1661, %v1663
      %v1665 = vsel %vm1653, %v1643, %v1646
      %v1666 = vsel %vm1656, %v1652, 1326507024
      %v1667 = vsel %vm1655, %v1649, %v1666
      %v1668 = vsel %vm1654, %v1665, %v1667
      %v1669 = vshll.u32 %v1629, 8
      %v1670 = vmul.u32.u64.compose %v1669, %v1668
      %v1671 = vextract.low.u32 %v1670
      %v1672 = vextract.high.u32 %v1670
      %v1673 = vmul.u32.u64.compose %v1669, %v1664
      %v1674 = vextract.low.u32 %v1673
      %v1675 = vextract.high.u32 %v1673
      %v1676 = vmul.u32 %v1669, %v1660
      %v1677 = vadd.s32 %v1672, %v1674
      %vm1678 = vc.u32 %v1672, %v1674
      %v1679 = vadd.s32 %v1675, 1
      %v1680 = vsel %vm1678, %v1679, %v1675
      %v1681 = vadd.s32 %v1676, %v1680
      %v1682 = vadd.s32 %v1681, 536870912
      %v1683 = vshrl.u32 %v1682, 30
      %v1684 = vshll.u32 %v1683, 30
      %v1685 = vsub.s32 %v1681, %v1684
      %vm1686 = vcmp.lt.s32.totalorder %v1685, 0
      %v1687 = vsub.s32 0, %v1685
      %v1688 = vsel %vm1686, %v1687, %v1685
      %v1689 = vclz %v1688
      %v1690 = vsub.s32 %v1689, 2
      %vm1691 = vcmp.gt.s32.totalorder 0, %v1690
      %v1692 = vsel %vm1691, 0, %v1690
      %v1693 = vsub.s32 32, %v1692
      %v1694 = vshll.u32 %v1685, %v1692
      %v1695 = vshrl.u32 %v1677, %v1693
      %v1696 = vor.u32 %v1694, %v1695
      %v1697 = vsub.s32 4294967266, %v1692
      %v1698 = vadd.s32 %v1697, 127
      %v1699 = vshll.u32 %v1698, 23
      %v1700 = vor.u32 4788187, %v1699
      %v1701 = vand.u32 2147483647, %v1700
      %v1703 = vcvt.s32.f32 %v1696
      %v1704 = vmul.f32 %v1703, %v1701
      %v1705 = vxor.u32 %v1704, 2147483648
      %v1706 = vsel %vm1623, %v1705, %v1704
      %v1707 = vsub.s32 4, %v1683
      %v1708 = vsel %vm1623, %v1707, %v1683
      %v1709 = vsel %vm1622, %v163, %v1706
      %v1710 = vsel %vm1622, 0, %v1708
      %v1711 = vcosq.f32.pop %v1709
      %v1712 = vsinq.f32.pop %v1709
      %vm1713 = vweird.f32 %v163
      %v1714 = vadd.s32 %v1710, 3
      %v1715 = vand.u32 %v1714, 3
      %vm1716 = vcmp.lt.s32.totalorder %v1715, 2
      %vm1717 = vcmp.eq.s32.totalorder %v1715, 0
      %v1718 = vxor.u32 %v1712, 2147483648
      %v1719 = vsel %vm1717, %v1711, %v1718
      %vm1720 = vcmp.eq.s32.totalorder %v1715, 2
      %v1721 = vxor.u32 %v1711, 2147483648
      %v1722 = vsel %vm1720, %v1721, %v1712
      %v1723 = vsel %vm1716, %v1719, %v1722
      %v1724 = vsel %vm1713, nan, %v1723
      %v1725 = vand.u32 2147483647, %v164
      %vm1726 = vcmp.le.f32.partialorder %v1725, 0.7853982
      %vm1727 = vcmp.lt.s32.totalorder %v164, 0
      %v1728 = vand.u32 %v164, 2139095040
      %v1729 = vshrl.u32 %v1728, 23
      %v1730 = vsub.s32 %v1729, 127
      %v1731 = vand.u32 2147483647, %v164
      %v1732 = vand.u32 %v1731, 8388607
      %v1733 = vor.u32 %v1732, 8388608
      %v1734 = vsub.s32 0, %v1733
      %v1735 = vadd.s32 %v1730, 1
      %vm1736 = vcmp.gt.s32.totalorder %v1735, 0
      %v1737 = vsel %vm1736, %v1735, 0
      %v1738 = vshrl.u32 %v1737, 5
      %v1739 = vand.u32 %v1737, 31
      %v1740 = vsub.s32 32, %v1739
      %v1741 = vshrl.u32 683565275, %v1740
      %v1742 = vshll.u32 683565275, %v1739
      %v1743 = vshrl.u32 2475754826, %v1740
      %v1744 = vor.u32 %v1742, %v1743
      %v1745 = vshll.u32 2475754826, %v1739
      %v1746 = vshrl.u32 2131351028, %v1740
      %v1747 = vor.u32 %v1745, %v1746
      %v1748 = vshll.u32 2131351028, %v1739
      %v1749 = vshrl.u32 2102212464, %v1740
      %v1750 = vor.u32 %v1748, %v1749
      %v1751 = vshll.u32 2102212464, %v1739
      %v1752 = vshrl.u32 920167782, %v1740
      %v1753 = vor.u32 %v1751, %v1752
      %v1754 = vshll.u32 920167782, %v1739
      %v1755 = vshrl.u32 1326507024, %v1740
      %v1756 = vor.u32 %v1754, %v1755
      %vm1757 = vcmp.lt.s32.totalorder %v1738, 1
      %vm1758 = vcmp.lt.s32.totalorder %v1738, 2
      %vm1759 = vcmp.lt.s32.totalorder %v1738, 3
      %vm1760 = vcmp.lt.s32.totalorder %v1738, 4
      %v1761 = vsel %vm1757, %v1741, %v1744
      %v1762 = vsel %vm1760, %v1750, 2102212464
      %v1763 = vsel %vm1759, %v1747, %v1762
      %v1764 = vsel %vm1758, %v1761, %v1763
      %v1765 = vsel %vm1757, %v1744, %v1747
      %v1766 = vsel %vm1760, %v1753, 920167782
      %v1767 = vsel %vm1759, %v1750, %v1766
      %v1768 = vsel %vm1758, %v1765, %v1767
      %v1769 = vsel %vm1757, %v1747, %v1750
      %v1770 = vsel %vm1760, %v1756, 1326507024
      %v1771 = vsel %vm1759, %v1753, %v1770
      %v1772 = vsel %vm1758, %v1769, %v1771
      %v1773 = vshll.u32 %v1733, 8
      %v1774 = vmul.u32.u64.compose %v1773, %v1772
      %v1775 = vextract.low.u32 %v1774
      %v1776 = vextract.high.u32 %v1774
      %v1777 = vmul.u32.u64.compose %v1773, %v1768
      %v1778 = vextract.low.u32 %v1777
      %v1779 = vextract.high.u32 %v1777
      %v1780 = vmul.u32 %v1773, %v1764
      %v1781 = vadd.s32 %v1776, %v1778
      %vm1782 = vc.u32 %v1776, %v1778
      %v1783 = vadd.s32 %v1779, 1
      %v1784 = vsel %vm1782, %v1783, %v1779
      %v1785 = vadd.s32 %v1780, %v1784
      %v1786 = vadd.s32 %v1785, 536870912
      %v1787 = vshrl.u32 %v1786, 30
      %v1788 = vshll.u32 %v1787, 30
      %v1789 = vsub.s32 %v1785, %v1788
      %vm1790 = vcmp.lt.s32.totalorder %v1789, 0
      %v1791 = vsub.s32 0, %v1789
      %v1792 = vsel %vm1790, %v1791, %v1789
      %v1793 = vclz %v1792
      %v1794 = vsub.s32 %v1793, 2
      %vm1795 = vcmp.gt.s32.totalorder 0, %v1794
      %v1796 = vsel %vm1795, 0, %v1794
      %v1797 = vsub.s32 32, %v1796
      %v1798 = vshll.u32 %v1789, %v1796
      %v1799 = vshrl.u32 %v1781, %v1797
      %v1800 = vor.u32 %v1798, %v1799
      %v1801 = vsub.s32 4294967266, %v1796
      %v1802 = vadd.s32 %v1801, 127
      %v1803 = vshll.u32 %v1802, 23
      %v1804 = vor.u32 4788187, %v1803
      %v1805 = vand.u32 2147483647, %v1804
      %v1807 = vcvt.s32.f32 %v1800
      %v1808 = vmul.f32 %v1807, %v1805
      %v1809 = vxor.u32 %v1808, 2147483648
      %v1810 = vsel %vm1727, %v1809, %v1808
      %v1811 = vsub.s32 4, %v1787
      %v1812 = vsel %vm1727, %v1811, %v1787
      %v1813 = vsel %vm1726, %v164, %v1810
      %v1814 = vsel %vm1726, 0, %v1812
      %v1815 = vcosq.f32.pop %v1813
      %v1816 = vsinq.f32.pop %v1813
      %vm1817 = vweird.f32 %v164
      %v1818 = vadd.s32 %v1814, 3
      %v1819 = vand.u32 %v1818, 3
      %vm1820 = vcmp.lt.s32.totalorder %v1819, 2
      %vm1821 = vcmp.eq.s32.totalorder %v1819, 0
      %v1822 = vxor.u32 %v1816, 2147483648
      %v1823 = vsel %vm1821, %v1815, %v1822
      %vm1824 = vcmp.eq.s32.totalorder %v1819, 2
      %v1825 = vxor.u32 %v1815, 2147483648
      %v1826 = vsel %vm1824, %v1825, %v1816
      %v1827 = vsel %vm1820, %v1823, %v1826
      %v1828 = vsel %vm1817, nan, %v1827
      %v1829 = vld [vmem:[#allocation8] sm:$0xff]
      %v1830 = vld [vmem:[#allocation8 + $0x8] sm:$0xff]
      %v1831 = vld [vmem:[#allocation8 + $0x10] sm:$0xff]
      %v1832 = vld [vmem:[#allocation8 + $0x18] sm:$0xff]
      %v1833 = vld [vmem:[#allocation8 + $0x20] sm:$0xff]
      %v1834 = vld [vmem:[#allocation8 + $0x28] sm:$0xff]
      %v1835 = vld [vmem:[#allocation8 + $0x30] sm:$0xff]
      %v1836 = vld [vmem:[#allocation8 + $0x38] sm:$0xff]
      %v1837 = vld [vmem:[#allocation8 + $0x40] sm:$0xff]
      %v1838 = vld [vmem:[#allocation8 + $0x48] sm:$0xff]
      %v1839 = vld [vmem:[#allocation8 + $0x50] sm:$0xff]
      %v1840 = vld [vmem:[#allocation8 + $0x58] sm:$0xff]
      %v1841 = vld [vmem:[#allocation8 + $0x60] sm:$0xff]
      %v1842 = vld [vmem:[#allocation8 + $0x68] sm:$0xff]
      %v1843 = vld [vmem:[#allocation8 + $0x70] sm:$0xff]
      %v1844 = vld [vmem:[#allocation8 + $0x78] sm:$0xff]
      %v1845 = vld [vmem:[#allocation10] sm:$0xff]
      %v1846 = vld [vmem:[#allocation10 + $0x8] sm:$0xff]
      %v1847 = vld [vmem:[#allocation10 + $0x10] sm:$0xff]
      %v1848 = vld [vmem:[#allocation10 + $0x18] sm:$0xff]
      %v1849 = vld [vmem:[#allocation10 + $0x20] sm:$0xff]
      %v1850 = vld [vmem:[#allocation10 + $0x28] sm:$0xff]
      %v1851 = vld [vmem:[#allocation10 + $0x30] sm:$0xff]
      %v1852 = vld [vmem:[#allocation10 + $0x38] sm:$0xff]
      %v1853 = vld [vmem:[#allocation10 + $0x40] sm:$0xff]
      %v1854 = vld [vmem:[#allocation10 + $0x48] sm:$0xff]
      %v1855 = vld [vmem:[#allocation10 + $0x50] sm:$0xff]
      %v1856 = vld [vmem:[#allocation10 + $0x58] sm:$0xff]
      %v1857 = vld [vmem:[#allocation10 + $0x60] sm:$0xff]
      %v1858 = vld [vmem:[#allocation10 + $0x68] sm:$0xff]
      %v1859 = vld [vmem:[#allocation10 + $0x70] sm:$0xff]
      %v1860 = vld [vmem:[#allocation10 + $0x78] sm:$0xff]
      %v1861 = vmul.f32 %v1845, %v268
      %v1862 = vmul.f32 %v1846, %v372
      %v1863 = vmul.f32 %v1847, %v476
      %v1864 = vmul.f32 %v1848, %v580
      %v1865 = vmul.f32 %v1849, %v684
      %v1866 = vmul.f32 %v1850, %v788
      %v1867 = vmul.f32 %v1851, %v892
      %v1868 = vmul.f32 %v1852, %v996
      %v1869 = vmul.f32 %v1853, %v1100
      %v1870 = vmul.f32 %v1854, %v1204
      %v1871 = vmul.f32 %v1855, %v1308
      %v1872 = vmul.f32 %v1856, %v1412
      %v1873 = vmul.f32 %v1857, %v1516
      %v1874 = vmul.f32 %v1858, %v1620
      %v1875 = vmul.f32 %v1859, %v1724
      %v1876 = vmul.f32 %v1860, %v1828
      %v1877 = vadd.f32 %v1829, %v1861
      %v1878 = vadd.f32 %v1830, %v1862
      %v1879 = vadd.f32 %v1831, %v1863
      %v1880 = vadd.f32 %v1832, %v1864
      %v1881 = vadd.f32 %v1833, %v1865
      %v1882 = vadd.f32 %v1834, %v1866
      %v1883 = vadd.f32 %v1835, %v1867
      %v1884 = vadd.f32 %v1836, %v1868
      %v1885 = vadd.f32 %v1837, %v1869
      %v1886 = vadd.f32 %v1838, %v1870
      %v1887 = vadd.f32 %v1839, %v1871
      %v1888 = vadd.f32 %v1840, %v1872
      %v1889 = vadd.f32 %v1841, %v1873
      %v1890 = vadd.f32 %v1842, %v1874
      %v1891 = vadd.f32 %v1843, %v1875
      %v1892 = vadd.f32 %v1844, %v1876
      %1893 = vst [vmem:[#allocation2] sm:$0xff] %v1877
      %1894 = vst [vmem:[#allocation2 + $0x8] sm:$0xff] %v1878
      %1895 = vst [vmem:[#allocation2 + $0x10] sm:$0xff] %v1879
      %1896 = vst [vmem:[#allocation2 + $0x18] sm:$0xff] %v1880
      %1897 = vst [vmem:[#allocation2 + $0x20] sm:$0xff] %v1881
      %1898 = vst [vmem:[#allocation2 + $0x28] sm:$0xff] %v1882
      %1899 = vst [vmem:[#allocation2 + $0x30] sm:$0xff] %v1883
      %1900 = vst [vmem:[#allocation2 + $0x38] sm:$0xff] %v1884
      %1901 = vst [vmem:[#allocation2 + $0x40] sm:$0xff] %v1885
      %1902 = vst [vmem:[#allocation2 + $0x48] sm:$0xff] %v1886
      %1903 = vst [vmem:[#allocation2 + $0x50] sm:$0xff] %v1887
      %1904 = vst [vmem:[#allocation2 + $0x58] sm:$0xff] %v1888
      %1905 = vst [vmem:[#allocation2 + $0x60] sm:$0xff] %v1889
      %1906 = vst [vmem:[#allocation2 + $0x68] sm:$0xff] %v1890
      %1907 = vst [vmem:[#allocation2 + $0x70] sm:$0xff] %v1891
      %1908 = vst [vmem:[#allocation2 + $0x78] sm:$0xff] %v1892
    $region49: #{tpu_custom_call.1} parent=1 // pred_fallthru
      _
    %v1909 = vld [vmem:[#allocation5] sm:$0xff]
    %v1910 = vld [vmem:[#allocation5 + $0x8] sm:$0xff]
    %v1911 = vld [vmem:[#allocation2] sm:$0xff]
    %v1912 = vld [vmem:[#allocation2 + $0x8] sm:$0xff]
    %v1913 = vld [vmem:[#allocation2 + $0x10] sm:$0xff]
    %v1914 = vld [vmem:[#allocation2 + $0x18] sm:$0xff]
    %v1915 = vld [vmem:[#allocation2 + $0x20] sm:$0xff]
    %v1916 = vld [vmem:[#allocation2 + $0x28] sm:$0xff]
    %v1917 = vld [vmem:[#allocation2 + $0x30] sm:$0xff]
    %v1918 = vld [vmem:[#allocation2 + $0x38] sm:$0xff]
    %v1919 = vld [vmem:[#allocation2 + $0x40] sm:$0xff]
    %v1920 = vld [vmem:[#allocation2 + $0x48] sm:$0xff]
    %v1921 = vld [vmem:[#allocation2 + $0x50] sm:$0xff]
    %v1922 = vld [vmem:[#allocation2 + $0x58] sm:$0xff]
    %v1923 = vld [vmem:[#allocation2 + $0x60] sm:$0xff]
    %v1924 = vld [vmem:[#allocation2 + $0x68] sm:$0xff]
    %v1925 = vld [vmem:[#allocation2 + $0x70] sm:$0xff]
    %v1926 = vld [vmem:[#allocation2 + $0x78] sm:$0xff]
    %v1927 = vld [vmem:[%s6] sm:$0x1]
    %v1929 = vlaneseq
    %v1930 = vshrl.u32 %v1929, 7
    %v1931 = vsub.s32 0, %v1930
    %v1932 = vrot.slane %v1927, %v1931
    %1934 = vmatprep.subr.mxu0 0.0
    %1935 = vmatpush1.msra.mxu0 %v1911
    %1936 = vmatprep.subr.mxu0 0.0
    %1937 = vmatpush1.msra.mxu0 %v1912
    %1938 = vmatprep.subr.mxu0 0.0
    %1939 = vmatpush1.msra.mxu0 %v1913
    %1940 = vmatprep.subr.mxu0 0.0
    %1941 = vmatpush1.msra.mxu0 %v1914
    %1942 = vmatprep.subr.mxu0 0.0
    %1943 = vmatpush1.msra.mxu0 %v1915
    %1944 = vmatprep.subr.mxu0 0.0
    %1945 = vmatpush1.msra.mxu0 %v1916
    %1946 = vmatprep.subr.mxu0 0.0
    %1947 = vmatpush1.msra.mxu0 %v1917
    %1948 = vmatprep.subr.mxu0 0.0
    %1949 = vmatpush1.msra.mxu0 %v1918
    %1950 = vmatprep.subr.mxu0 0.0
    %1951 = vmatpush1.msra.mxu0 %v1919
    %1952 = vmatprep.subr.mxu0 0.0
    %1953 = vmatpush1.msra.mxu0 %v1920
    %1954 = vmatprep.subr.mxu0 0.0
    %1955 = vmatpush1.msra.mxu0 %v1921
    %1956 = vmatprep.subr.mxu0 0.0
    %1957 = vmatpush1.msra.mxu0 %v1922
    %1958 = vmatprep.subr.mxu0 0.0
    %1959 = vmatpush1.msra.mxu0 %v1923
    %1960 = vmatprep.subr.mxu0 0.0
    %1961 = vmatpush1.msra.mxu0 %v1924
    %1962 = vmatprep.subr.mxu0 0.0
    %1963 = vmatpush1.msra.mxu0 %v1925
    %1964 = vmatprep.subr.mxu0 0.0
    %1965 = vmatpush1.msra.mxu0 %v1926
    %1966 = vmatprep.subr.mxu0 0.0
    %1967 = vmatpush1.msra.mxu0 0.0
    %1968 = vmatprep.subr.mxu0 0.0
    %1969 = vmatpush1.msra.mxu0 0.0
    %1970 = vmatprep.subr.mxu0 0.0
    %1971 = vmatpush1.msra.mxu0 0.0
    %1972 = vmatprep.subr.mxu0 0.0
    %1973 = vmatpush1.msra.mxu0 0.0
    %1974 = vmatprep.subr.mxu0 0.0
    %1975 = vmatpush1.msra.mxu0 0.0
    %1976 = vmatprep.subr.mxu0 0.0
    %1977 = vmatpush1.msra.mxu0 0.0
    %1978 = vmatprep.subr.mxu0 0.0
    %1979 = vmatpush1.msra.mxu0 0.0
    %1980 = vmatprep.subr.mxu0 0.0
    %1981 = vmatpush1.msra.mxu0 0.0
    %1982 = vmatprep.subr.mxu0 0.0
    %1983 = vmatpush1.msra.mxu0 0.0
    %1984 = vmatprep.subr.mxu0 0.0
    %1985 = vmatpush1.msra.mxu0 0.0
    %1986 = vmatprep.subr.mxu0 0.0
    %1987 = vmatpush1.msra.mxu0 0.0
    %1988 = vmatprep.subr.mxu0 0.0
    %1989 = vmatpush1.msra.mxu0 0.0
    %1990 = vmatprep.subr.mxu0 0.0
    %1991 = vmatpush1.msra.mxu0 0.0
    %1992 = vmatprep.subr.mxu0 0.0
    %1993 = vmatpush1.msra.mxu0 0.0
    %1994 = vmatprep.subr.mxu0 0.0
    %1995 = vmatpush1.msra.mxu0 0.0
    %1996 = vmatprep.subr.mxu0 0.0
    %1997 = vmatpush1.msra.mxu0 0.0
    %1998 = vmatprep.mubr.f32.mxu0 0.0
    %1999 = vmatmul.mubr.f32.gmra.mrb[0].mxu0 %v1909
    %v2000 = vpop.f32.mrb[0].mxu0
    %v2001 = vadd.f32 %v1932, %v2000
    %v2002 = vpop.f32.mrb[0].mxu0
    %2003 = vmatprep.mubr.f32.mxu0 0.0
    %2004 = vmatmul.mubr.f32.gmra.mrb[0].mxu0 %v1910
    %v2005 = vpop.f32.mrb[0].mxu0
    %v2006 = vadd.f32 %v1932, %v2005
    %v2007 = vpop.f32.mrb[0].mxu0
    %2008 = vdwg.mxu0
    %2009 = vst [vmem:[#allocation14] sm:$0xff] %v2001
    %2010 = vst [vmem:[#allocation14 + $0x8] sm:$0xff] %v2006
    // Predicated region
    $region50: #{tpu_custom_call.1} parent=1 // pred_check
      _
    $region51: #{tpu_custom_call.1} parent=1 // pred_check_branch
      %2012 = sbr.rel (0) target = $region53
    $region52: #{tpu_custom_call.1} parent=1 // pred_region
      %s2014 = ssub.s32 256, 256
      %2015 = vsyncadd [#allocation7], %s2014
      %s2016 = sshll.u32 [#allocation14], 4
      %s2017 = int_to_ptr.vmem [resolvable:$true] %s2016
      %2022 = dma.vmem_to_hbm [thread:$0]  %s2017, 256, %s7, [#allocation7], 128, 128, 8
    $region53: #{tpu_custom_call.1} parent=1 // pred_fallthru
      _
    // Predicated region
    $region54: #{tpu_custom_call.1} parent=1 // pred_check
      _
    $region55: #{tpu_custom_call.1} parent=1 // pred_check_branch
      %2024 = sbr.rel (0) target = $region57
    $region56: #{tpu_custom_call.1} parent=1 // pred_region
      %2025 = dma.done [#allocation7], 256
    $region57: #{tpu_custom_call.1} parent=1 // pred_fallthru
      _
    %2026 = vsyncpa [#allocation6], 1
    %2027 = vsyncpa [#allocation9], 1
    %2028 = vsyncpa [#allocation12], 1
    %2029 = vsyncpa [#allocation7], 1

</llo_original>
